<compile_context>
chip_gen: v7x
topology: tpu7x:2x2x1
jax: 0.10.0
libtpu: 0.0.40
codegen_flags: <defaults>
</compile_context>

<pallas_src>
import jax
import jax.numpy as jnp
from jax.experimental import pallas as pl
from jax.experimental.pallas import tpu as pltpu

IMAGE_SIZE = 32
IN_DIM = IMAGE_SIZE * IMAGE_SIZE   # 1024
HIDDEN = 256
NUM_CLASSES = 10
HEAD_PAD = 128                     # fused adv+cls head, padded to one full lane width


def _round_up(n, m):
    return ((n + m - 1) // m) * m


def _leaky_relu(x, slope=0.2):
    return jnp.where(x > 0, x, slope * x)


def discriminator_kernel(x_ref, w1_ref, b1_ref, w2_ref, b2_ref,
                         wh_ref, bh_ref, out_ref):
    # x arrives as f32 straight from HBM (no wrapper-side cast round trip);
    # cast to bf16 in VMEM right before feeding the MXU.
    x = x_ref[...].astype(jnp.bfloat16)                                # (TB, 1024)

    # layer 0: Linear(1024 -> 256) + LeakyReLU(0.2)   (bf16 MXU, f32 accumulate)
    h = jnp.dot(x, w1_ref[...], preferred_element_type=jnp.float32) + b1_ref[...]
    h = _leaky_relu(h).astype(jnp.bfloat16)

    # layer 1: Linear(256 -> 256) + LeakyReLU(0.2)
    h = jnp.dot(h, w2_ref[...], preferred_element_type=jnp.float32) + b2_ref[...]
    h = _leaky_relu(h).astype(jnp.bfloat16)

    # fused heads: one lane-dense 128-wide matmul.
    #   lane 0       -> adv logit (sigmoid applied on the slice in the wrapper)
    #   lanes 1..10  -> class logits (raw, like the PyTorch module)
    #   lanes 11..127-> zero-padded (sliced away in the wrapper)
    head = jnp.dot(h, wh_ref[...], preferred_element_type=jnp.float32) + bh_ref[...]
    out_ref[...] = head.astype(out_ref.dtype)                          # (TB, 128) bf16


def prepare_params(params):
    """One-time parameter prep (hoisted out of the per-call forward):
    fuse the adv/cls heads into one 128-lane head and cast MXU weights to bf16."""
    w1, b1, w2, b2, wa, ba, wc, bc = params
    w_head = jnp.zeros((HIDDEN, HEAD_PAD), jnp.float32)
    w_head = w_head.at[:, 0:1].set(wa).at[:, 1:1 + NUM_CLASSES].set(wc)
    b_head = jnp.zeros((1, HEAD_PAD), jnp.float32)
    b_head = b_head.at[:, 0:1].set(ba).at[:, 1:1 + NUM_CLASSES].set(bc)
    return (w1.astype(jnp.bfloat16), b1.astype(jnp.float32),
            w2.astype(jnp.bfloat16), b2.astype(jnp.float32),
            w_head.astype(jnp.bfloat16), b_head)


def discriminator_forward(x, prepped_params, *, block_batch=1024):
    """x: (B, 1024) float32.  prepped_params: output of prepare_params().
    Returns (adv (B,1) f32 post-sigmoid, cls (B,10) f32 raw logits).

    block_batch: rows per grid step.  1024-2048 amortizes the ~0.35 us/step
    pipeline overhead on training batches (256 only makes sense for tiny
    inference batches).  Keep <= 2048 so the double-buffered f32 x tile stays
    well inside the 32 MiB scoped-VMEM budget (also safe on v7x's 64 MiB VMEM).
    """
    w1b, b1, w2b, b2, whb, bh = prepped_params
    B = x.shape[0]

    Bp_req = _round_up(max(B, 1), 256)
    TB = max(256, min(_round_up(block_batch, 256), Bp_req))
    # v7x megacore: keep >= 2 grid steps when there is enough work, so the
    # "parallel" batch axis can be sharded across both TensorCores.
    if Bp_req >= 512 and pl.cdiv(Bp_req, TB) < 2:
        TB = _round_up(pl.cdiv(Bp_req, 2), 256)
    n_blocks = pl.cdiv(B, TB)
    Bp = n_blocks * TB
    if Bp != B:
        x = jnp.pad(x, ((0, Bp - B), (0, 0)))

    # Weights/biases: VMEM-resident across all grid steps (constant index_map),
    # single-buffered to save VMEM headroom.
    def resident(shape):
        return pl.BlockSpec(shape, lambda i: (0,) * len(shape),
                            pipeline_mode=pl.Buffered(1))

    cost = pl.CostEstimate(
        flops=2 * Bp * (IN_DIM * HIDDEN + HIDDEN * HIDDEN + HIDDEN * HEAD_PAD),
        transcendentals=0,
        bytes_accessed=(Bp * IN_DIM * 4                               # x (f32)
                        + (w1b.size + w2b.size + whb.size) * 2        # bf16 weights
                        + (b1.size + b2.size + bh.size) * 4           # f32 biases
                        + Bp * HEAD_PAD * 2),                         # bf16 writeback
    )

    # TODO(synk): optional v7x-only experiment — fp8 x/W1 for the 1024->256 layer.
    out = pl.pallas_call(
        discriminator_kernel,
        out_shape=jax.ShapeDtypeStruct((Bp, HEAD_PAD), jnp.bfloat16),
        grid_spec=pltpu.PrefetchScalarGridSpec(
            num_scalar_prefetch=0,
            grid=(n_blocks,),
            in_specs=[
                pl.BlockSpec((TB, IN_DIM), lambda i: (i, 0)),  # x: pipelined per step
                resident((IN_DIM, HIDDEN)),                    # W1 (bf16, VMEM-resident)
                resident((1, HIDDEN)),                         # b1 (f32)
                resident((HIDDEN, HIDDEN)),                    # W2 (bf16)
                resident((1, HIDDEN)),                         # b2 (f32)
                resident((HIDDEN, HEAD_PAD)),                  # fused head W (bf16)
                resident((1, HEAD_PAD)),                       # fused head b (f32)
            ],
            out_specs=pl.BlockSpec((TB, HEAD_PAD), lambda i: (i, 0)),
        ),
        compiler_params=pltpu.CompilerParams(
            dimension_semantics=("parallel",),    # shard batch tiles across TCs (v7x)
            vmem_limit_bytes=32 * 1024 * 1024,    # safe on v5e/v6e/v7x
        ),
        cost_estimate=cost,
    )(x, w1b, b1, w2b, b2, whb, bh)

    out = out[:B].astype(jnp.float32)
    adv = jax.nn.sigmoid(out[:, 0:1])          # sigmoid on the single adv lane only
    cls = out[:, 1:1 + NUM_CLASSES]
    return adv, cls


def init_params(key):
    """Deterministic parameter init (PyTorch Linear-style uniform bounds)."""
    ks = jax.random.split(key, 8)

    def linear(kw, kb, fan_in, fan_out):
        bound = 1.0 / jnp.sqrt(fan_in)
        w = jax.random.uniform(kw, (fan_in, fan_out), jnp.float32, -bound, bound)
        b = jax.random.uniform(kb, (1, fan_out), jnp.float32, -bound, bound)
        return w, b

    w1, b1 = linear(ks[0], ks[1], IN_DIM, HIDDEN)
    w2, b2 = linear(ks[2], ks[3], HIDDEN, HIDDEN)
    wa, ba = linear(ks[4], ks[5], HIDDEN, 1)
    wc, bc = linear(ks[6], ks[7], HIDDEN, NUM_CLASSES)
    return (w1, b1, w2, b2, wa, ba, wc, bc)


def reference_forward(x, params):
    """Pure-JAX f32 reference with the original (unfused) head layout."""
    w1, b1, w2, b2, wa, ba, wc, bc = params
    h = _leaky_relu(x @ w1 + b1)
    h = _leaky_relu(h @ w2 + b2)
    adv = jax.nn.sigmoid(h @ wa + ba)
    cls = h @ wc + bc
    return adv, cls


if __name__ == "__main__":
    key = jax.random.PRNGKey(0)
    k_params, k_x = jax.random.split(key)

    params = init_params(k_params)
    prepped = prepare_params(params)          # one-time prep (head fusion + bf16 casts)
    jax.block_until_ready(prepped)

    B = 8  # small demo batch (padded to one 256-row tile inside the wrapper)
    x = jax.random.normal(k_x, (B, IN_DIM), jnp.float32)

    adv, cls = discriminator_forward(x, prepped)
    jax.block_until_ready((adv, cls))

    # sanity check against a pure-JAX f32 reference (kernel uses bf16 matmuls
    # and a bf16 logit writeback)
    adv_ref, cls_ref = reference_forward(x, params)
    assert adv.shape == (B, 1) and cls.shape == (B, NUM_CLASSES)
    assert jnp.allclose(adv, adv_ref, atol=2e-2, rtol=2e-2), \
        float(jnp.max(jnp.abs(adv - adv_ref)))
    assert jnp.allclose(cls, cls_ref, atol=3e-2, rtol=3e-2), \
        float(jnp.max(jnp.abs(cls - cls_ref)))

    print("KERNEL_OK")
</pallas_src>

<mosaic_0001>
module attributes {stable_mosaic.version = 11 : i64} {
  func.func @discriminator_kernel(%arg0: i32, %arg1: memref<256x1024xf32, #tpu.memory_space<vmem>>, %arg2: memref<1024x256xbf16, #tpu.memory_space<vmem>>, %arg3: memref<1x256xf32, #tpu.memory_space<vmem>>, %arg4: memref<256x256xbf16, #tpu.memory_space<vmem>>, %arg5: memref<1x256xf32, #tpu.memory_space<vmem>>, %arg6: memref<256x128xbf16, #tpu.memory_space<vmem>>, %arg7: memref<1x128xf32, #tpu.memory_space<vmem>>, %arg8: memref<256x128xbf16, #tpu.memory_space<vmem>>) attributes {dimension_semantics = [#tpu.dimension_semantics<parallel>], iteration_bounds = array<i64: 1>, scalar_prefetch = 0 : i64, scratch_operands = 0 : i64, tpu.core_type = #tpu.core_type<tc>, window_params = [{transform_indices = @transform_0, window_bounds = array<i64: 256, 1024>}, {pipeline_mode = #tpu.pipeline_mode<synchronous>, transform_indices = @transform_1, window_bounds = array<i64: 1024, 256>}, {pipeline_mode = #tpu.pipeline_mode<synchronous>, transform_indices = @transform_2, window_bounds = array<i64: 1, 256>}, {pipeline_mode = #tpu.pipeline_mode<synchronous>, transform_indices = @transform_3, window_bounds = array<i64: 256, 256>}, {pipeline_mode = #tpu.pipeline_mode<synchronous>, transform_indices = @transform_4, window_bounds = array<i64: 1, 256>}, {pipeline_mode = #tpu.pipeline_mode<synchronous>, transform_indices = @transform_5, window_bounds = array<i64: 256, 128>}, {pipeline_mode = #tpu.pipeline_mode<synchronous>, transform_indices = @transform_6, window_bounds = array<i64: 1, 128>}, {transform_indices = @transform_7, window_bounds = array<i64: 256, 128>}]} {
    %c0 = arith.constant 0 : index
    %c0_0 = arith.constant 0 : index
    %0 = vector.load %arg1[%c0, %c0_0] : memref<256x1024xf32, #tpu.memory_space<vmem>>, vector<256x1024xf32>
    %1 = arith.truncf %0 : vector<256x1024xf32> to vector<256x1024xbf16>
    %c0_1 = arith.constant 0 : index
    %c0_2 = arith.constant 0 : index
    %2 = vector.load %arg2[%c0_1, %c0_2] : memref<1024x256xbf16, #tpu.memory_space<vmem>>, vector<1024x256xbf16>
    %cst = arith.constant dense<0.000000e+00> : vector<256x256xf32>
    %3 = tpu.matmul %1, %2, %cst {dimension_numbers = #tpu.dot_dimension_numbers<[1], [0], [0], [1], [0, 0, 1, 1], [], []>} : vector<256x1024xbf16>, vector<1024x256xbf16>, vector<256x256xf32> -> vector<256x256xf32>
    %c0_3 = arith.constant 0 : index
    %c0_4 = arith.constant 0 : index
    %4 = vector.load %arg3[%c0_3, %c0_4] : memref<1x256xf32, #tpu.memory_space<vmem>>, vector<1x256xf32>
    %5 = vector.broadcast %4 : vector<1x256xf32> to vector<256x256xf32>
    %6 = arith.addf %3, %5 : vector<256x256xf32>
    %cst_5 = arith.constant 0.000000e+00 : f32
    %7 = vector.broadcast %cst_5 : f32 to vector<256x256xf32>
    %8 = arith.cmpf ogt, %6, %7 : vector<256x256xf32>
    %cst_6 = arith.constant 2.000000e-01 : f32
    %9 = vector.broadcast %cst_6 : f32 to vector<256x256xf32>
    %10 = arith.mulf %9, %6 : vector<256x256xf32>
    %11 = arith.select %8, %6, %10 : vector<256x256xi1>, vector<256x256xf32>
    %12 = arith.truncf %11 : vector<256x256xf32> to vector<256x256xbf16>
    %c0_7 = arith.constant 0 : index
    %c0_8 = arith.constant 0 : index
    %13 = vector.load %arg4[%c0_7, %c0_8] : memref<256x256xbf16, #tpu.memory_space<vmem>>, vector<256x256xbf16>
    %cst_9 = arith.constant dense<0.000000e+00> : vector<256x256xf32>
    %14 = tpu.matmul %12, %13, %cst_9 {dimension_numbers = #tpu.dot_dimension_numbers<[1], [0], [0], [1], [0, 0, 1, 1], [], []>} : vector<256x256xbf16>, vector<256x256xbf16>, vector<256x256xf32> -> vector<256x256xf32>
    %c0_10 = arith.constant 0 : index
    %c0_11 = arith.constant 0 : index
    %15 = vector.load %arg5[%c0_10, %c0_11] : memref<1x256xf32, #tpu.memory_space<vmem>>, vector<1x256xf32>
    %16 = vector.broadcast %15 : vector<1x256xf32> to vector<256x256xf32>
    %17 = arith.addf %14, %16 : vector<256x256xf32>
    %cst_12 = arith.constant 0.000000e+00 : f32
    %18 = vector.broadcast %cst_12 : f32 to vector<256x256xf32>
    %19 = arith.cmpf ogt, %17, %18 : vector<256x256xf32>
    %cst_13 = arith.constant 2.000000e-01 : f32
    %20 = vector.broadcast %cst_13 : f32 to vector<256x256xf32>
    %21 = arith.mulf %20, %17 : vector<256x256xf32>
    %22 = arith.select %19, %17, %21 : vector<256x256xi1>, vector<256x256xf32>
    %23 = arith.truncf %22 : vector<256x256xf32> to vector<256x256xbf16>
    %c0_14 = arith.constant 0 : index
    %c0_15 = arith.constant 0 : index
    %24 = vector.load %arg6[%c0_14, %c0_15] : memref<256x128xbf16, #tpu.memory_space<vmem>>, vector<256x128xbf16>
    %cst_16 = arith.constant dense<0.000000e+00> : vector<256x128xf32>
    %25 = tpu.matmul %23, %24, %cst_16 {dimension_numbers = #tpu.dot_dimension_numbers<[1], [0], [0], [1], [0, 0, 1, 1], [], []>} : vector<256x256xbf16>, vector<256x128xbf16>, vector<256x128xf32> -> vector<256x128xf32>
    %c0_17 = arith.constant 0 : index
    %c0_18 = arith.constant 0 : index
    %26 = vector.load %arg7[%c0_17, %c0_18] : memref<1x128xf32, #tpu.memory_space<vmem>>, vector<1x128xf32>
    %27 = vector.broadcast %26 : vector<1x128xf32> to vector<256x128xf32>
    %28 = arith.addf %25, %27 : vector<256x128xf32>
    %29 = arith.truncf %28 : vector<256x128xf32> to vector<256x128xbf16>
    %c0_19 = arith.constant 0 : index
    %c0_20 = arith.constant 0 : index
    %30 = vector.load %arg8[%c0_19, %c0_20] : memref<256x128xbf16, #tpu.memory_space<vmem>>, vector<256x128xbf16>
    tpu.vector_store %arg8[%c0_19, %c0_20], %29 {strides = array<i32>} : memref<256x128xbf16, #tpu.memory_space<vmem>>, vector<256x128xbf16>,
    return
  }
  func.func @transform_0(%arg0: i32) -> (i32, i32) {
    %c0_i32 = arith.constant 0 : i32
    %c0_i32_0 = arith.constant 0 : i32
    return %arg0, %c0_i32 : i32, i32
  }
  func.func @transform_1(%arg0: i32) -> (i32, i32) {
    %c0_i32 = arith.constant 0 : i32
    %c0_i32_0 = arith.constant 0 : i32
    %c0_i32_1 = arith.constant 0 : i32
    return %c0_i32, %c0_i32_0 : i32, i32
  }
  func.func @transform_2(%arg0: i32) -> (i32, i32) {
    %c0_i32 = arith.constant 0 : i32
    %c0_i32_0 = arith.constant 0 : i32
    %c0_i32_1 = arith.constant 0 : i32
    return %c0_i32, %c0_i32_0 : i32, i32
  }
  func.func @transform_3(%arg0: i32) -> (i32, i32) {
    %c0_i32 = arith.constant 0 : i32
    %c0_i32_0 = arith.constant 0 : i32
    %c0_i32_1 = arith.constant 0 : i32
    return %c0_i32, %c0_i32_0 : i32, i32
  }
  func.func @transform_4(%arg0: i32) -> (i32, i32) {
    %c0_i32 = arith.constant 0 : i32
    %c0_i32_0 = arith.constant 0 : i32
    %c0_i32_1 = arith.constant 0 : i32
    return %c0_i32, %c0_i32_0 : i32, i32
  }
  func.func @transform_5(%arg0: i32) -> (i32, i32) {
    %c0_i32 = arith.constant 0 : i32
    %c0_i32_0 = arith.constant 0 : i32
    %c0_i32_1 = arith.constant 0 : i32
    return %c0_i32, %c0_i32_0 : i32, i32
  }
  func.func @transform_6(%arg0: i32) -> (i32, i32) {
    %c0_i32 = arith.constant 0 : i32
    %c0_i32_0 = arith.constant 0 : i32
    %c0_i32_1 = arith.constant 0 : i32
    return %c0_i32, %c0_i32_0 : i32, i32
  }
  func.func @transform_7(%arg0: i32) -> (i32, i32) {
    %c0_i32 = arith.constant 0 : i32
    %c0_i32_0 = arith.constant 0 : i32
    return %arg0, %c0_i32 : i32, i32
  }
}

</mosaic_0001>

<llo_original>
// kernel: tpu_custom_call.1
$region0: #{tpu_custom_call.1}
  #allocation0 [shape = 'u32[]', space=smem, size = 0x4, offset = 0x4, fixed_abs, tag = 'smem constant byte address 0x4 - core index']
  #allocation1 [shape = 'u32[144,128]{1,0:T(1,128)}', space=vmem, size = 0x12000, scoped, tag = 'internal scratch']
  %s0 = inlined_call_operand.hbm [shape: f32[256,1024], index: 0, kind: input, shape index: {}]
  %s1 = inlined_call_operand.hbm [shape: bf16[1024,256], index: 1, kind: input, shape index: {}]
  %s2 = inlined_call_operand.vmem [shape: f32[1,256], index: 2, kind: input, shape index: {}]
  %s3 = inlined_call_operand.hbm [shape: bf16[256,256], index: 3, kind: input, shape index: {}]
  %s4 = inlined_call_operand.vmem [shape: f32[1,256], index: 4, kind: input, shape index: {}]
  %s5 = inlined_call_operand.hbm [shape: bf16[256,128], index: 5, kind: input, shape index: {}]
  %s6 = inlined_call_operand.vmem [shape: f32[1,128], index: 6, kind: input, shape index: {}]
  %s7 = inlined_call_operand.hbm [shape: bf16[256,128], index: 7, kind: output, shape index: {}]
  %s8 = sld [smem:[#allocation0]]
  $region54: #{tpu_custom_call.1} parent=0
    _
  %s10 = ssub.s32 1, %s8
  %s11 = scalar_select 0, %s10, %s8
  $region1: #{tpu_custom_call.1} parent=0
    #allocation2 [shape = 'u8[1048576]{0}', space=vmem, size = 0x100000, scoped, tag = 'input window, operand 0, single buffered']
    #allocation3 [shape = 's32[1]{0}', space=sflag, size = 0x4, scoped, tag = 'scoped memory for tpu_custom_call.1']
    #allocation4 [shape = 's32[1]{0}', space=sflag, size = 0x4, scoped, tag = 'scoped memory for tpu_custom_call.1']
    #allocation5 [shape = 'u8[524288]{0}', space=vmem, size = 0x80000, scoped, tag = 'input window, operand 1, single buffered']
    #allocation6 [shape = 's32[1]{0}', space=sflag, size = 0x4, scoped, tag = 'scoped memory for tpu_custom_call.1']
    #allocation7 [shape = 'u8[131072]{0}', space=vmem, size = 0x20000, scoped, tag = 'input window, operand 3, single buffered']
    #allocation8 [shape = 'u8[65536]{0}', space=vmem, size = 0x10000, scoped, tag = 'input window, operand 5, single buffered']
    #allocation9 [shape = 's32[1]{0}', space=sflag, size = 0x4, scoped, tag = 'scoped memory for tpu_custom_call.1']
    #allocation10 [shape = 'u8[65536]{0}', space=vmem, size = 0x10000, scoped, tag = 'output window, operand 0, single buffered']
    %12 = vsyncpa [#allocation3], 0
    %13 = vsyncpa [#allocation6], 0
    %14 = vsyncpa [#allocation9], 0
    %15 = vsyncpa [#allocation4], 0
    // Predicated region
    $region2: #{tpu_custom_call.1} parent=1 // pred_check
      _
    $region3: #{tpu_custom_call.1} parent=1 // pred_check_branch
      %17 = sbr.rel (0) target = $region5
    $region4: #{tpu_custom_call.1} parent=1 // pred_region
      %s19 = ssub.s32 32768, 32768
      %20 = vsyncadd [#allocation3], %s19
      %s21 = sshll.u32 [#allocation2], 4
      %s22 = int_to_ptr.vmem [resolvable:$true] %s21
      %27 = dma.hbm_to_vmem [thread:$0]  %s0, 32768, %s22, [#allocation3], 1024, 1024, 64
    $region5: #{tpu_custom_call.1} parent=1 // pred_fallthru
      _
    // Predicated region
    $region6: #{tpu_custom_call.1} parent=1 // pred_check
      _
    $region7: #{tpu_custom_call.1} parent=1 // pred_check_branch
      %29 = sbr.rel (0) target = $region9
    $region8: #{tpu_custom_call.1} parent=1 // pred_region
      %s31 = ssub.s32 16384, 16384
      %32 = vsyncadd [#allocation6], %s31
      %s33 = sshll.u32 [#allocation5], 4
      %s34 = int_to_ptr.vmem [resolvable:$true] %s33
      %39 = dma.hbm_to_vmem [thread:$0]  %s1, 16384, %s34, [#allocation6], 128, 128, 8
    $region9: #{tpu_custom_call.1} parent=1 // pred_fallthru
      _
    // Predicated region
    $region10: #{tpu_custom_call.1} parent=1 // pred_check
      _
    $region11: #{tpu_custom_call.1} parent=1 // pred_check_branch
      %41 = sbr.rel (0) target = $region13
    $region12: #{tpu_custom_call.1} parent=1 // pred_region
      _
    $region13: #{tpu_custom_call.1} parent=1 // pred_fallthru
      _
    // Predicated region
    $region14: #{tpu_custom_call.1} parent=1 // pred_check
      _
    $region15: #{tpu_custom_call.1} parent=1 // pred_check_branch
      %43 = sbr.rel (0) target = $region17
    $region16: #{tpu_custom_call.1} parent=1 // pred_region
      %s45 = ssub.s32 4096, 4096
      %46 = vsyncadd [#allocation6], %s45
      %s47 = sshll.u32 [#allocation7], 4
      %s48 = int_to_ptr.vmem [resolvable:$true] %s47
      %53 = dma.hbm_to_vmem [thread:$0]  %s3, 4096, %s48, [#allocation6], 128, 128, 8
    $region17: #{tpu_custom_call.1} parent=1 // pred_fallthru
      _
    // Predicated region
    $region18: #{tpu_custom_call.1} parent=1 // pred_check
      _
    $region19: #{tpu_custom_call.1} parent=1 // pred_check_branch
      %55 = sbr.rel (0) target = $region21
    $region20: #{tpu_custom_call.1} parent=1 // pred_region
      _
    $region21: #{tpu_custom_call.1} parent=1 // pred_fallthru
      _
    // Predicated region
    $region22: #{tpu_custom_call.1} parent=1 // pred_check
      _
    $region23: #{tpu_custom_call.1} parent=1 // pred_check_branch
      %57 = sbr.rel (0) target = $region25
    $region24: #{tpu_custom_call.1} parent=1 // pred_region
      %s59 = ssub.s32 2048, 2048
      %60 = vsyncadd [#allocation9], %s59
      %s61 = sshll.u32 [#allocation8], 4
      %s62 = int_to_ptr.vmem [resolvable:$true] %s61
      %67 = dma.hbm_to_vmem [thread:$0]  %s5, 2048, %s62, [#allocation9], 64, 64, 4
    $region25: #{tpu_custom_call.1} parent=1 // pred_fallthru
      _
    // Predicated region
    $region26: #{tpu_custom_call.1} parent=1 // pred_check
      _
    $region27: #{tpu_custom_call.1} parent=1 // pred_check_branch
      %69 = sbr.rel (0) target = $region29
    $region28: #{tpu_custom_call.1} parent=1 // pred_region
      _
    $region29: #{tpu_custom_call.1} parent=1 // pred_fallthru
      _
    // Predicated region
    $region30: #{tpu_custom_call.1} parent=1 // pred_check
      _
    $region31: #{tpu_custom_call.1} parent=1 // pred_check_branch
      %71 = sbr.rel (0) target = $region33
    $region32: #{tpu_custom_call.1} parent=1 // pred_region
      %72 = dma.done [#allocation3], 32768
    $region33: #{tpu_custom_call.1} parent=1 // pred_fallthru
      _
    // Predicated region
    $region34: #{tpu_custom_call.1} parent=1 // pred_check
      _
    $region35: #{tpu_custom_call.1} parent=1 // pred_check_branch
      %74 = sbr.rel (0) target = $region37
    $region36: #{tpu_custom_call.1} parent=1 // pred_region
      %75 = dma.done [#allocation6], 16384
    $region37: #{tpu_custom_call.1} parent=1 // pred_fallthru
      _
    // Predicated region
    $region38: #{tpu_custom_call.1} parent=1 // pred_check
      _
    $region39: #{tpu_custom_call.1} parent=1 // pred_check_branch
      %77 = sbr.rel (0) target = $region41
    $region40: #{tpu_custom_call.1} parent=1 // pred_region
      %78 = dma.done [#allocation6], 4096
    $region41: #{tpu_custom_call.1} parent=1 // pred_fallthru
      _
    // Predicated region
    $region42: #{tpu_custom_call.1} parent=1 // pred_check
      _
    $region43: #{tpu_custom_call.1} parent=1 // pred_check_branch
      %80 = sbr.rel (0) target = $region45
    $region44: #{tpu_custom_call.1} parent=1 // pred_region
      %81 = dma.done [#allocation9], 2048
    $region45: #{tpu_custom_call.1} parent=1 // pred_fallthru
      _
    %v83 = vld [vmem:[#allocation2] sm:$0xff]
    %v84 = vld [vmem:[#allocation2 + $0x8] sm:$0xff]
    %v85 = vld [vmem:[#allocation2 + $0x10] sm:$0xff]
    %v86 = vld [vmem:[#allocation2 + $0x18] sm:$0xff]
    %v87 = vld [vmem:[#allocation2 + $0x20] sm:$0xff]
    %v88 = vld [vmem:[#allocation2 + $0x28] sm:$0xff]
    %v89 = vld [vmem:[#allocation2 + $0x30] sm:$0xff]
    %v90 = vld [vmem:[#allocation2 + $0x38] sm:$0xff]
    %v91 = vld [vmem:[#allocation2 + $0x40] sm:$0xff]
    %v92 = vld [vmem:[#allocation2 + $0x48] sm:$0xff]
    %v93 = vld [vmem:[#allocation2 + $0x50] sm:$0xff]
    %v94 = vld [vmem:[#allocation2 + $0x58] sm:$0xff]
    %v95 = vld [vmem:[#allocation2 + $0x60] sm:$0xff]
    %v96 = vld [vmem:[#allocation2 + $0x68] sm:$0xff]
    %v97 = vld [vmem:[#allocation2 + $0x70] sm:$0xff]
    %v98 = vld [vmem:[#allocation2 + $0x78] sm:$0xff]
    %v99 = vld [vmem:[#allocation2 + $0x80] sm:$0xff]
    %v100 = vld [vmem:[#allocation2 + $0x88] sm:$0xff]
    %v101 = vld [vmem:[#allocation2 + $0x90] sm:$0xff]
    %v102 = vld [vmem:[#allocation2 + $0x98] sm:$0xff]
    %v103 = vld [vmem:[#allocation2 + $0xa0] sm:$0xff]
    %v104 = vld [vmem:[#allocation2 + $0xa8] sm:$0xff]
    %v105 = vld [vmem:[#allocation2 + $0xb0] sm:$0xff]
    %v106 = vld [vmem:[#allocation2 + $0xb8] sm:$0xff]
    %v107 = vld [vmem:[#allocation2 + $0xc0] sm:$0xff]
    %v108 = vld [vmem:[#allocation2 + $0xc8] sm:$0xff]
    %v109 = vld [vmem:[#allocation2 + $0xd0] sm:$0xff]
    %v110 = vld [vmem:[#allocation2 + $0xd8] sm:$0xff]
    %v111 = vld [vmem:[#allocation2 + $0xe0] sm:$0xff]
    %v112 = vld [vmem:[#allocation2 + $0xe8] sm:$0xff]
    %v113 = vld [vmem:[#allocation2 + $0xf0] sm:$0xff]
    %v114 = vld [vmem:[#allocation2 + $0xf8] sm:$0xff]
    %v115 = vld [vmem:[#allocation2 + $0x100] sm:$0xff]
    %v116 = vld [vmem:[#allocation2 + $0x108] sm:$0xff]
    %v117 = vld [vmem:[#allocation2 + $0x110] sm:$0xff]
    %v118 = vld [vmem:[#allocation2 + $0x118] sm:$0xff]
    %v119 = vld [vmem:[#allocation2 + $0x120] sm:$0xff]
    %v120 = vld [vmem:[#allocation2 + $0x128] sm:$0xff]
    %v121 = vld [vmem:[#allocation2 + $0x130] sm:$0xff]
    %v122 = vld [vmem:[#allocation2 + $0x138] sm:$0xff]
    %v123 = vld [vmem:[#allocation2 + $0x140] sm:$0xff]
    %v124 = vld [vmem:[#allocation2 + $0x148] sm:$0xff]
    %v125 = vld [vmem:[#allocation2 + $0x150] sm:$0xff]
    %v126 = vld [vmem:[#allocation2 + $0x158] sm:$0xff]
    %v127 = vld [vmem:[#allocation2 + $0x160] sm:$0xff]
    %v128 = vld [vmem:[#allocation2 + $0x168] sm:$0xff]
    %v129 = vld [vmem:[#allocation2 + $0x170] sm:$0xff]
    %v130 = vld [vmem:[#allocation2 + $0x178] sm:$0xff]
    %v131 = vld [vmem:[#allocation2 + $0x180] sm:$0xff]
    %v132 = vld [vmem:[#allocation2 + $0x188] sm:$0xff]
    %v133 = vld [vmem:[#allocation2 + $0x190] sm:$0xff]
    %v134 = vld [vmem:[#allocation2 + $0x198] sm:$0xff]
    %v135 = vld [vmem:[#allocation2 + $0x1a0] sm:$0xff]
    %v136 = vld [vmem:[#allocation2 + $0x1a8] sm:$0xff]
    %v137 = vld [vmem:[#allocation2 + $0x1b0] sm:$0xff]
    %v138 = vld [vmem:[#allocation2 + $0x1b8] sm:$0xff]
    %v139 = vld [vmem:[#allocation2 + $0x1c0] sm:$0xff]
    %v140 = vld [vmem:[#allocation2 + $0x1c8] sm:$0xff]
    %v141 = vld [vmem:[#allocation2 + $0x1d0] sm:$0xff]
    %v142 = vld [vmem:[#allocation2 + $0x1d8] sm:$0xff]
    %v143 = vld [vmem:[#allocation2 + $0x1e0] sm:$0xff]
    %v144 = vld [vmem:[#allocation2 + $0x1e8] sm:$0xff]
    %v145 = vld [vmem:[#allocation2 + $0x1f0] sm:$0xff]
    %v146 = vld [vmem:[#allocation2 + $0x1f8] sm:$0xff]
    %v147 = vld [vmem:[#allocation2 + $0x200] sm:$0xff]
    %v148 = vld [vmem:[#allocation2 + $0x208] sm:$0xff]
    %v149 = vld [vmem:[#allocation2 + $0x210] sm:$0xff]
    %v150 = vld [vmem:[#allocation2 + $0x218] sm:$0xff]
    %v151 = vld [vmem:[#allocation2 + $0x220] sm:$0xff]
    %v152 = vld [vmem:[#allocation2 + $0x228] sm:$0xff]
    %v153 = vld [vmem:[#allocation2 + $0x230] sm:$0xff]
    %v154 = vld [vmem:[#allocation2 + $0x238] sm:$0xff]
    %v155 = vld [vmem:[#allocation2 + $0x240] sm:$0xff]
    %v156 = vld [vmem:[#allocation2 + $0x248] sm:$0xff]
    %v157 = vld [vmem:[#allocation2 + $0x250] sm:$0xff]
    %v158 = vld [vmem:[#allocation2 + $0x258] sm:$0xff]
    %v159 = vld [vmem:[#allocation2 + $0x260] sm:$0xff]
    %v160 = vld [vmem:[#allocation2 + $0x268] sm:$0xff]
    %v161 = vld [vmem:[#allocation2 + $0x270] sm:$0xff]
    %v162 = vld [vmem:[#allocation2 + $0x278] sm:$0xff]
    %v163 = vld [vmem:[#allocation2 + $0x280] sm:$0xff]
    %v164 = vld [vmem:[#allocation2 + $0x288] sm:$0xff]
    %v165 = vld [vmem:[#allocation2 + $0x290] sm:$0xff]
    %v166 = vld [vmem:[#allocation2 + $0x298] sm:$0xff]
    %v167 = vld [vmem:[#allocation2 + $0x2a0] sm:$0xff]
    %v168 = vld [vmem:[#allocation2 + $0x2a8] sm:$0xff]
    %v169 = vld [vmem:[#allocation2 + $0x2b0] sm:$0xff]
    %v170 = vld [vmem:[#allocation2 + $0x2b8] sm:$0xff]
    %v171 = vld [vmem:[#allocation2 + $0x2c0] sm:$0xff]
    %v172 = vld [vmem:[#allocation2 + $0x2c8] sm:$0xff]
    %v173 = vld [vmem:[#allocation2 + $0x2d0] sm:$0xff]
    %v174 = vld [vmem:[#allocation2 + $0x2d8] sm:$0xff]
    %v175 = vld [vmem:[#allocation2 + $0x2e0] sm:$0xff]
    %v176 = vld [vmem:[#allocation2 + $0x2e8] sm:$0xff]
    %v177 = vld [vmem:[#allocation2 + $0x2f0] sm:$0xff]
    %v178 = vld [vmem:[#allocation2 + $0x2f8] sm:$0xff]
    %v179 = vld [vmem:[#allocation2 + $0x300] sm:$0xff]
    %v180 = vld [vmem:[#allocation2 + $0x308] sm:$0xff]
    %v181 = vld [vmem:[#allocation2 + $0x310] sm:$0xff]
    %v182 = vld [vmem:[#allocation2 + $0x318] sm:$0xff]
    %v183 = vld [vmem:[#allocation2 + $0x320] sm:$0xff]
    %v184 = vld [vmem:[#allocation2 + $0x328] sm:$0xff]
    %v185 = vld [vmem:[#allocation2 + $0x330] sm:$0xff]
    %v186 = vld [vmem:[#allocation2 + $0x338] sm:$0xff]
    %v187 = vld [vmem:[#allocation2 + $0x340] sm:$0xff]
    %v188 = vld [vmem:[#allocation2 + $0x348] sm:$0xff]
    %v189 = vld [vmem:[#allocation2 + $0x350] sm:$0xff]
    %v190 = vld [vmem:[#allocation2 + $0x358] sm:$0xff]
    %v191 = vld [vmem:[#allocation2 + $0x360] sm:$0xff]
    %v192 = vld [vmem:[#allocation2 + $0x368] sm:$0xff]
    %v193 = vld [vmem:[#allocation2 + $0x370] sm:$0xff]
    %v194 = vld [vmem:[#allocation2 + $0x378] sm:$0xff]
    %v195 = vld [vmem:[#allocation2 + $0x380] sm:$0xff]
    %v196 = vld [vmem:[#allocation2 + $0x388] sm:$0xff]
    %v197 = vld [vmem:[#allocation2 + $0x390] sm:$0xff]
    %v198 = vld [vmem:[#allocation2 + $0x398] sm:$0xff]
    %v199 = vld [vmem:[#allocation2 + $0x3a0] sm:$0xff]
    %v200 = vld [vmem:[#allocation2 + $0x3a8] sm:$0xff]
    %v201 = vld [vmem:[#allocation2 + $0x3b0] sm:$0xff]
    %v202 = vld [vmem:[#allocation2 + $0x3b8] sm:$0xff]
    %v203 = vld [vmem:[#allocation2 + $0x3c0] sm:$0xff]
    %v204 = vld [vmem:[#allocation2 + $0x3c8] sm:$0xff]
    %v205 = vld [vmem:[#allocation2 + $0x3d0] sm:$0xff]
    %v206 = vld [vmem:[#allocation2 + $0x3d8] sm:$0xff]
    %v207 = vld [vmem:[#allocation2 + $0x3e0] sm:$0xff]
    %v208 = vld [vmem:[#allocation2 + $0x3e8] sm:$0xff]
    %v209 = vld [vmem:[#allocation2 + $0x3f0] sm:$0xff]
    %v210 = vld [vmem:[#allocation2 + $0x3f8] sm:$0xff]
    %v211 = vld [vmem:[#allocation2 + $0x400] sm:$0xff]
    %v212 = vld [vmem:[#allocation2 + $0x408] sm:$0xff]
    %v213 = vld [vmem:[#allocation2 + $0x410] sm:$0xff]
    %v214 = vld [vmem:[#allocation2 + $0x418] sm:$0xff]
    %v215 = vld [vmem:[#allocation2 + $0x420] sm:$0xff]
    %v216 = vld [vmem:[#allocation2 + $0x428] sm:$0xff]
    %v217 = vld [vmem:[#allocation2 + $0x430] sm:$0xff]
    %v218 = vld [vmem:[#allocation2 + $0x438] sm:$0xff]
    %v219 = vld [vmem:[#allocation2 + $0x440] sm:$0xff]
    %v220 = vld [vmem:[#allocation2 + $0x448] sm:$0xff]
    %v221 = vld [vmem:[#allocation2 + $0x450] sm:$0xff]
    %v222 = vld [vmem:[#allocation2 + $0x458] sm:$0xff]
    %v223 = vld [vmem:[#allocation2 + $0x460] sm:$0xff]
    %v224 = vld [vmem:[#allocation2 + $0x468] sm:$0xff]
    %v225 = vld [vmem:[#allocation2 + $0x470] sm:$0xff]
    %v226 = vld [vmem:[#allocation2 + $0x478] sm:$0xff]
    %v227 = vld [vmem:[#allocation2 + $0x480] sm:$0xff]
    %v228 = vld [vmem:[#allocation2 + $0x488] sm:$0xff]
    %v229 = vld [vmem:[#allocation2 + $0x490] sm:$0xff]
    %v230 = vld [vmem:[#allocation2 + $0x498] sm:$0xff]
    %v231 = vld [vmem:[#allocation2 + $0x4a0] sm:$0xff]
    %v232 = vld [vmem:[#allocation2 + $0x4a8] sm:$0xff]
    %v233 = vld [vmem:[#allocation2 + $0x4b0] sm:$0xff]
    %v234 = vld [vmem:[#allocation2 + $0x4b8] sm:$0xff]
    %v235 = vld [vmem:[#allocation2 + $0x4c0] sm:$0xff]
    %v236 = vld [vmem:[#allocation2 + $0x4c8] sm:$0xff]
    %v237 = vld [vmem:[#allocation2 + $0x4d0] sm:$0xff]
    %v238 = vld [vmem:[#allocation2 + $0x4d8] sm:$0xff]
    %v239 = vld [vmem:[#allocation2 + $0x4e0] sm:$0xff]
    %v240 = vld [vmem:[#allocation2 + $0x4e8] sm:$0xff]
    %v241 = vld [vmem:[#allocation2 + $0x4f0] sm:$0xff]
    %v242 = vld [vmem:[#allocation2 + $0x4f8] sm:$0xff]
    %v243 = vld [vmem:[#allocation2 + $0x500] sm:$0xff]
    %v244 = vld [vmem:[#allocation2 + $0x508] sm:$0xff]
    %v245 = vld [vmem:[#allocation2 + $0x510] sm:$0xff]
    %v246 = vld [vmem:[#allocation2 + $0x518] sm:$0xff]
    %v247 = vld [vmem:[#allocation2 + $0x520] sm:$0xff]
    %v248 = vld [vmem:[#allocation2 + $0x528] sm:$0xff]
    %v249 = vld [vmem:[#allocation2 + $0x530] sm:$0xff]
    %v250 = vld [vmem:[#allocation2 + $0x538] sm:$0xff]
    %v251 = vld [vmem:[#allocation2 + $0x540] sm:$0xff]
    %v252 = vld [vmem:[#allocation2 + $0x548] sm:$0xff]
    %v253 = vld [vmem:[#allocation2 + $0x550] sm:$0xff]
    %v254 = vld [vmem:[#allocation2 + $0x558] sm:$0xff]
    %v255 = vld [vmem:[#allocation2 + $0x560] sm:$0xff]
    %v256 = vld [vmem:[#allocation2 + $0x568] sm:$0xff]
    %v257 = vld [vmem:[#allocation2 + $0x570] sm:$0xff]
    %v258 = vld [vmem:[#allocation2 + $0x578] sm:$0xff]
    %v259 = vld [vmem:[#allocation2 + $0x580] sm:$0xff]
    %v260 = vld [vmem:[#allocation2 + $0x588] sm:$0xff]
    %v261 = vld [vmem:[#allocation2 + $0x590] sm:$0xff]
    %v262 = vld [vmem:[#allocation2 + $0x598] sm:$0xff]
    %v263 = vld [vmem:[#allocation2 + $0x5a0] sm:$0xff]
    %v264 = vld [vmem:[#allocation2 + $0x5a8] sm:$0xff]
    %v265 = vld [vmem:[#allocation2 + $0x5b0] sm:$0xff]
    %v266 = vld [vmem:[#allocation2 + $0x5b8] sm:$0xff]
    %v267 = vld [vmem:[#allocation2 + $0x5c0] sm:$0xff]
    %v268 = vld [vmem:[#allocation2 + $0x5c8] sm:$0xff]
    %v269 = vld [vmem:[#allocation2 + $0x5d0] sm:$0xff]
    %v270 = vld [vmem:[#allocation2 + $0x5d8] sm:$0xff]
    %v271 = vld [vmem:[#allocation2 + $0x5e0] sm:$0xff]
    %v272 = vld [vmem:[#allocation2 + $0x5e8] sm:$0xff]
    %v273 = vld [vmem:[#allocation2 + $0x5f0] sm:$0xff]
    %v274 = vld [vmem:[#allocation2 + $0x5f8] sm:$0xff]
    %v275 = vld [vmem:[#allocation2 + $0x600] sm:$0xff]
    %v276 = vld [vmem:[#allocation2 + $0x608] sm:$0xff]
    %v277 = vld [vmem:[#allocation2 + $0x610] sm:$0xff]
    %v278 = vld [vmem:[#allocation2 + $0x618] sm:$0xff]
    %v279 = vld [vmem:[#allocation2 + $0x620] sm:$0xff]
    %v280 = vld [vmem:[#allocation2 + $0x628] sm:$0xff]
    %v281 = vld [vmem:[#allocation2 + $0x630] sm:$0xff]
    %v282 = vld [vmem:[#allocation2 + $0x638] sm:$0xff]
    %v283 = vld [vmem:[#allocation2 + $0x640] sm:$0xff]
    %v284 = vld [vmem:[#allocation2 + $0x648] sm:$0xff]
    %v285 = vld [vmem:[#allocation2 + $0x650] sm:$0xff]
    %v286 = vld [vmem:[#allocation2 + $0x658] sm:$0xff]
    %v287 = vld [vmem:[#allocation2 + $0x660] sm:$0xff]
    %v288 = vld [vmem:[#allocation2 + $0x668] sm:$0xff]
    %v289 = vld [vmem:[#allocation2 + $0x670] sm:$0xff]
    %v290 = vld [vmem:[#allocation2 + $0x678] sm:$0xff]
    %v291 = vld [vmem:[#allocation2 + $0x680] sm:$0xff]
    %v292 = vld [vmem:[#allocation2 + $0x688] sm:$0xff]
    %v293 = vld [vmem:[#allocation2 + $0x690] sm:$0xff]
    %v294 = vld [vmem:[#allocation2 + $0x698] sm:$0xff]
    %v295 = vld [vmem:[#allocation2 + $0x6a0] sm:$0xff]
    %v296 = vld [vmem:[#allocation2 + $0x6a8] sm:$0xff]
    %v297 = vld [vmem:[#allocation2 + $0x6b0] sm:$0xff]
    %v298 = vld [vmem:[#allocation2 + $0x6b8] sm:$0xff]
    %v299 = vld [vmem:[#allocation2 + $0x6c0] sm:$0xff]
    %v300 = vld [vmem:[#allocation2 + $0x6c8] sm:$0xff]
    %v301 = vld [vmem:[#allocation2 + $0x6d0] sm:$0xff]
    %v302 = vld [vmem:[#allocation2 + $0x6d8] sm:$0xff]
    %v303 = vld [vmem:[#allocation2 + $0x6e0] sm:$0xff]
    %v304 = vld [vmem:[#allocation2 + $0x6e8] sm:$0xff]
    %v305 = vld [vmem:[#allocation2 + $0x6f0] sm:$0xff]
    %v306 = vld [vmem:[#allocation2 + $0x6f8] sm:$0xff]
    %v307 = vld [vmem:[#allocation2 + $0x700] sm:$0xff]
    %v308 = vld [vmem:[#allocation2 + $0x708] sm:$0xff]
    %v309 = vld [vmem:[#allocation2 + $0x710] sm:$0xff]
    %v310 = vld [vmem:[#allocation2 + $0x718] sm:$0xff]
    %v311 = vld [vmem:[#allocation2 + $0x720] sm:$0xff]
    %v312 = vld [vmem:[#allocation2 + $0x728] sm:$0xff]
    %v313 = vld [vmem:[#allocation2 + $0x730] sm:$0xff]
    %v314 = vld [vmem:[#allocation2 + $0x738] sm:$0xff]
    %v315 = vld [vmem:[#allocation2 + $0x740] sm:$0xff]
    %v316 = vld [vmem:[#allocation2 + $0x748] sm:$0xff]
    %v317 = vld [vmem:[#allocation2 + $0x750] sm:$0xff]
    %v318 = vld [vmem:[#allocation2 + $0x758] sm:$0xff]
    %v319 = vld [vmem:[#allocation2 + $0x760] sm:$0xff]
    %v320 = vld [vmem:[#allocation2 + $0x768] sm:$0xff]
    %v321 = vld [vmem:[#allocation2 + $0x770] sm:$0xff]
    %v322 = vld [vmem:[#allocation2 + $0x778] sm:$0xff]
    %v323 = vld [vmem:[#allocation2 + $0x780] sm:$0xff]
    %v324 = vld [vmem:[#allocation2 + $0x788] sm:$0xff]
    %v325 = vld [vmem:[#allocation2 + $0x790] sm:$0xff]
    %v326 = vld [vmem:[#allocation2 + $0x798] sm:$0xff]
    %v327 = vld [vmem:[#allocation2 + $0x7a0] sm:$0xff]
    %v328 = vld [vmem:[#allocation2 + $0x7a8] sm:$0xff]
    %v329 = vld [vmem:[#allocation2 + $0x7b0] sm:$0xff]
    %v330 = vld [vmem:[#allocation2 + $0x7b8] sm:$0xff]
    %v331 = vld [vmem:[#allocation2 + $0x7c0] sm:$0xff]
    %v332 = vld [vmem:[#allocation2 + $0x7c8] sm:$0xff]
    %v333 = vld [vmem:[#allocation2 + $0x7d0] sm:$0xff]
    %v334 = vld [vmem:[#allocation2 + $0x7d8] sm:$0xff]
    %v335 = vld [vmem:[#allocation2 + $0x7e0] sm:$0xff]
    %v336 = vld [vmem:[#allocation2 + $0x7e8] sm:$0xff]
    %v337 = vld [vmem:[#allocation2 + $0x7f0] sm:$0xff]
    %v338 = vld [vmem:[#allocation2 + $0x7f8] sm:$0xff]
    %v339 = vpack.c.bf16 %v91, %v83
    %v340 = vpack.c.bf16 %v92, %v84
    %v341 = vpack.c.bf16 %v93, %v85
    %v342 = vpack.c.bf16 %v94, %v86
    %v343 = vpack.c.bf16 %v95, %v87
    %v344 = vpack.c.bf16 %v96, %v88
    %v345 = vpack.c.bf16 %v97, %v89
    %v346 = vpack.c.bf16 %v98, %v90
    %v347 = vpack.c.bf16 %v107, %v99
    %v348 = vpack.c.bf16 %v108, %v100
    %v349 = vpack.c.bf16 %v109, %v101
    %v350 = vpack.c.bf16 %v110, %v102
    %v351 = vpack.c.bf16 %v111, %v103
    %v352 = vpack.c.bf16 %v112, %v104
    %v353 = vpack.c.bf16 %v113, %v105
    %v354 = vpack.c.bf16 %v114, %v106
    %v355 = vpack.c.bf16 %v123, %v115
    %v356 = vpack.c.bf16 %v124, %v116
    %v357 = vpack.c.bf16 %v125, %v117
    %v358 = vpack.c.bf16 %v126, %v118
    %v359 = vpack.c.bf16 %v127, %v119
    %v360 = vpack.c.bf16 %v128, %v120
    %v361 = vpack.c.bf16 %v129, %v121
    %v362 = vpack.c.bf16 %v130, %v122
    %v363 = vpack.c.bf16 %v139, %v131
    %v364 = vpack.c.bf16 %v140, %v132
    %v365 = vpack.c.bf16 %v141, %v133
    %v366 = vpack.c.bf16 %v142, %v134
    %v367 = vpack.c.bf16 %v143, %v135
    %v368 = vpack.c.bf16 %v144, %v136
    %v369 = vpack.c.bf16 %v145, %v137
    %v370 = vpack.c.bf16 %v146, %v138
    %v371 = vpack.c.bf16 %v155, %v147
    %v372 = vpack.c.bf16 %v156, %v148
    %v373 = vpack.c.bf16 %v157, %v149
    %v374 = vpack.c.bf16 %v158, %v150
    %v375 = vpack.c.bf16 %v159, %v151
    %v376 = vpack.c.bf16 %v160, %v152
    %v377 = vpack.c.bf16 %v161, %v153
    %v378 = vpack.c.bf16 %v162, %v154
    %v379 = vpack.c.bf16 %v171, %v163
    %v380 = vpack.c.bf16 %v172, %v164
    %v381 = vpack.c.bf16 %v173, %v165
    %v382 = vpack.c.bf16 %v174, %v166
    %v383 = vpack.c.bf16 %v175, %v167
    %v384 = vpack.c.bf16 %v176, %v168
    %v385 = vpack.c.bf16 %v177, %v169
    %v386 = vpack.c.bf16 %v178, %v170
    %v387 = vpack.c.bf16 %v187, %v179
    %v388 = vpack.c.bf16 %v188, %v180
    %v389 = vpack.c.bf16 %v189, %v181
    %v390 = vpack.c.bf16 %v190, %v182
    %v391 = vpack.c.bf16 %v191, %v183
    %v392 = vpack.c.bf16 %v192, %v184
    %v393 = vpack.c.bf16 %v193, %v185
    %v394 = vpack.c.bf16 %v194, %v186
    %v395 = vpack.c.bf16 %v203, %v195
    %v396 = vpack.c.bf16 %v204, %v196
    %v397 = vpack.c.bf16 %v205, %v197
    %v398 = vpack.c.bf16 %v206, %v198
    %v399 = vpack.c.bf16 %v207, %v199
    %v400 = vpack.c.bf16 %v208, %v200
    %v401 = vpack.c.bf16 %v209, %v201
    %v402 = vpack.c.bf16 %v210, %v202
    %v403 = vpack.c.bf16 %v219, %v211
    %v404 = vpack.c.bf16 %v220, %v212
    %v405 = vpack.c.bf16 %v221, %v213
    %v406 = vpack.c.bf16 %v222, %v214
    %v407 = vpack.c.bf16 %v223, %v215
    %v408 = vpack.c.bf16 %v224, %v216
    %v409 = vpack.c.bf16 %v225, %v217
    %v410 = vpack.c.bf16 %v226, %v218
    %v411 = vpack.c.bf16 %v235, %v227
    %v412 = vpack.c.bf16 %v236, %v228
    %v413 = vpack.c.bf16 %v237, %v229
    %v414 = vpack.c.bf16 %v238, %v230
    %v415 = vpack.c.bf16 %v239, %v231
    %v416 = vpack.c.bf16 %v240, %v232
    %v417 = vpack.c.bf16 %v241, %v233
    %v418 = vpack.c.bf16 %v242, %v234
    %v419 = vpack.c.bf16 %v251, %v243
    %v420 = vpack.c.bf16 %v252, %v244
    %v421 = vpack.c.bf16 %v253, %v245
    %v422 = vpack.c.bf16 %v254, %v246
    %v423 = vpack.c.bf16 %v255, %v247
    %v424 = vpack.c.bf16 %v256, %v248
    %v425 = vpack.c.bf16 %v257, %v249
    %v426 = vpack.c.bf16 %v258, %v250
    %v427 = vpack.c.bf16 %v267, %v259
    %v428 = vpack.c.bf16 %v268, %v260
    %v429 = vpack.c.bf16 %v269, %v261
    %v430 = vpack.c.bf16 %v270, %v262
    %v431 = vpack.c.bf16 %v271, %v263
    %v432 = vpack.c.bf16 %v272, %v264
    %v433 = vpack.c.bf16 %v273, %v265
    %v434 = vpack.c.bf16 %v274, %v266
    %v435 = vpack.c.bf16 %v283, %v275
    %v436 = vpack.c.bf16 %v284, %v276
    %v437 = vpack.c.bf16 %v285, %v277
    %v438 = vpack.c.bf16 %v286, %v278
    %v439 = vpack.c.bf16 %v287, %v279
    %v440 = vpack.c.bf16 %v288, %v280
    %v441 = vpack.c.bf16 %v289, %v281
    %v442 = vpack.c.bf16 %v290, %v282
    %v443 = vpack.c.bf16 %v299, %v291
    %v444 = vpack.c.bf16 %v300, %v292
    %v445 = vpack.c.bf16 %v301, %v293
    %v446 = vpack.c.bf16 %v302, %v294
    %v447 = vpack.c.bf16 %v303, %v295
    %v448 = vpack.c.bf16 %v304, %v296
    %v449 = vpack.c.bf16 %v305, %v297
    %v450 = vpack.c.bf16 %v306, %v298
    %v451 = vpack.c.bf16 %v315, %v307
    %v452 = vpack.c.bf16 %v316, %v308
    %v453 = vpack.c.bf16 %v317, %v309
    %v454 = vpack.c.bf16 %v318, %v310
    %v455 = vpack.c.bf16 %v319, %v311
    %v456 = vpack.c.bf16 %v320, %v312
    %v457 = vpack.c.bf16 %v321, %v313
    %v458 = vpack.c.bf16 %v322, %v314
    %v459 = vpack.c.bf16 %v331, %v323
    %v460 = vpack.c.bf16 %v332, %v324
    %v461 = vpack.c.bf16 %v333, %v325
    %v462 = vpack.c.bf16 %v334, %v326
    %v463 = vpack.c.bf16 %v335, %v327
    %v464 = vpack.c.bf16 %v336, %v328
    %v465 = vpack.c.bf16 %v337, %v329
    %v466 = vpack.c.bf16 %v338, %v330
    %v467 = vld [vmem:[#allocation5] sm:$0xff]
    %v468 = vld [vmem:[#allocation5 + $0x8] sm:$0xff]
    %v469 = vld [vmem:[#allocation5 + $0x10] sm:$0xff]
    %v470 = vld [vmem:[#allocation5 + $0x18] sm:$0xff]
    %v471 = vld [vmem:[#allocation5 + $0x20] sm:$0xff]
    %v472 = vld [vmem:[#allocation5 + $0x28] sm:$0xff]
    %v473 = vld [vmem:[#allocation5 + $0x30] sm:$0xff]
    %v474 = vld [vmem:[#allocation5 + $0x38] sm:$0xff]
    %v475 = vld [vmem:[#allocation5 + $0x40] sm:$0xff]
    %v476 = vld [vmem:[#allocation5 + $0x48] sm:$0xff]
    %v477 = vld [vmem:[#allocation5 + $0x50] sm:$0xff]
    %v478 = vld [vmem:[#allocation5 + $0x58] sm:$0xff]
    %v479 = vld [vmem:[#allocation5 + $0x60] sm:$0xff]
    %v480 = vld [vmem:[#allocation5 + $0x68] sm:$0xff]
    %v481 = vld [vmem:[#allocation5 + $0x70] sm:$0xff]
    %v482 = vld [vmem:[#allocation5 + $0x78] sm:$0xff]
    %v483 = vld [vmem:[#allocation5 + $0x80] sm:$0xff]
    %v484 = vld [vmem:[#allocation5 + $0x88] sm:$0xff]
    %v485 = vld [vmem:[#allocation5 + $0x90] sm:$0xff]
    %v486 = vld [vmem:[#allocation5 + $0x98] sm:$0xff]
    %v487 = vld [vmem:[#allocation5 + $0xa0] sm:$0xff]
    %v488 = vld [vmem:[#allocation5 + $0xa8] sm:$0xff]
    %v489 = vld [vmem:[#allocation5 + $0xb0] sm:$0xff]
    %v490 = vld [vmem:[#allocation5 + $0xb8] sm:$0xff]
    %v491 = vld [vmem:[#allocation5 + $0xc0] sm:$0xff]
    %v492 = vld [vmem:[#allocation5 + $0xc8] sm:$0xff]
    %v493 = vld [vmem:[#allocation5 + $0xd0] sm:$0xff]
    %v494 = vld [vmem:[#allocation5 + $0xd8] sm:$0xff]
    %v495 = vld [vmem:[#allocation5 + $0xe0] sm:$0xff]
    %v496 = vld [vmem:[#allocation5 + $0xe8] sm:$0xff]
    %v497 = vld [vmem:[#allocation5 + $0xf0] sm:$0xff]
    %v498 = vld [vmem:[#allocation5 + $0xf8] sm:$0xff]
    %v499 = vld [vmem:[#allocation5 + $0x100] sm:$0xff]
    %v500 = vld [vmem:[#allocation5 + $0x108] sm:$0xff]
    %v501 = vld [vmem:[#allocation5 + $0x110] sm:$0xff]
    %v502 = vld [vmem:[#allocation5 + $0x118] sm:$0xff]
    %v503 = vld [vmem:[#allocation5 + $0x120] sm:$0xff]
    %v504 = vld [vmem:[#allocation5 + $0x128] sm:$0xff]
    %v505 = vld [vmem:[#allocation5 + $0x130] sm:$0xff]
    %v506 = vld [vmem:[#allocation5 + $0x138] sm:$0xff]
    %v507 = vld [vmem:[#allocation5 + $0x140] sm:$0xff]
    %v508 = vld [vmem:[#allocation5 + $0x148] sm:$0xff]
    %v509 = vld [vmem:[#allocation5 + $0x150] sm:$0xff]
    %v510 = vld [vmem:[#allocation5 + $0x158] sm:$0xff]
    %v511 = vld [vmem:[#allocation5 + $0x160] sm:$0xff]
    %v512 = vld [vmem:[#allocation5 + $0x168] sm:$0xff]
    %v513 = vld [vmem:[#allocation5 + $0x170] sm:$0xff]
    %v514 = vld [vmem:[#allocation5 + $0x178] sm:$0xff]
    %v515 = vld [vmem:[#allocation5 + $0x180] sm:$0xff]
    %v516 = vld [vmem:[#allocation5 + $0x188] sm:$0xff]
    %v517 = vld [vmem:[#allocation5 + $0x190] sm:$0xff]
    %v518 = vld [vmem:[#allocation5 + $0x198] sm:$0xff]
    %v519 = vld [vmem:[#allocation5 + $0x1a0] sm:$0xff]
    %v520 = vld [vmem:[#allocation5 + $0x1a8] sm:$0xff]
    %v521 = vld [vmem:[#allocation5 + $0x1b0] sm:$0xff]
    %v522 = vld [vmem:[#allocation5 + $0x1b8] sm:$0xff]
    %v523 = vld [vmem:[#allocation5 + $0x1c0] sm:$0xff]
    %v524 = vld [vmem:[#allocation5 + $0x1c8] sm:$0xff]
    %v525 = vld [vmem:[#allocation5 + $0x1d0] sm:$0xff]
    %v526 = vld [vmem:[#allocation5 + $0x1d8] sm:$0xff]
    %v527 = vld [vmem:[#allocation5 + $0x1e0] sm:$0xff]
    %v528 = vld [vmem:[#allocation5 + $0x1e8] sm:$0xff]
    %v529 = vld [vmem:[#allocation5 + $0x1f0] sm:$0xff]
    %v530 = vld [vmem:[#allocation5 + $0x1f8] sm:$0xff]
    %v531 = vld [vmem:[#allocation5 + $0x200] sm:$0xff]
    %v532 = vld [vmem:[#allocation5 + $0x208] sm:$0xff]
    %v533 = vld [vmem:[#allocation5 + $0x210] sm:$0xff]
    %v534 = vld [vmem:[#allocation5 + $0x218] sm:$0xff]
    %v535 = vld [vmem:[#allocation5 + $0x220] sm:$0xff]
    %v536 = vld [vmem:[#allocation5 + $0x228] sm:$0xff]
    %v537 = vld [vmem:[#allocation5 + $0x230] sm:$0xff]
    %v538 = vld [vmem:[#allocation5 + $0x238] sm:$0xff]
    %v539 = vld [vmem:[#allocation5 + $0x240] sm:$0xff]
    %v540 = vld [vmem:[#allocation5 + $0x248] sm:$0xff]
    %v541 = vld [vmem:[#allocation5 + $0x250] sm:$0xff]
    %v542 = vld [vmem:[#allocation5 + $0x258] sm:$0xff]
    %v543 = vld [vmem:[#allocation5 + $0x260] sm:$0xff]
    %v544 = vld [vmem:[#allocation5 + $0x268] sm:$0xff]
    %v545 = vld [vmem:[#allocation5 + $0x270] sm:$0xff]
    %v546 = vld [vmem:[#allocation5 + $0x278] sm:$0xff]
    %v547 = vld [vmem:[#allocation5 + $0x280] sm:$0xff]
    %v548 = vld [vmem:[#allocation5 + $0x288] sm:$0xff]
    %v549 = vld [vmem:[#allocation5 + $0x290] sm:$0xff]
    %v550 = vld [vmem:[#allocation5 + $0x298] sm:$0xff]
    %v551 = vld [vmem:[#allocation5 + $0x2a0] sm:$0xff]
    %v552 = vld [vmem:[#allocation5 + $0x2a8] sm:$0xff]
    %v553 = vld [vmem:[#allocation5 + $0x2b0] sm:$0xff]
    %v554 = vld [vmem:[#allocation5 + $0x2b8] sm:$0xff]
    %v555 = vld [vmem:[#allocation5 + $0x2c0] sm:$0xff]
    %v556 = vld [vmem:[#allocation5 + $0x2c8] sm:$0xff]
    %v557 = vld [vmem:[#allocation5 + $0x2d0] sm:$0xff]
    %v558 = vld [vmem:[#allocation5 + $0x2d8] sm:$0xff]
    %v559 = vld [vmem:[#allocation5 + $0x2e0] sm:$0xff]
    %v560 = vld [vmem:[#allocation5 + $0x2e8] sm:$0xff]
    %v561 = vld [vmem:[#allocation5 + $0x2f0] sm:$0xff]
    %v562 = vld [vmem:[#allocation5 + $0x2f8] sm:$0xff]
    %v563 = vld [vmem:[#allocation5 + $0x300] sm:$0xff]
    %v564 = vld [vmem:[#allocation5 + $0x308] sm:$0xff]
    %v565 = vld [vmem:[#allocation5 + $0x310] sm:$0xff]
    %v566 = vld [vmem:[#allocation5 + $0x318] sm:$0xff]
    %v567 = vld [vmem:[#allocation5 + $0x320] sm:$0xff]
    %v568 = vld [vmem:[#allocation5 + $0x328] sm:$0xff]
    %v569 = vld [vmem:[#allocation5 + $0x330] sm:$0xff]
    %v570 = vld [vmem:[#allocation5 + $0x338] sm:$0xff]
    %v571 = vld [vmem:[#allocation5 + $0x340] sm:$0xff]
    %v572 = vld [vmem:[#allocation5 + $0x348] sm:$0xff]
    %v573 = vld [vmem:[#allocation5 + $0x350] sm:$0xff]
    %v574 = vld [vmem:[#allocation5 + $0x358] sm:$0xff]
    %v575 = vld [vmem:[#allocation5 + $0x360] sm:$0xff]
    %v576 = vld [vmem:[#allocation5 + $0x368] sm:$0xff]
    %v577 = vld [vmem:[#allocation5 + $0x370] sm:$0xff]
    %v578 = vld [vmem:[#allocation5 + $0x378] sm:$0xff]
    %v579 = vld [vmem:[#allocation5 + $0x380] sm:$0xff]
    %v580 = vld [vmem:[#allocation5 + $0x388] sm:$0xff]
    %v581 = vld [vmem:[#allocation5 + $0x390] sm:$0xff]
    %v582 = vld [vmem:[#allocation5 + $0x398] sm:$0xff]
    %v583 = vld [vmem:[#allocation5 + $0x3a0] sm:$0xff]
    %v584 = vld [vmem:[#allocation5 + $0x3a8] sm:$0xff]
    %v585 = vld [vmem:[#allocation5 + $0x3b0] sm:$0xff]
    %v586 = vld [vmem:[#allocation5 + $0x3b8] sm:$0xff]
    %v587 = vld [vmem:[#allocation5 + $0x3c0] sm:$0xff]
    %v588 = vld [vmem:[#allocation5 + $0x3c8] sm:$0xff]
    %v589 = vld [vmem:[#allocation5 + $0x3d0] sm:$0xff]
    %v590 = vld [vmem:[#allocation5 + $0x3d8] sm:$0xff]
    %v591 = vld [vmem:[#allocation5 + $0x3e0] sm:$0xff]
    %v592 = vld [vmem:[#allocation5 + $0x3e8] sm:$0xff]
    %v593 = vld [vmem:[#allocation5 + $0x3f0] sm:$0xff]
    %v594 = vld [vmem:[#allocation5 + $0x3f8] sm:$0xff]
    %v595 = vld [vmem:[%s2] sm:$0x3]
    %v597 = vlaneseq
    %v598 = vshrl.u32 %v597, 7
    %v599 = vsub.s32 0, %v598
    %v600 = vrot.slane %v595, %v599
    %v601 = vlaneseq
    %v602 = vshrl.u32 %v601, 7
    %v603 = vsub.s32 1, %v602
    %v604 = vrot.slane %v595, %v603
    %v735 = vunpack.c.l.b16 %v467
    %v736 = vunpack.c.h.b16 %v467
    %v737 = vunpack.c.l.b16 %v468
    %v738 = vunpack.c.h.b16 %v468
    %v739 = vunpack.c.l.b16 %v469
    %v740 = vunpack.c.h.b16 %v469
    %v741 = vunpack.c.l.b16 %v470
    %v742 = vunpack.c.h.b16 %v470
    %v743 = vunpack.c.l.b16 %v471
    %v744 = vunpack.c.h.b16 %v471
    %v745 = vunpack.c.l.b16 %v472
    %v746 = vunpack.c.h.b16 %v472
    %v747 = vunpack.c.l.b16 %v473
    %v748 = vunpack.c.h.b16 %v473
    %v749 = vunpack.c.l.b16 %v474
    %v750 = vunpack.c.h.b16 %v474
    %v751 = vunpack.c.l.b16 %v475
    %v752 = vunpack.c.h.b16 %v475
    %v753 = vunpack.c.l.b16 %v476
    %v754 = vunpack.c.h.b16 %v476
    %v755 = vunpack.c.l.b16 %v477
    %v756 = vunpack.c.h.b16 %v477
    %v757 = vunpack.c.l.b16 %v478
    %v758 = vunpack.c.h.b16 %v478
    %v759 = vunpack.c.l.b16 %v479
    %v760 = vunpack.c.h.b16 %v479
    %v761 = vunpack.c.l.b16 %v480
    %v762 = vunpack.c.h.b16 %v480
    %v763 = vunpack.c.l.b16 %v481
    %v764 = vunpack.c.h.b16 %v481
    %v765 = vunpack.c.l.b16 %v482
    %v766 = vunpack.c.h.b16 %v482
    %v767 = vunpack.c.l.b16 %v483
    %v768 = vunpack.c.h.b16 %v483
    %v769 = vunpack.c.l.b16 %v484
    %v770 = vunpack.c.h.b16 %v484
    %v771 = vunpack.c.l.b16 %v485
    %v772 = vunpack.c.h.b16 %v485
    %v773 = vunpack.c.l.b16 %v486
    %v774 = vunpack.c.h.b16 %v486
    %v775 = vunpack.c.l.b16 %v487
    %v776 = vunpack.c.h.b16 %v487
    %v777 = vunpack.c.l.b16 %v488
    %v778 = vunpack.c.h.b16 %v488
    %v779 = vunpack.c.l.b16 %v489
    %v780 = vunpack.c.h.b16 %v489
    %v781 = vunpack.c.l.b16 %v490
    %v782 = vunpack.c.h.b16 %v490
    %v783 = vunpack.c.l.b16 %v491
    %v784 = vunpack.c.h.b16 %v491
    %v785 = vunpack.c.l.b16 %v492
    %v786 = vunpack.c.h.b16 %v492
    %v787 = vunpack.c.l.b16 %v493
    %v788 = vunpack.c.h.b16 %v493
    %v789 = vunpack.c.l.b16 %v494
    %v790 = vunpack.c.h.b16 %v494
    %v791 = vunpack.c.l.b16 %v495
    %v792 = vunpack.c.h.b16 %v495
    %v793 = vunpack.c.l.b16 %v496
    %v794 = vunpack.c.h.b16 %v496
    %v795 = vunpack.c.l.b16 %v497
    %v796 = vunpack.c.h.b16 %v497
    %v797 = vunpack.c.l.b16 %v498
    %v798 = vunpack.c.h.b16 %v498
    %v799 = vunpack.c.l.b16 %v499
    %v800 = vunpack.c.h.b16 %v499
    %v801 = vunpack.c.l.b16 %v500
    %v802 = vunpack.c.h.b16 %v500
    %v803 = vunpack.c.l.b16 %v501
    %v804 = vunpack.c.h.b16 %v501
    %v805 = vunpack.c.l.b16 %v502
    %v806 = vunpack.c.h.b16 %v502
    %v807 = vunpack.c.l.b16 %v503
    %v808 = vunpack.c.h.b16 %v503
    %v809 = vunpack.c.l.b16 %v504
    %v810 = vunpack.c.h.b16 %v504
    %v811 = vunpack.c.l.b16 %v505
    %v812 = vunpack.c.h.b16 %v505
    %v813 = vunpack.c.l.b16 %v506
    %v814 = vunpack.c.h.b16 %v506
    %v815 = vunpack.c.l.b16 %v507
    %v816 = vunpack.c.h.b16 %v507
    %v817 = vunpack.c.l.b16 %v508
    %v818 = vunpack.c.h.b16 %v508
    %v819 = vunpack.c.l.b16 %v509
    %v820 = vunpack.c.h.b16 %v509
    %v821 = vunpack.c.l.b16 %v510
    %v822 = vunpack.c.h.b16 %v510
    %v823 = vunpack.c.l.b16 %v511
    %v824 = vunpack.c.h.b16 %v511
    %v825 = vunpack.c.l.b16 %v512
    %v826 = vunpack.c.h.b16 %v512
    %v827 = vunpack.c.l.b16 %v513
    %v828 = vunpack.c.h.b16 %v513
    %v829 = vunpack.c.l.b16 %v514
    %v830 = vunpack.c.h.b16 %v514
    %v831 = vunpack.c.l.b16 %v515
    %v832 = vunpack.c.h.b16 %v515
    %v833 = vunpack.c.l.b16 %v516
    %v834 = vunpack.c.h.b16 %v516
    %v835 = vunpack.c.l.b16 %v517
    %v836 = vunpack.c.h.b16 %v517
    %v837 = vunpack.c.l.b16 %v518
    %v838 = vunpack.c.h.b16 %v518
    %v839 = vunpack.c.l.b16 %v519
    %v840 = vunpack.c.h.b16 %v519
    %v841 = vunpack.c.l.b16 %v520
    %v842 = vunpack.c.h.b16 %v520
    %v843 = vunpack.c.l.b16 %v521
    %v844 = vunpack.c.h.b16 %v521
    %v845 = vunpack.c.l.b16 %v522
    %v846 = vunpack.c.h.b16 %v522
    %v847 = vunpack.c.l.b16 %v523
    %v848 = vunpack.c.h.b16 %v523
    %v849 = vunpack.c.l.b16 %v524
    %v850 = vunpack.c.h.b16 %v524
    %v851 = vunpack.c.l.b16 %v525
    %v852 = vunpack.c.h.b16 %v525
    %v853 = vunpack.c.l.b16 %v526
    %v854 = vunpack.c.h.b16 %v526
    %v855 = vunpack.c.l.b16 %v527
    %v856 = vunpack.c.h.b16 %v527
    %v857 = vunpack.c.l.b16 %v528
    %v858 = vunpack.c.h.b16 %v528
    %v859 = vunpack.c.l.b16 %v529
    %v860 = vunpack.c.h.b16 %v529
    %v861 = vunpack.c.l.b16 %v530
    %v862 = vunpack.c.h.b16 %v530
    %v863 = vunpack.c.l.b16 %v531
    %v864 = vunpack.c.h.b16 %v531
    %v865 = vunpack.c.l.b16 %v532
    %v866 = vunpack.c.h.b16 %v532
    %v867 = vunpack.c.l.b16 %v533
    %v868 = vunpack.c.h.b16 %v533
    %v869 = vunpack.c.l.b16 %v534
    %v870 = vunpack.c.h.b16 %v534
    %v871 = vunpack.c.l.b16 %v535
    %v872 = vunpack.c.h.b16 %v535
    %v873 = vunpack.c.l.b16 %v536
    %v874 = vunpack.c.h.b16 %v536
    %v875 = vunpack.c.l.b16 %v537
    %v876 = vunpack.c.h.b16 %v537
    %v877 = vunpack.c.l.b16 %v538
    %v878 = vunpack.c.h.b16 %v538
    %v879 = vunpack.c.l.b16 %v539
    %v880 = vunpack.c.h.b16 %v539
    %v881 = vunpack.c.l.b16 %v540
    %v882 = vunpack.c.h.b16 %v540
    %v883 = vunpack.c.l.b16 %v541
    %v884 = vunpack.c.h.b16 %v541
    %v885 = vunpack.c.l.b16 %v542
    %v886 = vunpack.c.h.b16 %v542
    %v887 = vunpack.c.l.b16 %v543
    %v888 = vunpack.c.h.b16 %v543
    %v889 = vunpack.c.l.b16 %v544
    %v890 = vunpack.c.h.b16 %v544
    %v891 = vunpack.c.l.b16 %v545
    %v892 = vunpack.c.h.b16 %v545
    %v893 = vunpack.c.l.b16 %v546
    %v894 = vunpack.c.h.b16 %v546
    %v895 = vunpack.c.l.b16 %v547
    %v896 = vunpack.c.h.b16 %v547
    %v897 = vunpack.c.l.b16 %v548
    %v898 = vunpack.c.h.b16 %v548
    %v899 = vunpack.c.l.b16 %v549
    %v900 = vunpack.c.h.b16 %v549
    %v901 = vunpack.c.l.b16 %v550
    %v902 = vunpack.c.h.b16 %v550
    %v903 = vunpack.c.l.b16 %v551
    %v904 = vunpack.c.h.b16 %v551
    %v905 = vunpack.c.l.b16 %v552
    %v906 = vunpack.c.h.b16 %v552
    %v907 = vunpack.c.l.b16 %v553
    %v908 = vunpack.c.h.b16 %v553
    %v909 = vunpack.c.l.b16 %v554
    %v910 = vunpack.c.h.b16 %v554
    %v911 = vunpack.c.l.b16 %v555
    %v912 = vunpack.c.h.b16 %v555
    %v913 = vunpack.c.l.b16 %v556
    %v914 = vunpack.c.h.b16 %v556
    %v915 = vunpack.c.l.b16 %v557
    %v916 = vunpack.c.h.b16 %v557
    %v917 = vunpack.c.l.b16 %v558
    %v918 = vunpack.c.h.b16 %v558
    %v919 = vunpack.c.l.b16 %v559
    %v920 = vunpack.c.h.b16 %v559
    %v921 = vunpack.c.l.b16 %v560
    %v922 = vunpack.c.h.b16 %v560
    %v923 = vunpack.c.l.b16 %v561
    %v924 = vunpack.c.h.b16 %v561
    %v925 = vunpack.c.l.b16 %v562
    %v926 = vunpack.c.h.b16 %v562
    %v927 = vunpack.c.l.b16 %v563
    %v928 = vunpack.c.h.b16 %v563
    %v929 = vunpack.c.l.b16 %v564
    %v930 = vunpack.c.h.b16 %v564
    %v931 = vunpack.c.l.b16 %v565
    %v932 = vunpack.c.h.b16 %v565
    %v933 = vunpack.c.l.b16 %v566
    %v934 = vunpack.c.h.b16 %v566
    %v935 = vunpack.c.l.b16 %v567
    %v936 = vunpack.c.h.b16 %v567
    %v937 = vunpack.c.l.b16 %v568
    %v938 = vunpack.c.h.b16 %v568
    %v939 = vunpack.c.l.b16 %v569
    %v940 = vunpack.c.h.b16 %v569
    %v941 = vunpack.c.l.b16 %v570
    %v942 = vunpack.c.h.b16 %v570
    %v943 = vunpack.c.l.b16 %v571
    %v944 = vunpack.c.h.b16 %v571
    %v945 = vunpack.c.l.b16 %v572
    %v946 = vunpack.c.h.b16 %v572
    %v947 = vunpack.c.l.b16 %v573
    %v948 = vunpack.c.h.b16 %v573
    %v949 = vunpack.c.l.b16 %v574
    %v950 = vunpack.c.h.b16 %v574
    %v951 = vunpack.c.l.b16 %v575
    %v952 = vunpack.c.h.b16 %v575
    %v953 = vunpack.c.l.b16 %v576
    %v954 = vunpack.c.h.b16 %v576
    %v955 = vunpack.c.l.b16 %v577
    %v956 = vunpack.c.h.b16 %v577
    %v957 = vunpack.c.l.b16 %v578
    %v958 = vunpack.c.h.b16 %v578
    %v959 = vunpack.c.l.b16 %v579
    %v960 = vunpack.c.h.b16 %v579
    %v961 = vunpack.c.l.b16 %v580
    %v962 = vunpack.c.h.b16 %v580
    %v963 = vunpack.c.l.b16 %v581
    %v964 = vunpack.c.h.b16 %v581
    %v965 = vunpack.c.l.b16 %v582
    %v966 = vunpack.c.h.b16 %v582
    %v967 = vunpack.c.l.b16 %v583
    %v968 = vunpack.c.h.b16 %v583
    %v969 = vunpack.c.l.b16 %v584
    %v970 = vunpack.c.h.b16 %v584
    %v971 = vunpack.c.l.b16 %v585
    %v972 = vunpack.c.h.b16 %v585
    %v973 = vunpack.c.l.b16 %v586
    %v974 = vunpack.c.h.b16 %v586
    %v975 = vunpack.c.l.b16 %v587
    %v976 = vunpack.c.h.b16 %v587
    %v977 = vunpack.c.l.b16 %v588
    %v978 = vunpack.c.h.b16 %v588
    %v979 = vunpack.c.l.b16 %v589
    %v980 = vunpack.c.h.b16 %v589
    %v981 = vunpack.c.l.b16 %v590
    %v982 = vunpack.c.h.b16 %v590
    %v983 = vunpack.c.l.b16 %v591
    %v984 = vunpack.c.h.b16 %v591
    %v985 = vunpack.c.l.b16 %v592
    %v986 = vunpack.c.h.b16 %v592
    %v987 = vunpack.c.l.b16 %v593
    %v988 = vunpack.c.h.b16 %v593
    %v989 = vunpack.c.l.b16 %v594
    %v990 = vunpack.c.h.b16 %v594
    %v991 = vpack.c.b16 %v737, %v735
    %v992 = vpack.c.b16 %v738, %v736
    %v993 = vpack.c.b16 %v741, %v739
    %v994 = vpack.c.b16 %v742, %v740
    %v995 = vpack.c.b16 %v745, %v743
    %v996 = vpack.c.b16 %v746, %v744
    %v997 = vpack.c.b16 %v749, %v747
    %v998 = vpack.c.b16 %v750, %v748
    %v999 = vpack.c.b16 %v753, %v751
    %v1000 = vpack.c.b16 %v754, %v752
    %v1001 = vpack.c.b16 %v757, %v755
    %v1002 = vpack.c.b16 %v758, %v756
    %v1003 = vpack.c.b16 %v761, %v759
    %v1004 = vpack.c.b16 %v762, %v760
    %v1005 = vpack.c.b16 %v765, %v763
    %v1006 = vpack.c.b16 %v766, %v764
    %v1007 = vpack.c.b16 %v769, %v767
    %v1008 = vpack.c.b16 %v770, %v768
    %v1009 = vpack.c.b16 %v773, %v771
    %v1010 = vpack.c.b16 %v774, %v772
    %v1011 = vpack.c.b16 %v777, %v775
    %v1012 = vpack.c.b16 %v778, %v776
    %v1013 = vpack.c.b16 %v781, %v779
    %v1014 = vpack.c.b16 %v782, %v780
    %v1015 = vpack.c.b16 %v785, %v783
    %v1016 = vpack.c.b16 %v786, %v784
    %v1017 = vpack.c.b16 %v789, %v787
    %v1018 = vpack.c.b16 %v790, %v788
    %v1019 = vpack.c.b16 %v793, %v791
    %v1020 = vpack.c.b16 %v794, %v792
    %v1021 = vpack.c.b16 %v797, %v795
    %v1022 = vpack.c.b16 %v798, %v796
    %v1023 = vpack.c.b16 %v801, %v799
    %v1024 = vpack.c.b16 %v802, %v800
    %v1025 = vpack.c.b16 %v805, %v803
    %v1026 = vpack.c.b16 %v806, %v804
    %v1027 = vpack.c.b16 %v809, %v807
    %v1028 = vpack.c.b16 %v810, %v808
    %v1029 = vpack.c.b16 %v813, %v811
    %v1030 = vpack.c.b16 %v814, %v812
    %v1031 = vpack.c.b16 %v817, %v815
    %v1032 = vpack.c.b16 %v818, %v816
    %v1033 = vpack.c.b16 %v821, %v819
    %v1034 = vpack.c.b16 %v822, %v820
    %v1035 = vpack.c.b16 %v825, %v823
    %v1036 = vpack.c.b16 %v826, %v824
    %v1037 = vpack.c.b16 %v829, %v827
    %v1038 = vpack.c.b16 %v830, %v828
    %v1039 = vpack.c.b16 %v833, %v831
    %v1040 = vpack.c.b16 %v834, %v832
    %v1041 = vpack.c.b16 %v837, %v835
    %v1042 = vpack.c.b16 %v838, %v836
    %v1043 = vpack.c.b16 %v841, %v839
    %v1044 = vpack.c.b16 %v842, %v840
    %v1045 = vpack.c.b16 %v845, %v843
    %v1046 = vpack.c.b16 %v846, %v844
    %v1047 = vpack.c.b16 %v849, %v847
    %v1048 = vpack.c.b16 %v850, %v848
    %v1049 = vpack.c.b16 %v853, %v851
    %v1050 = vpack.c.b16 %v854, %v852
    %v1051 = vpack.c.b16 %v857, %v855
    %v1052 = vpack.c.b16 %v858, %v856
    %v1053 = vpack.c.b16 %v861, %v859
    %v1054 = vpack.c.b16 %v862, %v860
    %v1055 = vpack.c.b16 %v865, %v863
    %v1056 = vpack.c.b16 %v866, %v864
    %v1057 = vpack.c.b16 %v869, %v867
    %v1058 = vpack.c.b16 %v870, %v868
    %v1059 = vpack.c.b16 %v873, %v871
    %v1060 = vpack.c.b16 %v874, %v872
    %v1061 = vpack.c.b16 %v877, %v875
    %v1062 = vpack.c.b16 %v878, %v876
    %v1063 = vpack.c.b16 %v881, %v879
    %v1064 = vpack.c.b16 %v882, %v880
    %v1065 = vpack.c.b16 %v885, %v883
    %v1066 = vpack.c.b16 %v886, %v884
    %v1067 = vpack.c.b16 %v889, %v887
    %v1068 = vpack.c.b16 %v890, %v888
    %v1069 = vpack.c.b16 %v893, %v891
    %v1070 = vpack.c.b16 %v894, %v892
    %v1071 = vpack.c.b16 %v897, %v895
    %v1072 = vpack.c.b16 %v898, %v896
    %v1073 = vpack.c.b16 %v901, %v899
    %v1074 = vpack.c.b16 %v902, %v900
    %v1075 = vpack.c.b16 %v905, %v903
    %v1076 = vpack.c.b16 %v906, %v904
    %v1077 = vpack.c.b16 %v909, %v907
    %v1078 = vpack.c.b16 %v910, %v908
    %v1079 = vpack.c.b16 %v913, %v911
    %v1080 = vpack.c.b16 %v914, %v912
    %v1081 = vpack.c.b16 %v917, %v915
    %v1082 = vpack.c.b16 %v918, %v916
    %v1083 = vpack.c.b16 %v921, %v919
    %v1084 = vpack.c.b16 %v922, %v920
    %v1085 = vpack.c.b16 %v925, %v923
    %v1086 = vpack.c.b16 %v926, %v924
    %v1087 = vpack.c.b16 %v929, %v927
    %v1088 = vpack.c.b16 %v930, %v928
    %v1089 = vpack.c.b16 %v933, %v931
    %v1090 = vpack.c.b16 %v934, %v932
    %v1091 = vpack.c.b16 %v937, %v935
    %v1092 = vpack.c.b16 %v938, %v936
    %v1093 = vpack.c.b16 %v941, %v939
    %v1094 = vpack.c.b16 %v942, %v940
    %v1095 = vpack.c.b16 %v945, %v943
    %v1096 = vpack.c.b16 %v946, %v944
    %v1097 = vpack.c.b16 %v949, %v947
    %v1098 = vpack.c.b16 %v950, %v948
    %v1099 = vpack.c.b16 %v953, %v951
    %v1100 = vpack.c.b16 %v954, %v952
    %v1101 = vpack.c.b16 %v957, %v955
    %v1102 = vpack.c.b16 %v958, %v956
    %v1103 = vpack.c.b16 %v961, %v959
    %v1104 = vpack.c.b16 %v962, %v960
    %v1105 = vpack.c.b16 %v965, %v963
    %v1106 = vpack.c.b16 %v966, %v964
    %v1107 = vpack.c.b16 %v969, %v967
    %v1108 = vpack.c.b16 %v970, %v968
    %v1109 = vpack.c.b16 %v973, %v971
    %v1110 = vpack.c.b16 %v974, %v972
    %v1111 = vpack.c.b16 %v977, %v975
    %v1112 = vpack.c.b16 %v978, %v976
    %v1113 = vpack.c.b16 %v981, %v979
    %v1114 = vpack.c.b16 %v982, %v980
    %v1115 = vpack.c.b16 %v985, %v983
    %v1116 = vpack.c.b16 %v986, %v984
    %v1117 = vpack.c.b16 %v989, %v987
    %v1118 = vpack.c.b16 %v990, %v988
    %1247 = vmatprep.subr.bf16.mxu0 %v992
    %1248 = vmatpush1.bf16.msra.mxu0 %v991
    %1249 = vmatprep.subr.bf16.mxu0 %v994
    %1250 = vmatpush1.bf16.msra.mxu0 %v993
    %1251 = vmatprep.subr.bf16.mxu0 %v996
    %1252 = vmatpush1.bf16.msra.mxu0 %v995
    %1253 = vmatprep.subr.bf16.mxu0 %v998
    %1254 = vmatpush1.bf16.msra.mxu0 %v997
    %1255 = vmatprep.subr.bf16.mxu0 %v1000
    %1256 = vmatpush1.bf16.msra.mxu0 %v999
    %1257 = vmatprep.subr.bf16.mxu0 %v1002
    %1258 = vmatpush1.bf16.msra.mxu0 %v1001
    %1259 = vmatprep.subr.bf16.mxu0 %v1004
    %1260 = vmatpush1.bf16.msra.mxu0 %v1003
    %1261 = vmatprep.subr.bf16.mxu0 %v1006
    %1262 = vmatpush1.bf16.msra.mxu0 %v1005
    %1263 = vmatprep.subr.bf16.mxu0 %v1008
    %1264 = vmatpush1.bf16.msra.mxu0 %v1007
    %1265 = vmatprep.subr.bf16.mxu0 %v1010
    %1266 = vmatpush1.bf16.msra.mxu0 %v1009
    %1267 = vmatprep.subr.bf16.mxu0 %v1012
    %1268 = vmatpush1.bf16.msra.mxu0 %v1011
    %1269 = vmatprep.subr.bf16.mxu0 %v1014
    %1270 = vmatpush1.bf16.msra.mxu0 %v1013
    %1271 = vmatprep.subr.bf16.mxu0 %v1016
    %1272 = vmatpush1.bf16.msra.mxu0 %v1015
    %1273 = vmatprep.subr.bf16.mxu0 %v1018
    %1274 = vmatpush1.bf16.msra.mxu0 %v1017
    %1275 = vmatprep.subr.bf16.mxu0 %v1020
    %1276 = vmatpush1.bf16.msra.mxu0 %v1019
    %1277 = vmatprep.subr.bf16.mxu0 %v1022
    %1278 = vmatpush1.bf16.msra.mxu0 %v1021
    %1279 = vmatprep.mubr.bf16.mxu0 %v340
    %1280 = vmatmul.mubr.bf16.gmra.mrb[0].mxu0 %v339
    %v1281 = vpop.f32.mrb[0].mxu0
    %v1282 = vadd.f32 %v600, %v1281
    %v1283 = vpop.f32.mrb[0].mxu0
    %v1284 = vadd.f32 %v604, %v1283
    %v1285 = vpop.f32.mrb[0].mxu0
    %v1286 = vadd.f32 %v600, %v1285
    %v1287 = vpop.f32.mrb[0].mxu0
    %v1288 = vadd.f32 %v604, %v1287
    %1289 = vmatprep.mubr.bf16.mxu0 %v348
    %1290 = vmatmul.mubr.bf16.gmra.mrb[0].mxu0 %v347
    %v1291 = vpop.f32.mrb[0].mxu0
    %v1292 = vadd.f32 %v600, %v1291
    %v1293 = vpop.f32.mrb[0].mxu0
    %v1294 = vadd.f32 %v604, %v1293
    %v1295 = vpop.f32.mrb[0].mxu0
    %v1296 = vadd.f32 %v600, %v1295
    %v1297 = vpop.f32.mrb[0].mxu0
    %v1298 = vadd.f32 %v604, %v1297
    %1299 = vmatprep.mubr.bf16.mxu0 %v356
    %1300 = vmatmul.mubr.bf16.gmra.mrb[0].mxu0 %v355
    %v1301 = vpop.f32.mrb[0].mxu0
    %v1302 = vadd.f32 %v600, %v1301
    %v1303 = vpop.f32.mrb[0].mxu0
    %v1304 = vadd.f32 %v604, %v1303
    %v1305 = vpop.f32.mrb[0].mxu0
    %v1306 = vadd.f32 %v600, %v1305
    %v1307 = vpop.f32.mrb[0].mxu0
    %v1308 = vadd.f32 %v604, %v1307
    %1309 = vmatprep.mubr.bf16.mxu0 %v364
    %1310 = vmatmul.mubr.bf16.gmra.mrb[0].mxu0 %v363
    %v1311 = vpop.f32.mrb[0].mxu0
    %v1312 = vadd.f32 %v600, %v1311
    %v1313 = vpop.f32.mrb[0].mxu0
    %v1314 = vadd.f32 %v604, %v1313
    %v1315 = vpop.f32.mrb[0].mxu0
    %v1316 = vadd.f32 %v600, %v1315
    %v1317 = vpop.f32.mrb[0].mxu0
    %v1318 = vadd.f32 %v604, %v1317
    %1319 = vmatprep.mubr.bf16.mxu0 %v372
    %1320 = vmatmul.mubr.bf16.gmra.mrb[0].mxu0 %v371
    %v1321 = vpop.f32.mrb[0].mxu0
    %v1322 = vadd.f32 %v600, %v1321
    %v1323 = vpop.f32.mrb[0].mxu0
    %v1324 = vadd.f32 %v604, %v1323
    %v1325 = vpop.f32.mrb[0].mxu0
    %v1326 = vadd.f32 %v600, %v1325
    %v1327 = vpop.f32.mrb[0].mxu0
    %v1328 = vadd.f32 %v604, %v1327
    %1329 = vmatprep.mubr.bf16.mxu0 %v380
    %1330 = vmatmul.mubr.bf16.gmra.mrb[0].mxu0 %v379
    %v1331 = vpop.f32.mrb[0].mxu0
    %v1332 = vadd.f32 %v600, %v1331
    %v1333 = vpop.f32.mrb[0].mxu0
    %v1334 = vadd.f32 %v604, %v1333
    %v1335 = vpop.f32.mrb[0].mxu0
    %v1336 = vadd.f32 %v600, %v1335
    %v1337 = vpop.f32.mrb[0].mxu0
    %v1338 = vadd.f32 %v604, %v1337
    %1339 = vmatprep.mubr.bf16.mxu0 %v388
    %1340 = vmatmul.mubr.bf16.gmra.mrb[0].mxu0 %v387
    %v1341 = vpop.f32.mrb[0].mxu0
    %v1342 = vadd.f32 %v600, %v1341
    %v1343 = vpop.f32.mrb[0].mxu0
    %v1344 = vadd.f32 %v604, %v1343
    %v1345 = vpop.f32.mrb[0].mxu0
    %v1346 = vadd.f32 %v600, %v1345
    %v1347 = vpop.f32.mrb[0].mxu0
    %v1348 = vadd.f32 %v604, %v1347
    %1349 = vmatprep.mubr.bf16.mxu0 %v396
    %1350 = vmatmul.mubr.bf16.gmra.mrb[0].mxu0 %v395
    %v1351 = vpop.f32.mrb[0].mxu0
    %v1352 = vadd.f32 %v600, %v1351
    %v1353 = vpop.f32.mrb[0].mxu0
    %v1354 = vadd.f32 %v604, %v1353
    %v1355 = vpop.f32.mrb[0].mxu0
    %v1356 = vadd.f32 %v600, %v1355
    %v1357 = vpop.f32.mrb[0].mxu0
    %v1358 = vadd.f32 %v604, %v1357
    %1359 = vmatprep.mubr.bf16.mxu0 %v404
    %1360 = vmatmul.mubr.bf16.gmra.mrb[0].mxu0 %v403
    %v1361 = vpop.f32.mrb[0].mxu0
    %v1362 = vadd.f32 %v600, %v1361
    %v1363 = vpop.f32.mrb[0].mxu0
    %v1364 = vadd.f32 %v604, %v1363
    %v1365 = vpop.f32.mrb[0].mxu0
    %v1366 = vadd.f32 %v600, %v1365
    %v1367 = vpop.f32.mrb[0].mxu0
    %v1368 = vadd.f32 %v604, %v1367
    %1369 = vmatprep.mubr.bf16.mxu0 %v412
    %1370 = vmatmul.mubr.bf16.gmra.mrb[0].mxu0 %v411
    %v1371 = vpop.f32.mrb[0].mxu0
    %v1372 = vadd.f32 %v600, %v1371
    %v1373 = vpop.f32.mrb[0].mxu0
    %v1374 = vadd.f32 %v604, %v1373
    %v1375 = vpop.f32.mrb[0].mxu0
    %v1376 = vadd.f32 %v600, %v1375
    %v1377 = vpop.f32.mrb[0].mxu0
    %v1378 = vadd.f32 %v604, %v1377
    %1379 = vmatprep.mubr.bf16.mxu0 %v420
    %1380 = vmatmul.mubr.bf16.gmra.mrb[0].mxu0 %v419
    %v1381 = vpop.f32.mrb[0].mxu0
    %v1382 = vadd.f32 %v600, %v1381
    %v1383 = vpop.f32.mrb[0].mxu0
    %v1384 = vadd.f32 %v604, %v1383
    %v1385 = vpop.f32.mrb[0].mxu0
    %v1386 = vadd.f32 %v600, %v1385
    %v1387 = vpop.f32.mrb[0].mxu0
    %v1388 = vadd.f32 %v604, %v1387
    %1389 = vmatprep.mubr.bf16.mxu0 %v428
    %1390 = vmatmul.mubr.bf16.gmra.mrb[0].mxu0 %v427
    %v1391 = vpop.f32.mrb[0].mxu0
    %v1392 = vadd.f32 %v600, %v1391
    %v1393 = vpop.f32.mrb[0].mxu0
    %v1394 = vadd.f32 %v604, %v1393
    %v1395 = vpop.f32.mrb[0].mxu0
    %v1396 = vadd.f32 %v600, %v1395
    %v1397 = vpop.f32.mrb[0].mxu0
    %v1398 = vadd.f32 %v604, %v1397
    %1399 = vmatprep.mubr.bf16.mxu0 %v436
    %1400 = vmatmul.mubr.bf16.gmra.mrb[0].mxu0 %v435
    %v1401 = vpop.f32.mrb[0].mxu0
    %v1402 = vadd.f32 %v600, %v1401
    %v1403 = vpop.f32.mrb[0].mxu0
    %v1404 = vadd.f32 %v604, %v1403
    %v1405 = vpop.f32.mrb[0].mxu0
    %v1406 = vadd.f32 %v600, %v1405
    %v1407 = vpop.f32.mrb[0].mxu0
    %v1408 = vadd.f32 %v604, %v1407
    %1409 = vmatprep.mubr.bf16.mxu0 %v444
    %1410 = vmatmul.mubr.bf16.gmra.mrb[0].mxu0 %v443
    %v1411 = vpop.f32.mrb[0].mxu0
    %v1412 = vadd.f32 %v600, %v1411
    %v1413 = vpop.f32.mrb[0].mxu0
    %v1414 = vadd.f32 %v604, %v1413
    %v1415 = vpop.f32.mrb[0].mxu0
    %v1416 = vadd.f32 %v600, %v1415
    %v1417 = vpop.f32.mrb[0].mxu0
    %v1418 = vadd.f32 %v604, %v1417
    %1419 = vmatprep.mubr.bf16.mxu0 %v452
    %1420 = vmatmul.mubr.bf16.gmra.mrb[0].mxu0 %v451
    %v1421 = vpop.f32.mrb[0].mxu0
    %v1422 = vadd.f32 %v600, %v1421
    %v1423 = vpop.f32.mrb[0].mxu0
    %v1424 = vadd.f32 %v604, %v1423
    %v1425 = vpop.f32.mrb[0].mxu0
    %v1426 = vadd.f32 %v600, %v1425
    %v1427 = vpop.f32.mrb[0].mxu0
    %v1428 = vadd.f32 %v604, %v1427
    %1429 = vmatprep.mubr.bf16.mxu0 %v460
    %1430 = vmatmul.mubr.bf16.gmra.mrb[0].mxu0 %v459
    %v1431 = vpop.f32.mrb[0].mxu0
    %v1432 = vadd.f32 %v600, %v1431
    %v1433 = vpop.f32.mrb[0].mxu0
    %v1434 = vadd.f32 %v604, %v1433
    %v1435 = vpop.f32.mrb[0].mxu0
    %v1436 = vadd.f32 %v600, %v1435
    %v1437 = vpop.f32.mrb[0].mxu0
    %v1438 = vadd.f32 %v604, %v1437
    %1439 = vdwg.mxu0
    %1440 = vmatprep.subr.bf16.mxu0 %v1024
    %1441 = vmatpush1.bf16.msra.mxu0 %v1023
    %1442 = vmatprep.subr.bf16.mxu0 %v1026
    %1443 = vmatpush1.bf16.msra.mxu0 %v1025
    %1444 = vmatprep.subr.bf16.mxu0 %v1028
    %1445 = vmatpush1.bf16.msra.mxu0 %v1027
    %1446 = vmatprep.subr.bf16.mxu0 %v1030
    %1447 = vmatpush1.bf16.msra.mxu0 %v1029
    %1448 = vmatprep.subr.bf16.mxu0 %v1032
    %1449 = vmatpush1.bf16.msra.mxu0 %v1031
    %1450 = vmatprep.subr.bf16.mxu0 %v1034
    %1451 = vmatpush1.bf16.msra.mxu0 %v1033
    %1452 = vmatprep.subr.bf16.mxu0 %v1036
    %1453 = vmatpush1.bf16.msra.mxu0 %v1035
    %1454 = vmatprep.subr.bf16.mxu0 %v1038
    %1455 = vmatpush1.bf16.msra.mxu0 %v1037
    %1456 = vmatprep.subr.bf16.mxu0 %v1040
    %1457 = vmatpush1.bf16.msra.mxu0 %v1039
    %1458 = vmatprep.subr.bf16.mxu0 %v1042
    %1459 = vmatpush1.bf16.msra.mxu0 %v1041
    %1460 = vmatprep.subr.bf16.mxu0 %v1044
    %1461 = vmatpush1.bf16.msra.mxu0 %v1043
    %1462 = vmatprep.subr.bf16.mxu0 %v1046
    %1463 = vmatpush1.bf16.msra.mxu0 %v1045
    %1464 = vmatprep.subr.bf16.mxu0 %v1048
    %1465 = vmatpush1.bf16.msra.mxu0 %v1047
    %1466 = vmatprep.subr.bf16.mxu0 %v1050
    %1467 = vmatpush1.bf16.msra.mxu0 %v1049
    %1468 = vmatprep.subr.bf16.mxu0 %v1052
    %1469 = vmatpush1.bf16.msra.mxu0 %v1051
    %1470 = vmatprep.subr.bf16.mxu0 %v1054
    %1471 = vmatpush1.bf16.msra.mxu0 %v1053
    %1472 = vmatprep.mubr.bf16.mxu0 %v342
    %1473 = vmatmul.mubr.bf16.gmra.mrb[0].mxu0 %v341
    %v1474 = vpop.f32.mrb[0].mxu0
    %v1475 = vadd.f32 %v1282, %v1474
    %v1476 = vpop.f32.mrb[0].mxu0
    %v1477 = vadd.f32 %v1284, %v1476
    %v1478 = vpop.f32.mrb[0].mxu0
    %v1479 = vadd.f32 %v1286, %v1478
    %v1480 = vpop.f32.mrb[0].mxu0
    %v1481 = vadd.f32 %v1288, %v1480
    %1482 = vmatprep.mubr.bf16.mxu0 %v350
    %1483 = vmatmul.mubr.bf16.gmra.mrb[0].mxu0 %v349
    %v1484 = vpop.f32.mrb[0].mxu0
    %v1485 = vadd.f32 %v1292, %v1484
    %v1486 = vpop.f32.mrb[0].mxu0
    %v1487 = vadd.f32 %v1294, %v1486
    %v1488 = vpop.f32.mrb[0].mxu0
    %v1489 = vadd.f32 %v1296, %v1488
    %v1490 = vpop.f32.mrb[0].mxu0
    %v1491 = vadd.f32 %v1298, %v1490
    %1492 = vmatprep.mubr.bf16.mxu0 %v358
    %1493 = vmatmul.mubr.bf16.gmra.mrb[0].mxu0 %v357
    %v1494 = vpop.f32.mrb[0].mxu0
    %v1495 = vadd.f32 %v1302, %v1494
    %v1496 = vpop.f32.mrb[0].mxu0
    %v1497 = vadd.f32 %v1304, %v1496
    %v1498 = vpop.f32.mrb[0].mxu0
    %v1499 = vadd.f32 %v1306, %v1498
    %v1500 = vpop.f32.mrb[0].mxu0
    %v1501 = vadd.f32 %v1308, %v1500
    %1502 = vmatprep.mubr.bf16.mxu0 %v366
    %1503 = vmatmul.mubr.bf16.gmra.mrb[0].mxu0 %v365
    %v1504 = vpop.f32.mrb[0].mxu0
    %v1505 = vadd.f32 %v1312, %v1504
    %v1506 = vpop.f32.mrb[0].mxu0
    %v1507 = vadd.f32 %v1314, %v1506
    %v1508 = vpop.f32.mrb[0].mxu0
    %v1509 = vadd.f32 %v1316, %v1508
    %v1510 = vpop.f32.mrb[0].mxu0
    %v1511 = vadd.f32 %v1318, %v1510
    %1512 = vmatprep.mubr.bf16.mxu0 %v374
    %1513 = vmatmul.mubr.bf16.gmra.mrb[0].mxu0 %v373
    %v1514 = vpop.f32.mrb[0].mxu0
    %v1515 = vadd.f32 %v1322, %v1514
    %v1516 = vpop.f32.mrb[0].mxu0
    %v1517 = vadd.f32 %v1324, %v1516
    %v1518 = vpop.f32.mrb[0].mxu0
    %v1519 = vadd.f32 %v1326, %v1518
    %v1520 = vpop.f32.mrb[0].mxu0
    %v1521 = vadd.f32 %v1328, %v1520
    %1522 = vmatprep.mubr.bf16.mxu0 %v382
    %1523 = vmatmul.mubr.bf16.gmra.mrb[0].mxu0 %v381
    %v1524 = vpop.f32.mrb[0].mxu0
    %v1525 = vadd.f32 %v1332, %v1524
    %v1526 = vpop.f32.mrb[0].mxu0
    %v1527 = vadd.f32 %v1334, %v1526
    %v1528 = vpop.f32.mrb[0].mxu0
    %v1529 = vadd.f32 %v1336, %v1528
    %v1530 = vpop.f32.mrb[0].mxu0
    %v1531 = vadd.f32 %v1338, %v1530
    %1532 = vmatprep.mubr.bf16.mxu0 %v390
    %1533 = vmatmul.mubr.bf16.gmra.mrb[0].mxu0 %v389
    %v1534 = vpop.f32.mrb[0].mxu0
    %v1535 = vadd.f32 %v1342, %v1534
    %v1536 = vpop.f32.mrb[0].mxu0
    %v1537 = vadd.f32 %v1344, %v1536
    %v1538 = vpop.f32.mrb[0].mxu0
    %v1539 = vadd.f32 %v1346, %v1538
    %v1540 = vpop.f32.mrb[0].mxu0
    %v1541 = vadd.f32 %v1348, %v1540
    %1542 = vmatprep.mubr.bf16.mxu0 %v398
    %1543 = vmatmul.mubr.bf16.gmra.mrb[0].mxu0 %v397
    %v1544 = vpop.f32.mrb[0].mxu0
    %v1545 = vadd.f32 %v1352, %v1544
    %v1546 = vpop.f32.mrb[0].mxu0
    %v1547 = vadd.f32 %v1354, %v1546
    %v1548 = vpop.f32.mrb[0].mxu0
    %v1549 = vadd.f32 %v1356, %v1548
    %v1550 = vpop.f32.mrb[0].mxu0
    %v1551 = vadd.f32 %v1358, %v1550
    %1552 = vmatprep.mubr.bf16.mxu0 %v406
    %1553 = vmatmul.mubr.bf16.gmra.mrb[0].mxu0 %v405
    %v1554 = vpop.f32.mrb[0].mxu0
    %v1555 = vadd.f32 %v1362, %v1554
    %v1556 = vpop.f32.mrb[0].mxu0
    %v1557 = vadd.f32 %v1364, %v1556
    %v1558 = vpop.f32.mrb[0].mxu0
    %v1559 = vadd.f32 %v1366, %v1558
    %v1560 = vpop.f32.mrb[0].mxu0
    %v1561 = vadd.f32 %v1368, %v1560
    %1562 = vmatprep.mubr.bf16.mxu0 %v414
    %1563 = vmatmul.mubr.bf16.gmra.mrb[0].mxu0 %v413
    %v1564 = vpop.f32.mrb[0].mxu0
    %v1565 = vadd.f32 %v1372, %v1564
    %v1566 = vpop.f32.mrb[0].mxu0
    %v1567 = vadd.f32 %v1374, %v1566
    %v1568 = vpop.f32.mrb[0].mxu0
    %v1569 = vadd.f32 %v1376, %v1568
    %v1570 = vpop.f32.mrb[0].mxu0
    %v1571 = vadd.f32 %v1378, %v1570
    %1572 = vmatprep.mubr.bf16.mxu0 %v422
    %1573 = vmatmul.mubr.bf16.gmra.mrb[0].mxu0 %v421
    %v1574 = vpop.f32.mrb[0].mxu0
    %v1575 = vadd.f32 %v1382, %v1574
    %v1576 = vpop.f32.mrb[0].mxu0
    %v1577 = vadd.f32 %v1384, %v1576
    %v1578 = vpop.f32.mrb[0].mxu0
    %v1579 = vadd.f32 %v1386, %v1578
    %v1580 = vpop.f32.mrb[0].mxu0
    %v1581 = vadd.f32 %v1388, %v1580
    %1582 = vmatprep.mubr.bf16.mxu0 %v430
    %1583 = vmatmul.mubr.bf16.gmra.mrb[0].mxu0 %v429
    %v1584 = vpop.f32.mrb[0].mxu0
    %v1585 = vadd.f32 %v1392, %v1584
    %v1586 = vpop.f32.mrb[0].mxu0
    %v1587 = vadd.f32 %v1394, %v1586
    %v1588 = vpop.f32.mrb[0].mxu0
    %v1589 = vadd.f32 %v1396, %v1588
    %v1590 = vpop.f32.mrb[0].mxu0
    %v1591 = vadd.f32 %v1398, %v1590
    %1592 = vmatprep.mubr.bf16.mxu0 %v438
    %1593 = vmatmul.mubr.bf16.gmra.mrb[0].mxu0 %v437
    %v1594 = vpop.f32.mrb[0].mxu0
    %v1595 = vadd.f32 %v1402, %v1594
    %v1596 = vpop.f32.mrb[0].mxu0
    %v1597 = vadd.f32 %v1404, %v1596
    %v1598 = vpop.f32.mrb[0].mxu0
    %v1599 = vadd.f32 %v1406, %v1598
    %v1600 = vpop.f32.mrb[0].mxu0
    %v1601 = vadd.f32 %v1408, %v1600
    %1602 = vmatprep.mubr.bf16.mxu0 %v446
    %1603 = vmatmul.mubr.bf16.gmra.mrb[0].mxu0 %v445
    %v1604 = vpop.f32.mrb[0].mxu0
    %v1605 = vadd.f32 %v1412, %v1604
    %v1606 = vpop.f32.mrb[0].mxu0
    %v1607 = vadd.f32 %v1414, %v1606
    %v1608 = vpop.f32.mrb[0].mxu0
    %v1609 = vadd.f32 %v1416, %v1608
    %v1610 = vpop.f32.mrb[0].mxu0
    %v1611 = vadd.f32 %v1418, %v1610
    %1612 = vmatprep.mubr.bf16.mxu0 %v454
    %1613 = vmatmul.mubr.bf16.gmra.mrb[0].mxu0 %v453
    %v1614 = vpop.f32.mrb[0].mxu0
    %v1615 = vadd.f32 %v1422, %v1614
    %v1616 = vpop.f32.mrb[0].mxu0
    %v1617 = vadd.f32 %v1424, %v1616
    %v1618 = vpop.f32.mrb[0].mxu0
    %v1619 = vadd.f32 %v1426, %v1618
    %v1620 = vpop.f32.mrb[0].mxu0
    %v1621 = vadd.f32 %v1428, %v1620
    %1622 = vmatprep.mubr.bf16.mxu0 %v462
    %1623 = vmatmul.mubr.bf16.gmra.mrb[0].mxu0 %v461
    %v1624 = vpop.f32.mrb[0].mxu0
    %v1625 = vadd.f32 %v1432, %v1624
    %v1626 = vpop.f32.mrb[0].mxu0
    %v1627 = vadd.f32 %v1434, %v1626
    %v1628 = vpop.f32.mrb[0].mxu0
    %v1629 = vadd.f32 %v1436, %v1628
    %v1630 = vpop.f32.mrb[0].mxu0
    %v1631 = vadd.f32 %v1438, %v1630
    %1632 = vdwg.mxu0
    %1633 = vmatprep.subr.bf16.mxu0 %v1056
    %1634 = vmatpush1.bf16.msra.mxu0 %v1055
    %1635 = vmatprep.subr.bf16.mxu0 %v1058
    %1636 = vmatpush1.bf16.msra.mxu0 %v1057
    %1637 = vmatprep.subr.bf16.mxu0 %v1060
    %1638 = vmatpush1.bf16.msra.mxu0 %v1059
    %1639 = vmatprep.subr.bf16.mxu0 %v1062
    %1640 = vmatpush1.bf16.msra.mxu0 %v1061
    %1641 = vmatprep.subr.bf16.mxu0 %v1064
    %1642 = vmatpush1.bf16.msra.mxu0 %v1063
    %1643 = vmatprep.subr.bf16.mxu0 %v1066
    %1644 = vmatpush1.bf16.msra.mxu0 %v1065
    %1645 = vmatprep.subr.bf16.mxu0 %v1068
    %1646 = vmatpush1.bf16.msra.mxu0 %v1067
    %1647 = vmatprep.subr.bf16.mxu0 %v1070
    %1648 = vmatpush1.bf16.msra.mxu0 %v1069
    %1649 = vmatprep.subr.bf16.mxu0 %v1072
    %1650 = vmatpush1.bf16.msra.mxu0 %v1071
    %1651 = vmatprep.subr.bf16.mxu0 %v1074
    %1652 = vmatpush1.bf16.msra.mxu0 %v1073
    %1653 = vmatprep.subr.bf16.mxu0 %v1076
    %1654 = vmatpush1.bf16.msra.mxu0 %v1075
    %1655 = vmatprep.subr.bf16.mxu0 %v1078
    %1656 = vmatpush1.bf16.msra.mxu0 %v1077
    %1657 = vmatprep.subr.bf16.mxu0 %v1080
    %1658 = vmatpush1.bf16.msra.mxu0 %v1079
    %1659 = vmatprep.subr.bf16.mxu0 %v1082
    %1660 = vmatpush1.bf16.msra.mxu0 %v1081
    %1661 = vmatprep.subr.bf16.mxu0 %v1084
    %1662 = vmatpush1.bf16.msra.mxu0 %v1083
    %1663 = vmatprep.subr.bf16.mxu0 %v1086
    %1664 = vmatpush1.bf16.msra.mxu0 %v1085
    %1665 = vmatprep.mubr.bf16.mxu0 %v344
    %1666 = vmatmul.mubr.bf16.gmra.mrb[0].mxu0 %v343
    %v1667 = vpop.f32.mrb[0].mxu0
    %v1668 = vadd.f32 %v1475, %v1667
    %v1669 = vpop.f32.mrb[0].mxu0
    %v1670 = vadd.f32 %v1477, %v1669
    %v1671 = vpop.f32.mrb[0].mxu0
    %v1672 = vadd.f32 %v1479, %v1671
    %v1673 = vpop.f32.mrb[0].mxu0
    %v1674 = vadd.f32 %v1481, %v1673
    %1675 = vmatprep.mubr.bf16.mxu0 %v352
    %1676 = vmatmul.mubr.bf16.gmra.mrb[0].mxu0 %v351
    %v1677 = vpop.f32.mrb[0].mxu0
    %v1678 = vadd.f32 %v1485, %v1677
    %v1679 = vpop.f32.mrb[0].mxu0
    %v1680 = vadd.f32 %v1487, %v1679
    %v1681 = vpop.f32.mrb[0].mxu0
    %v1682 = vadd.f32 %v1489, %v1681
    %v1683 = vpop.f32.mrb[0].mxu0
    %v1684 = vadd.f32 %v1491, %v1683
    %1685 = vmatprep.mubr.bf16.mxu0 %v360
    %1686 = vmatmul.mubr.bf16.gmra.mrb[0].mxu0 %v359
    %v1687 = vpop.f32.mrb[0].mxu0
    %v1688 = vadd.f32 %v1495, %v1687
    %v1689 = vpop.f32.mrb[0].mxu0
    %v1690 = vadd.f32 %v1497, %v1689
    %v1691 = vpop.f32.mrb[0].mxu0
    %v1692 = vadd.f32 %v1499, %v1691
    %v1693 = vpop.f32.mrb[0].mxu0
    %v1694 = vadd.f32 %v1501, %v1693
    %1695 = vmatprep.mubr.bf16.mxu0 %v368
    %1696 = vmatmul.mubr.bf16.gmra.mrb[0].mxu0 %v367
    %v1697 = vpop.f32.mrb[0].mxu0
    %v1698 = vadd.f32 %v1505, %v1697
    %v1699 = vpop.f32.mrb[0].mxu0
    %v1700 = vadd.f32 %v1507, %v1699
    %v1701 = vpop.f32.mrb[0].mxu0
    %v1702 = vadd.f32 %v1509, %v1701
    %v1703 = vpop.f32.mrb[0].mxu0
    %v1704 = vadd.f32 %v1511, %v1703
    %1705 = vmatprep.mubr.bf16.mxu0 %v376
    %1706 = vmatmul.mubr.bf16.gmra.mrb[0].mxu0 %v375
    %v1707 = vpop.f32.mrb[0].mxu0
    %v1708 = vadd.f32 %v1515, %v1707
    %v1709 = vpop.f32.mrb[0].mxu0
    %v1710 = vadd.f32 %v1517, %v1709
    %v1711 = vpop.f32.mrb[0].mxu0
    %v1712 = vadd.f32 %v1519, %v1711
    %v1713 = vpop.f32.mrb[0].mxu0
    %v1714 = vadd.f32 %v1521, %v1713
    %1715 = vmatprep.mubr.bf16.mxu0 %v384
    %1716 = vmatmul.mubr.bf16.gmra.mrb[0].mxu0 %v383
    %v1717 = vpop.f32.mrb[0].mxu0
    %v1718 = vadd.f32 %v1525, %v1717
    %v1719 = vpop.f32.mrb[0].mxu0
    %v1720 = vadd.f32 %v1527, %v1719
    %v1721 = vpop.f32.mrb[0].mxu0
    %v1722 = vadd.f32 %v1529, %v1721
    %v1723 = vpop.f32.mrb[0].mxu0
    %v1724 = vadd.f32 %v1531, %v1723
    %1725 = vmatprep.mubr.bf16.mxu0 %v392
    %1726 = vmatmul.mubr.bf16.gmra.mrb[0].mxu0 %v391
    %v1727 = vpop.f32.mrb[0].mxu0
    %v1728 = vadd.f32 %v1535, %v1727
    %v1729 = vpop.f32.mrb[0].mxu0
    %v1730 = vadd.f32 %v1537, %v1729
    %v1731 = vpop.f32.mrb[0].mxu0
    %v1732 = vadd.f32 %v1539, %v1731
    %v1733 = vpop.f32.mrb[0].mxu0
    %v1734 = vadd.f32 %v1541, %v1733
    %1735 = vmatprep.mubr.bf16.mxu0 %v400
    %1736 = vmatmul.mubr.bf16.gmra.mrb[0].mxu0 %v399
    %v1737 = vpop.f32.mrb[0].mxu0
    %v1738 = vadd.f32 %v1545, %v1737
    %v1739 = vpop.f32.mrb[0].mxu0
    %v1740 = vadd.f32 %v1547, %v1739
    %v1741 = vpop.f32.mrb[0].mxu0
    %v1742 = vadd.f32 %v1549, %v1741
    %v1743 = vpop.f32.mrb[0].mxu0
    %v1744 = vadd.f32 %v1551, %v1743
    %1745 = vmatprep.mubr.bf16.mxu0 %v408
    %1746 = vmatmul.mubr.bf16.gmra.mrb[0].mxu0 %v407
    %v1747 = vpop.f32.mrb[0].mxu0
    %v1748 = vadd.f32 %v1555, %v1747
    %v1749 = vpop.f32.mrb[0].mxu0
    %v1750 = vadd.f32 %v1557, %v1749
    %v1751 = vpop.f32.mrb[0].mxu0
    %v1752 = vadd.f32 %v1559, %v1751
    %v1753 = vpop.f32.mrb[0].mxu0
    %v1754 = vadd.f32 %v1561, %v1753
    %1755 = vmatprep.mubr.bf16.mxu0 %v416
    %1756 = vmatmul.mubr.bf16.gmra.mrb[0].mxu0 %v415
    %v1757 = vpop.f32.mrb[0].mxu0
    %v1758 = vadd.f32 %v1565, %v1757
    %v1759 = vpop.f32.mrb[0].mxu0
    %v1760 = vadd.f32 %v1567, %v1759
    %v1761 = vpop.f32.mrb[0].mxu0
    %v1762 = vadd.f32 %v1569, %v1761
    %v1763 = vpop.f32.mrb[0].mxu0
    %v1764 = vadd.f32 %v1571, %v1763
    %1765 = vmatprep.mubr.bf16.mxu0 %v424
    %1766 = vmatmul.mubr.bf16.gmra.mrb[0].mxu0 %v423
    %v1767 = vpop.f32.mrb[0].mxu0
    %v1768 = vadd.f32 %v1575, %v1767
    %v1769 = vpop.f32.mrb[0].mxu0
    %v1770 = vadd.f32 %v1577, %v1769
    %v1771 = vpop.f32.mrb[0].mxu0
    %v1772 = vadd.f32 %v1579, %v1771
    %v1773 = vpop.f32.mrb[0].mxu0
    %v1774 = vadd.f32 %v1581, %v1773
    %1775 = vmatprep.mubr.bf16.mxu0 %v432
    %1776 = vmatmul.mubr.bf16.gmra.mrb[0].mxu0 %v431
    %v1777 = vpop.f32.mrb[0].mxu0
    %v1778 = vadd.f32 %v1585, %v1777
    %v1779 = vpop.f32.mrb[0].mxu0
    %v1780 = vadd.f32 %v1587, %v1779
    %v1781 = vpop.f32.mrb[0].mxu0
    %v1782 = vadd.f32 %v1589, %v1781
    %v1783 = vpop.f32.mrb[0].mxu0
    %v1784 = vadd.f32 %v1591, %v1783
    %1785 = vmatprep.mubr.bf16.mxu0 %v440
    %1786 = vmatmul.mubr.bf16.gmra.mrb[0].mxu0 %v439
    %v1787 = vpop.f32.mrb[0].mxu0
    %v1788 = vadd.f32 %v1595, %v1787
    %v1789 = vpop.f32.mrb[0].mxu0
    %v1790 = vadd.f32 %v1597, %v1789
    %v1791 = vpop.f32.mrb[0].mxu0
    %v1792 = vadd.f32 %v1599, %v1791
    %v1793 = vpop.f32.mrb[0].mxu0
    %v1794 = vadd.f32 %v1601, %v1793
    %1795 = vmatprep.mubr.bf16.mxu0 %v448
    %1796 = vmatmul.mubr.bf16.gmra.mrb[0].mxu0 %v447
    %v1797 = vpop.f32.mrb[0].mxu0
    %v1798 = vadd.f32 %v1605, %v1797
    %v1799 = vpop.f32.mrb[0].mxu0
    %v1800 = vadd.f32 %v1607, %v1799
    %v1801 = vpop.f32.mrb[0].mxu0
    %v1802 = vadd.f32 %v1609, %v1801
    %v1803 = vpop.f32.mrb[0].mxu0
    %v1804 = vadd.f32 %v1611, %v1803
    %1805 = vmatprep.mubr.bf16.mxu0 %v456
    %1806 = vmatmul.mubr.bf16.gmra.mrb[0].mxu0 %v455
    %v1807 = vpop.f32.mrb[0].mxu0
    %v1808 = vadd.f32 %v1615, %v1807
    %v1809 = vpop.f32.mrb[0].mxu0
    %v1810 = vadd.f32 %v1617, %v1809
    %v1811 = vpop.f32.mrb[0].mxu0
    %v1812 = vadd.f32 %v1619, %v1811
    %v1813 = vpop.f32.mrb[0].mxu0
    %v1814 = vadd.f32 %v1621, %v1813
    %1815 = vmatprep.mubr.bf16.mxu0 %v464
    %1816 = vmatmul.mubr.bf16.gmra.mrb[0].mxu0 %v463
    %v1817 = vpop.f32.mrb[0].mxu0
    %v1818 = vadd.f32 %v1625, %v1817
    %v1819 = vpop.f32.mrb[0].mxu0
    %v1820 = vadd.f32 %v1627, %v1819
    %v1821 = vpop.f32.mrb[0].mxu0
    %v1822 = vadd.f32 %v1629, %v1821
    %v1823 = vpop.f32.mrb[0].mxu0
    %v1824 = vadd.f32 %v1631, %v1823
    %1825 = vdwg.mxu0
    %1826 = vmatprep.subr.bf16.mxu0 %v1088
    %1827 = vmatpush1.bf16.msra.mxu0 %v1087
    %1828 = vmatprep.subr.bf16.mxu0 %v1090
    %1829 = vmatpush1.bf16.msra.mxu0 %v1089
    %1830 = vmatprep.subr.bf16.mxu0 %v1092
    %1831 = vmatpush1.bf16.msra.mxu0 %v1091
    %1832 = vmatprep.subr.bf16.mxu0 %v1094
    %1833 = vmatpush1.bf16.msra.mxu0 %v1093
    %1834 = vmatprep.subr.bf16.mxu0 %v1096
    %1835 = vmatpush1.bf16.msra.mxu0 %v1095
    %1836 = vmatprep.subr.bf16.mxu0 %v1098
    %1837 = vmatpush1.bf16.msra.mxu0 %v1097
    %1838 = vmatprep.subr.bf16.mxu0 %v1100
    %1839 = vmatpush1.bf16.msra.mxu0 %v1099
    %1840 = vmatprep.subr.bf16.mxu0 %v1102
    %1841 = vmatpush1.bf16.msra.mxu0 %v1101
    %1842 = vmatprep.subr.bf16.mxu0 %v1104
    %1843 = vmatpush1.bf16.msra.mxu0 %v1103
    %1844 = vmatprep.subr.bf16.mxu0 %v1106
    %1845 = vmatpush1.bf16.msra.mxu0 %v1105
    %1846 = vmatprep.subr.bf16.mxu0 %v1108
    %1847 = vmatpush1.bf16.msra.mxu0 %v1107
    %1848 = vmatprep.subr.bf16.mxu0 %v1110
    %1849 = vmatpush1.bf16.msra.mxu0 %v1109
    %1850 = vmatprep.subr.bf16.mxu0 %v1112
    %1851 = vmatpush1.bf16.msra.mxu0 %v1111
    %1852 = vmatprep.subr.bf16.mxu0 %v1114
    %1853 = vmatpush1.bf16.msra.mxu0 %v1113
    %1854 = vmatprep.subr.bf16.mxu0 %v1116
    %1855 = vmatpush1.bf16.msra.mxu0 %v1115
    %1856 = vmatprep.subr.bf16.mxu0 %v1118
    %1857 = vmatpush1.bf16.msra.mxu0 %v1117
    %1858 = vmatprep.mubr.bf16.mxu0 %v346
    %1859 = vmatmul.mubr.bf16.gmra.mrb[0].mxu0 %v345
    %v1860 = vpop.f32.mrb[0].mxu0
    %v1861 = vadd.f32 %v1668, %v1860
    %v1862 = vpop.f32.mrb[0].mxu0
    %v1863 = vadd.f32 %v1670, %v1862
    %v1864 = vpop.f32.mrb[0].mxu0
    %v1865 = vadd.f32 %v1672, %v1864
    %v1866 = vpop.f32.mrb[0].mxu0
    %v1867 = vadd.f32 %v1674, %v1866
    %1868 = vmatprep.mubr.bf16.mxu0 %v354
    %1869 = vmatmul.mubr.bf16.gmra.mrb[0].mxu0 %v353
    %v1870 = vpop.f32.mrb[0].mxu0
    %v1871 = vadd.f32 %v1678, %v1870
    %v1872 = vpop.f32.mrb[0].mxu0
    %v1873 = vadd.f32 %v1680, %v1872
    %v1874 = vpop.f32.mrb[0].mxu0
    %v1875 = vadd.f32 %v1682, %v1874
    %v1876 = vpop.f32.mrb[0].mxu0
    %v1877 = vadd.f32 %v1684, %v1876
    %1878 = vmatprep.mubr.bf16.mxu0 %v362
    %1879 = vmatmul.mubr.bf16.gmra.mrb[0].mxu0 %v361
    %v1880 = vpop.f32.mrb[0].mxu0
    %v1881 = vadd.f32 %v1688, %v1880
    %v1882 = vpop.f32.mrb[0].mxu0
    %v1883 = vadd.f32 %v1690, %v1882
    %v1884 = vpop.f32.mrb[0].mxu0
    %v1885 = vadd.f32 %v1692, %v1884
    %v1886 = vpop.f32.mrb[0].mxu0
    %v1887 = vadd.f32 %v1694, %v1886
    %1888 = vmatprep.mubr.bf16.mxu0 %v370
    %1889 = vmatmul.mubr.bf16.gmra.mrb[0].mxu0 %v369
    %v1890 = vpop.f32.mrb[0].mxu0
    %v1891 = vadd.f32 %v1698, %v1890
    %v1892 = vpop.f32.mrb[0].mxu0
    %v1893 = vadd.f32 %v1700, %v1892
    %v1894 = vpop.f32.mrb[0].mxu0
    %v1895 = vadd.f32 %v1702, %v1894
    %v1896 = vpop.f32.mrb[0].mxu0
    %v1897 = vadd.f32 %v1704, %v1896
    %1898 = vmatprep.mubr.bf16.mxu0 %v378
    %1899 = vmatmul.mubr.bf16.gmra.mrb[0].mxu0 %v377
    %v1900 = vpop.f32.mrb[0].mxu0
    %v1901 = vadd.f32 %v1708, %v1900
    %v1902 = vpop.f32.mrb[0].mxu0
    %v1903 = vadd.f32 %v1710, %v1902
    %v1904 = vpop.f32.mrb[0].mxu0
    %v1905 = vadd.f32 %v1712, %v1904
    %v1906 = vpop.f32.mrb[0].mxu0
    %v1907 = vadd.f32 %v1714, %v1906
    %1908 = vmatprep.mubr.bf16.mxu0 %v386
    %1909 = vmatmul.mubr.bf16.gmra.mrb[0].mxu0 %v385
    %v1910 = vpop.f32.mrb[0].mxu0
    %v1911 = vadd.f32 %v1718, %v1910
    %v1912 = vpop.f32.mrb[0].mxu0
    %v1913 = vadd.f32 %v1720, %v1912
    %v1914 = vpop.f32.mrb[0].mxu0
    %v1915 = vadd.f32 %v1722, %v1914
    %v1916 = vpop.f32.mrb[0].mxu0
    %v1917 = vadd.f32 %v1724, %v1916
    %1918 = vmatprep.mubr.bf16.mxu0 %v394
    %1919 = vmatmul.mubr.bf16.gmra.mrb[0].mxu0 %v393
    %v1920 = vpop.f32.mrb[0].mxu0
    %v1921 = vadd.f32 %v1728, %v1920
    %v1922 = vpop.f32.mrb[0].mxu0
    %v1923 = vadd.f32 %v1730, %v1922
    %v1924 = vpop.f32.mrb[0].mxu0
    %v1925 = vadd.f32 %v1732, %v1924
    %v1926 = vpop.f32.mrb[0].mxu0
    %v1927 = vadd.f32 %v1734, %v1926
    %1928 = vmatprep.mubr.bf16.mxu0 %v402
    %1929 = vmatmul.mubr.bf16.gmra.mrb[0].mxu0 %v401
    %v1930 = vpop.f32.mrb[0].mxu0
    %v1931 = vadd.f32 %v1738, %v1930
    %v1932 = vpop.f32.mrb[0].mxu0
    %v1933 = vadd.f32 %v1740, %v1932
    %v1934 = vpop.f32.mrb[0].mxu0
    %v1935 = vadd.f32 %v1742, %v1934
    %v1936 = vpop.f32.mrb[0].mxu0
    %v1937 = vadd.f32 %v1744, %v1936
    %1938 = vmatprep.mubr.bf16.mxu0 %v410
    %1939 = vmatmul.mubr.bf16.gmra.mrb[0].mxu0 %v409
    %v1940 = vpop.f32.mrb[0].mxu0
    %v1941 = vadd.f32 %v1748, %v1940
    %v1942 = vpop.f32.mrb[0].mxu0
    %v1943 = vadd.f32 %v1750, %v1942
    %v1944 = vpop.f32.mrb[0].mxu0
    %v1945 = vadd.f32 %v1752, %v1944
    %v1946 = vpop.f32.mrb[0].mxu0
    %v1947 = vadd.f32 %v1754, %v1946
    %1948 = vmatprep.mubr.bf16.mxu0 %v418
    %1949 = vmatmul.mubr.bf16.gmra.mrb[0].mxu0 %v417
    %v1950 = vpop.f32.mrb[0].mxu0
    %v1951 = vadd.f32 %v1758, %v1950
    %v1952 = vpop.f32.mrb[0].mxu0
    %v1953 = vadd.f32 %v1760, %v1952
    %v1954 = vpop.f32.mrb[0].mxu0
    %v1955 = vadd.f32 %v1762, %v1954
    %v1956 = vpop.f32.mrb[0].mxu0
    %v1957 = vadd.f32 %v1764, %v1956
    %1958 = vmatprep.mubr.bf16.mxu0 %v426
    %1959 = vmatmul.mubr.bf16.gmra.mrb[0].mxu0 %v425
    %v1960 = vpop.f32.mrb[0].mxu0
    %v1961 = vadd.f32 %v1768, %v1960
    %v1962 = vpop.f32.mrb[0].mxu0
    %v1963 = vadd.f32 %v1770, %v1962
    %v1964 = vpop.f32.mrb[0].mxu0
    %v1965 = vadd.f32 %v1772, %v1964
    %v1966 = vpop.f32.mrb[0].mxu0
    %v1967 = vadd.f32 %v1774, %v1966
    %1968 = vmatprep.mubr.bf16.mxu0 %v434
    %1969 = vmatmul.mubr.bf16.gmra.mrb[0].mxu0 %v433
    %v1970 = vpop.f32.mrb[0].mxu0
    %v1971 = vadd.f32 %v1778, %v1970
    %v1972 = vpop.f32.mrb[0].mxu0
    %v1973 = vadd.f32 %v1780, %v1972
    %v1974 = vpop.f32.mrb[0].mxu0
    %v1975 = vadd.f32 %v1782, %v1974
    %v1976 = vpop.f32.mrb[0].mxu0
    %v1977 = vadd.f32 %v1784, %v1976
    %1978 = vmatprep.mubr.bf16.mxu0 %v442
    %1979 = vmatmul.mubr.bf16.gmra.mrb[0].mxu0 %v441
    %v1980 = vpop.f32.mrb[0].mxu0
    %v1981 = vadd.f32 %v1788, %v1980
    %v1982 = vpop.f32.mrb[0].mxu0
    %v1983 = vadd.f32 %v1790, %v1982
    %v1984 = vpop.f32.mrb[0].mxu0
    %v1985 = vadd.f32 %v1792, %v1984
    %v1986 = vpop.f32.mrb[0].mxu0
    %v1987 = vadd.f32 %v1794, %v1986
    %1988 = vmatprep.mubr.bf16.mxu0 %v450
    %1989 = vmatmul.mubr.bf16.gmra.mrb[0].mxu0 %v449
    %v1990 = vpop.f32.mrb[0].mxu0
    %v1991 = vadd.f32 %v1798, %v1990
    %v1992 = vpop.f32.mrb[0].mxu0
    %v1993 = vadd.f32 %v1800, %v1992
    %v1994 = vpop.f32.mrb[0].mxu0
    %v1995 = vadd.f32 %v1802, %v1994
    %v1996 = vpop.f32.mrb[0].mxu0
    %v1997 = vadd.f32 %v1804, %v1996
    %1998 = vmatprep.mubr.bf16.mxu0 %v458
    %1999 = vmatmul.mubr.bf16.gmra.mrb[0].mxu0 %v457
    %v2000 = vpop.f32.mrb[0].mxu0
    %v2001 = vadd.f32 %v1808, %v2000
    %v2002 = vpop.f32.mrb[0].mxu0
    %v2003 = vadd.f32 %v1810, %v2002
    %v2004 = vpop.f32.mrb[0].mxu0
    %v2005 = vadd.f32 %v1812, %v2004
    %v2006 = vpop.f32.mrb[0].mxu0
    %v2007 = vadd.f32 %v1814, %v2006
    %2008 = vmatprep.mubr.bf16.mxu0 %v466
    %2009 = vmatmul.mubr.bf16.gmra.mrb[0].mxu0 %v465
    %v2010 = vpop.f32.mrb[0].mxu0
    %v2011 = vadd.f32 %v1818, %v2010
    %v2012 = vpop.f32.mrb[0].mxu0
    %v2013 = vadd.f32 %v1820, %v2012
    %v2014 = vpop.f32.mrb[0].mxu0
    %v2015 = vadd.f32 %v1822, %v2014
    %v2016 = vpop.f32.mrb[0].mxu0
    %v2017 = vadd.f32 %v1824, %v2016
    %2018 = vdwg.mxu0
    %vm2019 = vcmp.gt.f32.partialorder %v1861, 0.0
    %vm2020 = vcmp.gt.f32.partialorder %v1863, 0.0
    %vm2021 = vcmp.gt.f32.partialorder %v1865, 0.0
    %vm2022 = vcmp.gt.f32.partialorder %v1867, 0.0
    %vm2023 = vcmp.gt.f32.partialorder %v1871, 0.0
    %vm2024 = vcmp.gt.f32.partialorder %v1873, 0.0
    %vm2025 = vcmp.gt.f32.partialorder %v1875, 0.0
    %vm2026 = vcmp.gt.f32.partialorder %v1877, 0.0
    %vm2027 = vcmp.gt.f32.partialorder %v1881, 0.0
    %vm2028 = vcmp.gt.f32.partialorder %v1883, 0.0
    %vm2029 = vcmp.gt.f32.partialorder %v1885, 0.0
    %vm2030 = vcmp.gt.f32.partialorder %v1887, 0.0
    %vm2031 = vcmp.gt.f32.partialorder %v1891, 0.0
    %vm2032 = vcmp.gt.f32.partialorder %v1893, 0.0
    %vm2033 = vcmp.gt.f32.partialorder %v1895, 0.0
    %vm2034 = vcmp.gt.f32.partialorder %v1897, 0.0
    %vm2035 = vcmp.gt.f32.partialorder %v1901, 0.0
    %vm2036 = vcmp.gt.f32.partialorder %v1903, 0.0
    %vm2037 = vcmp.gt.f32.partialorder %v1905, 0.0
    %vm2038 = vcmp.gt.f32.partialorder %v1907, 0.0
    %vm2039 = vcmp.gt.f32.partialorder %v1911, 0.0
    %vm2040 = vcmp.gt.f32.partialorder %v1913, 0.0
    %vm2041 = vcmp.gt.f32.partialorder %v1915, 0.0
    %vm2042 = vcmp.gt.f32.partialorder %v1917, 0.0
    %vm2043 = vcmp.gt.f32.partialorder %v1921, 0.0
    %vm2044 = vcmp.gt.f32.partialorder %v1923, 0.0
    %vm2045 = vcmp.gt.f32.partialorder %v1925, 0.0
    %vm2046 = vcmp.gt.f32.partialorder %v1927, 0.0
    %vm2047 = vcmp.gt.f32.partialorder %v1931, 0.0
    %vm2048 = vcmp.gt.f32.partialorder %v1933, 0.0
    %vm2049 = vcmp.gt.f32.partialorder %v1935, 0.0
    %vm2050 = vcmp.gt.f32.partialorder %v1937, 0.0
    %vm2051 = vcmp.gt.f32.partialorder %v1941, 0.0
    %vm2052 = vcmp.gt.f32.partialorder %v1943, 0.0
    %vm2053 = vcmp.gt.f32.partialorder %v1945, 0.0
    %vm2054 = vcmp.gt.f32.partialorder %v1947, 0.0
    %vm2055 = vcmp.gt.f32.partialorder %v1951, 0.0
    %vm2056 = vcmp.gt.f32.partialorder %v1953, 0.0
    %vm2057 = vcmp.gt.f32.partialorder %v1955, 0.0
    %vm2058 = vcmp.gt.f32.partialorder %v1957, 0.0
    %vm2059 = vcmp.gt.f32.partialorder %v1961, 0.0
    %vm2060 = vcmp.gt.f32.partialorder %v1963, 0.0
    %vm2061 = vcmp.gt.f32.partialorder %v1965, 0.0
    %vm2062 = vcmp.gt.f32.partialorder %v1967, 0.0
    %vm2063 = vcmp.gt.f32.partialorder %v1971, 0.0
    %vm2064 = vcmp.gt.f32.partialorder %v1973, 0.0
    %vm2065 = vcmp.gt.f32.partialorder %v1975, 0.0
    %vm2066 = vcmp.gt.f32.partialorder %v1977, 0.0
    %vm2067 = vcmp.gt.f32.partialorder %v1981, 0.0
    %vm2068 = vcmp.gt.f32.partialorder %v1983, 0.0
    %vm2069 = vcmp.gt.f32.partialorder %v1985, 0.0
    %vm2070 = vcmp.gt.f32.partialorder %v1987, 0.0
    %vm2071 = vcmp.gt.f32.partialorder %v1991, 0.0
    %vm2072 = vcmp.gt.f32.partialorder %v1993, 0.0
    %vm2073 = vcmp.gt.f32.partialorder %v1995, 0.0
    %vm2074 = vcmp.gt.f32.partialorder %v1997, 0.0
    %vm2075 = vcmp.gt.f32.partialorder %v2001, 0.0
    %vm2076 = vcmp.gt.f32.partialorder %v2003, 0.0
    %vm2077 = vcmp.gt.f32.partialorder %v2005, 0.0
    %vm2078 = vcmp.gt.f32.partialorder %v2007, 0.0
    %vm2079 = vcmp.gt.f32.partialorder %v2011, 0.0
    %vm2080 = vcmp.gt.f32.partialorder %v2013, 0.0
    %vm2081 = vcmp.gt.f32.partialorder %v2015, 0.0
    %vm2082 = vcmp.gt.f32.partialorder %v2017, 0.0
    %v2083 = vmul.f32 %v1861, 0.2
    %v2084 = vmul.f32 %v1863, 0.2
    %v2085 = vmul.f32 %v1865, 0.2
    %v2086 = vmul.f32 %v1867, 0.2
    %v2087 = vmul.f32 %v1871, 0.2
    %v2088 = vmul.f32 %v1873, 0.2
    %v2089 = vmul.f32 %v1875, 0.2
    %v2090 = vmul.f32 %v1877, 0.2
    %v2091 = vmul.f32 %v1881, 0.2
    %v2092 = vmul.f32 %v1883, 0.2
    %v2093 = vmul.f32 %v1885, 0.2
    %v2094 = vmul.f32 %v1887, 0.2
    %v2095 = vmul.f32 %v1891, 0.2
    %v2096 = vmul.f32 %v1893, 0.2
    %v2097 = vmul.f32 %v1895, 0.2
    %v2098 = vmul.f32 %v1897, 0.2
    %v2099 = vmul.f32 %v1901, 0.2
    %v2100 = vmul.f32 %v1903, 0.2
    %v2101 = vmul.f32 %v1905, 0.2
    %v2102 = vmul.f32 %v1907, 0.2
    %v2103 = vmul.f32 %v1911, 0.2
    %v2104 = vmul.f32 %v1913, 0.2
    %v2105 = vmul.f32 %v1915, 0.2
    %v2106 = vmul.f32 %v1917, 0.2
    %v2107 = vmul.f32 %v1921, 0.2
    %v2108 = vmul.f32 %v1923, 0.2
    %v2109 = vmul.f32 %v1925, 0.2
    %v2110 = vmul.f32 %v1927, 0.2
    %v2111 = vmul.f32 %v1931, 0.2
    %v2112 = vmul.f32 %v1933, 0.2
    %v2113 = vmul.f32 %v1935, 0.2
    %v2114 = vmul.f32 %v1937, 0.2
    %v2115 = vmul.f32 %v1941, 0.2
    %v2116 = vmul.f32 %v1943, 0.2
    %v2117 = vmul.f32 %v1945, 0.2
    %v2118 = vmul.f32 %v1947, 0.2
    %v2119 = vmul.f32 %v1951, 0.2
    %v2120 = vmul.f32 %v1953, 0.2
    %v2121 = vmul.f32 %v1955, 0.2
    %v2122 = vmul.f32 %v1957, 0.2
    %v2123 = vmul.f32 %v1961, 0.2
    %v2124 = vmul.f32 %v1963, 0.2
    %v2125 = vmul.f32 %v1965, 0.2
    %v2126 = vmul.f32 %v1967, 0.2
    %v2127 = vmul.f32 %v1971, 0.2
    %v2128 = vmul.f32 %v1973, 0.2
    %v2129 = vmul.f32 %v1975, 0.2
    %v2130 = vmul.f32 %v1977, 0.2
    %v2131 = vmul.f32 %v1981, 0.2
    %v2132 = vmul.f32 %v1983, 0.2
    %v2133 = vmul.f32 %v1985, 0.2
    %v2134 = vmul.f32 %v1987, 0.2
    %v2135 = vmul.f32 %v1991, 0.2
    %v2136 = vmul.f32 %v1993, 0.2
    %v2137 = vmul.f32 %v1995, 0.2
    %v2138 = vmul.f32 %v1997, 0.2
    %v2139 = vmul.f32 %v2001, 0.2
    %v2140 = vmul.f32 %v2003, 0.2
    %v2141 = vmul.f32 %v2005, 0.2
    %v2142 = vmul.f32 %v2007, 0.2
    %v2143 = vmul.f32 %v2011, 0.2
    %v2144 = vmul.f32 %v2013, 0.2
    %v2145 = vmul.f32 %v2015, 0.2
    %v2146 = vmul.f32 %v2017, 0.2
    %v2147 = vsel %vm2019, %v1861, %v2083
    %v2148 = vsel %vm2020, %v1863, %v2084
    %v2149 = vsel %vm2021, %v1865, %v2085
    %v2150 = vsel %vm2022, %v1867, %v2086
    %v2151 = vsel %vm2023, %v1871, %v2087
    %v2152 = vsel %vm2024, %v1873, %v2088
    %v2153 = vsel %vm2025, %v1875, %v2089
    %v2154 = vsel %vm2026, %v1877, %v2090
    %v2155 = vsel %vm2027, %v1881, %v2091
    %v2156 = vsel %vm2028, %v1883, %v2092
    %v2157 = vsel %vm2029, %v1885, %v2093
    %v2158 = vsel %vm2030, %v1887, %v2094
    %v2159 = vsel %vm2031, %v1891, %v2095
    %v2160 = vsel %vm2032, %v1893, %v2096
    %v2161 = vsel %vm2033, %v1895, %v2097
    %v2162 = vsel %vm2034, %v1897, %v2098
    %v2163 = vsel %vm2035, %v1901, %v2099
    %v2164 = vsel %vm2036, %v1903, %v2100
    %v2165 = vsel %vm2037, %v1905, %v2101
    %v2166 = vsel %vm2038, %v1907, %v2102
    %v2167 = vsel %vm2039, %v1911, %v2103
    %v2168 = vsel %vm2040, %v1913, %v2104
    %v2169 = vsel %vm2041, %v1915, %v2105
    %v2170 = vsel %vm2042, %v1917, %v2106
    %v2171 = vsel %vm2043, %v1921, %v2107
    %v2172 = vsel %vm2044, %v1923, %v2108
    %v2173 = vsel %vm2045, %v1925, %v2109
    %v2174 = vsel %vm2046, %v1927, %v2110
    %v2175 = vsel %vm2047, %v1931, %v2111
    %v2176 = vsel %vm2048, %v1933, %v2112
    %v2177 = vsel %vm2049, %v1935, %v2113
    %v2178 = vsel %vm2050, %v1937, %v2114
    %v2179 = vsel %vm2051, %v1941, %v2115
    %v2180 = vsel %vm2052, %v1943, %v2116
    %v2181 = vsel %vm2053, %v1945, %v2117
    %v2182 = vsel %vm2054, %v1947, %v2118
    %v2183 = vsel %vm2055, %v1951, %v2119
    %v2184 = vsel %vm2056, %v1953, %v2120
    %v2185 = vsel %vm2057, %v1955, %v2121
    %v2186 = vsel %vm2058, %v1957, %v2122
    %v2187 = vsel %vm2059, %v1961, %v2123
    %v2188 = vsel %vm2060, %v1963, %v2124
    %v2189 = vsel %vm2061, %v1965, %v2125
    %v2190 = vsel %vm2062, %v1967, %v2126
    %v2191 = vsel %vm2063, %v1971, %v2127
    %v2192 = vsel %vm2064, %v1973, %v2128
    %v2193 = vsel %vm2065, %v1975, %v2129
    %v2194 = vsel %vm2066, %v1977, %v2130
    %v2195 = vsel %vm2067, %v1981, %v2131
    %v2196 = vsel %vm2068, %v1983, %v2132
    %v2197 = vsel %vm2069, %v1985, %v2133
    %v2198 = vsel %vm2070, %v1987, %v2134
    %v2199 = vsel %vm2071, %v1991, %v2135
    %v2200 = vsel %vm2072, %v1993, %v2136
    %v2201 = vsel %vm2073, %v1995, %v2137
    %v2202 = vsel %vm2074, %v1997, %v2138
    %v2203 = vsel %vm2075, %v2001, %v2139
    %v2204 = vsel %vm2076, %v2003, %v2140
    %v2205 = vsel %vm2077, %v2005, %v2141
    %v2206 = vsel %vm2078, %v2007, %v2142
    %v2207 = vsel %vm2079, %v2011, %v2143
    %v2208 = vsel %vm2080, %v2013, %v2144
    %v2209 = vsel %vm2081, %v2015, %v2145
    %v2210 = vsel %vm2082, %v2017, %v2146
    %v2211 = vpack.c.bf16 %v2149, %v2147
    %v2212 = vpack.c.bf16 %v2150, %v2148
    %v2213 = vpack.c.bf16 %v2153, %v2151
    %v2214 = vpack.c.bf16 %v2154, %v2152
    %v2215 = vpack.c.bf16 %v2157, %v2155
    %v2216 = vpack.c.bf16 %v2158, %v2156
    %v2217 = vpack.c.bf16 %v2161, %v2159
    %v2218 = vpack.c.bf16 %v2162, %v2160
    %v2219 = vpack.c.bf16 %v2165, %v2163
    %v2220 = vpack.c.bf16 %v2166, %v2164
    %v2221 = vpack.c.bf16 %v2169, %v2167
    %v2222 = vpack.c.bf16 %v2170, %v2168
    %v2223 = vpack.c.bf16 %v2173, %v2171
    %v2224 = vpack.c.bf16 %v2174, %v2172
    %v2225 = vpack.c.bf16 %v2177, %v2175
    %v2226 = vpack.c.bf16 %v2178, %v2176
    %v2227 = vpack.c.bf16 %v2181, %v2179
    %v2228 = vpack.c.bf16 %v2182, %v2180
    %v2229 = vpack.c.bf16 %v2185, %v2183
    %v2230 = vpack.c.bf16 %v2186, %v2184
    %v2231 = vpack.c.bf16 %v2189, %v2187
    %v2232 = vpack.c.bf16 %v2190, %v2188
    %v2233 = vpack.c.bf16 %v2193, %v2191
    %v2234 = vpack.c.bf16 %v2194, %v2192
    %v2235 = vpack.c.bf16 %v2197, %v2195
    %v2236 = vpack.c.bf16 %v2198, %v2196
    %v2237 = vpack.c.bf16 %v2201, %v2199
    %v2238 = vpack.c.bf16 %v2202, %v2200
    %v2239 = vpack.c.bf16 %v2205, %v2203
    %v2240 = vpack.c.bf16 %v2206, %v2204
    %v2241 = vpack.c.bf16 %v2209, %v2207
    %v2242 = vpack.c.bf16 %v2210, %v2208
    %v2243 = vld [vmem:[#allocation7] sm:$0xff]
    %v2244 = vld [vmem:[#allocation7 + $0x8] sm:$0xff]
    %v2245 = vld [vmem:[#allocation7 + $0x10] sm:$0xff]
    %v2246 = vld [vmem:[#allocation7 + $0x18] sm:$0xff]
    %v2247 = vld [vmem:[#allocation7 + $0x20] sm:$0xff]
    %v2248 = vld [vmem:[#allocation7 + $0x28] sm:$0xff]
    %v2249 = vld [vmem:[#allocation7 + $0x30] sm:$0xff]
    %v2250 = vld [vmem:[#allocation7 + $0x38] sm:$0xff]
    %v2251 = vld [vmem:[#allocation7 + $0x40] sm:$0xff]
    %v2252 = vld [vmem:[#allocation7 + $0x48] sm:$0xff]
    %v2253 = vld [vmem:[#allocation7 + $0x50] sm:$0xff]
    %v2254 = vld [vmem:[#allocation7 + $0x58] sm:$0xff]
    %v2255 = vld [vmem:[#allocation7 + $0x60] sm:$0xff]
    %v2256 = vld [vmem:[#allocation7 + $0x68] sm:$0xff]
    %v2257 = vld [vmem:[#allocation7 + $0x70] sm:$0xff]
    %v2258 = vld [vmem:[#allocation7 + $0x78] sm:$0xff]
    %v2259 = vld [vmem:[#allocation7 + $0x80] sm:$0xff]
    %v2260 = vld [vmem:[#allocation7 + $0x88] sm:$0xff]
    %v2261 = vld [vmem:[#allocation7 + $0x90] sm:$0xff]
    %v2262 = vld [vmem:[#allocation7 + $0x98] sm:$0xff]
    %v2263 = vld [vmem:[#allocation7 + $0xa0] sm:$0xff]
    %v2264 = vld [vmem:[#allocation7 + $0xa8] sm:$0xff]
    %v2265 = vld [vmem:[#allocation7 + $0xb0] sm:$0xff]
    %v2266 = vld [vmem:[#allocation7 + $0xb8] sm:$0xff]
    %v2267 = vld [vmem:[#allocation7 + $0xc0] sm:$0xff]
    %v2268 = vld [vmem:[#allocation7 + $0xc8] sm:$0xff]
    %v2269 = vld [vmem:[#allocation7 + $0xd0] sm:$0xff]
    %v2270 = vld [vmem:[#allocation7 + $0xd8] sm:$0xff]
    %v2271 = vld [vmem:[#allocation7 + $0xe0] sm:$0xff]
    %v2272 = vld [vmem:[#allocation7 + $0xe8] sm:$0xff]
    %v2273 = vld [vmem:[#allocation7 + $0xf0] sm:$0xff]
    %v2274 = vld [vmem:[#allocation7 + $0xf8] sm:$0xff]
    %v2275 = vld [vmem:[%s4] sm:$0x3]
    %v2277 = vlaneseq
    %v2278 = vshrl.u32 %v2277, 7
    %v2279 = vsub.s32 0, %v2278
    %v2280 = vrot.slane %v2275, %v2279
    %v2281 = vlaneseq
    %v2282 = vshrl.u32 %v2281, 7
    %v2283 = vsub.s32 1, %v2282
    %v2284 = vrot.slane %v2275, %v2283
    %v2319 = vunpack.c.l.b16 %v2243
    %v2320 = vunpack.c.h.b16 %v2243
    %v2321 = vunpack.c.l.b16 %v2244
    %v2322 = vunpack.c.h.b16 %v2244
    %v2323 = vunpack.c.l.b16 %v2245
    %v2324 = vunpack.c.h.b16 %v2245
    %v2325 = vunpack.c.l.b16 %v2246
    %v2326 = vunpack.c.h.b16 %v2246
    %v2327 = vunpack.c.l.b16 %v2247
    %v2328 = vunpack.c.h.b16 %v2247
    %v2329 = vunpack.c.l.b16 %v2248
    %v2330 = vunpack.c.h.b16 %v2248
    %v2331 = vunpack.c.l.b16 %v2249
    %v2332 = vunpack.c.h.b16 %v2249
    %v2333 = vunpack.c.l.b16 %v2250
    %v2334 = vunpack.c.h.b16 %v2250
    %v2335 = vunpack.c.l.b16 %v2251
    %v2336 = vunpack.c.h.b16 %v2251
    %v2337 = vunpack.c.l.b16 %v2252
    %v2338 = vunpack.c.h.b16 %v2252
    %v2339 = vunpack.c.l.b16 %v2253
    %v2340 = vunpack.c.h.b16 %v2253
    %v2341 = vunpack.c.l.b16 %v2254
    %v2342 = vunpack.c.h.b16 %v2254
    %v2343 = vunpack.c.l.b16 %v2255
    %v2344 = vunpack.c.h.b16 %v2255
    %v2345 = vunpack.c.l.b16 %v2256
    %v2346 = vunpack.c.h.b16 %v2256
    %v2347 = vunpack.c.l.b16 %v2257
    %v2348 = vunpack.c.h.b16 %v2257
    %v2349 = vunpack.c.l.b16 %v2258
    %v2350 = vunpack.c.h.b16 %v2258
    %v2351 = vunpack.c.l.b16 %v2259
    %v2352 = vunpack.c.h.b16 %v2259
    %v2353 = vunpack.c.l.b16 %v2260
    %v2354 = vunpack.c.h.b16 %v2260
    %v2355 = vunpack.c.l.b16 %v2261
    %v2356 = vunpack.c.h.b16 %v2261
    %v2357 = vunpack.c.l.b16 %v2262
    %v2358 = vunpack.c.h.b16 %v2262
    %v2359 = vunpack.c.l.b16 %v2263
    %v2360 = vunpack.c.h.b16 %v2263
    %v2361 = vunpack.c.l.b16 %v2264
    %v2362 = vunpack.c.h.b16 %v2264
    %v2363 = vunpack.c.l.b16 %v2265
    %v2364 = vunpack.c.h.b16 %v2265
    %v2365 = vunpack.c.l.b16 %v2266
    %v2366 = vunpack.c.h.b16 %v2266
    %v2367 = vunpack.c.l.b16 %v2267
    %v2368 = vunpack.c.h.b16 %v2267
    %v2369 = vunpack.c.l.b16 %v2268
    %v2370 = vunpack.c.h.b16 %v2268
    %v2371 = vunpack.c.l.b16 %v2269
    %v2372 = vunpack.c.h.b16 %v2269
    %v2373 = vunpack.c.l.b16 %v2270
    %v2374 = vunpack.c.h.b16 %v2270
    %v2375 = vunpack.c.l.b16 %v2271
    %v2376 = vunpack.c.h.b16 %v2271
    %v2377 = vunpack.c.l.b16 %v2272
    %v2378 = vunpack.c.h.b16 %v2272
    %v2379 = vunpack.c.l.b16 %v2273
    %v2380 = vunpack.c.h.b16 %v2273
    %v2381 = vunpack.c.l.b16 %v2274
    %v2382 = vunpack.c.h.b16 %v2274
    %v2383 = vpack.c.b16 %v2321, %v2319
    %v2384 = vpack.c.b16 %v2322, %v2320
    %v2385 = vpack.c.b16 %v2325, %v2323
    %v2386 = vpack.c.b16 %v2326, %v2324
    %v2387 = vpack.c.b16 %v2329, %v2327
    %v2388 = vpack.c.b16 %v2330, %v2328
    %v2389 = vpack.c.b16 %v2333, %v2331
    %v2390 = vpack.c.b16 %v2334, %v2332
    %v2391 = vpack.c.b16 %v2337, %v2335
    %v2392 = vpack.c.b16 %v2338, %v2336
    %v2393 = vpack.c.b16 %v2341, %v2339
    %v2394 = vpack.c.b16 %v2342, %v2340
    %v2395 = vpack.c.b16 %v2345, %v2343
    %v2396 = vpack.c.b16 %v2346, %v2344
    %v2397 = vpack.c.b16 %v2349, %v2347
    %v2398 = vpack.c.b16 %v2350, %v2348
    %v2399 = vpack.c.b16 %v2353, %v2351
    %v2400 = vpack.c.b16 %v2354, %v2352
    %v2401 = vpack.c.b16 %v2357, %v2355
    %v2402 = vpack.c.b16 %v2358, %v2356
    %v2403 = vpack.c.b16 %v2361, %v2359
    %v2404 = vpack.c.b16 %v2362, %v2360
    %v2405 = vpack.c.b16 %v2365, %v2363
    %v2406 = vpack.c.b16 %v2366, %v2364
    %v2407 = vpack.c.b16 %v2369, %v2367
    %v2408 = vpack.c.b16 %v2370, %v2368
    %v2409 = vpack.c.b16 %v2373, %v2371
    %v2410 = vpack.c.b16 %v2374, %v2372
    %v2411 = vpack.c.b16 %v2377, %v2375
    %v2412 = vpack.c.b16 %v2378, %v2376
    %v2413 = vpack.c.b16 %v2381, %v2379
    %v2414 = vpack.c.b16 %v2382, %v2380
    %2447 = vmatprep.subr.bf16.mxu0 %v2384
    %2448 = vmatpush1.bf16.msra.mxu0 %v2383
    %2449 = vmatprep.subr.bf16.mxu0 %v2386
    %2450 = vmatpush1.bf16.msra.mxu0 %v2385
    %2451 = vmatprep.subr.bf16.mxu0 %v2388
    %2452 = vmatpush1.bf16.msra.mxu0 %v2387
    %2453 = vmatprep.subr.bf16.mxu0 %v2390
    %2454 = vmatpush1.bf16.msra.mxu0 %v2389
    %2455 = vmatprep.subr.bf16.mxu0 %v2392
    %2456 = vmatpush1.bf16.msra.mxu0 %v2391
    %2457 = vmatprep.subr.bf16.mxu0 %v2394
    %2458 = vmatpush1.bf16.msra.mxu0 %v2393
    %2459 = vmatprep.subr.bf16.mxu0 %v2396
    %2460 = vmatpush1.bf16.msra.mxu0 %v2395
    %2461 = vmatprep.subr.bf16.mxu0 %v2398
    %2462 = vmatpush1.bf16.msra.mxu0 %v2397
    %2463 = vmatprep.subr.bf16.mxu0 %v2400
    %2464 = vmatpush1.bf16.msra.mxu0 %v2399
    %2465 = vmatprep.subr.bf16.mxu0 %v2402
    %2466 = vmatpush1.bf16.msra.mxu0 %v2401
    %2467 = vmatprep.subr.bf16.mxu0 %v2404
    %2468 = vmatpush1.bf16.msra.mxu0 %v2403
    %2469 = vmatprep.subr.bf16.mxu0 %v2406
    %2470 = vmatpush1.bf16.msra.mxu0 %v2405
    %2471 = vmatprep.subr.bf16.mxu0 %v2408
    %2472 = vmatpush1.bf16.msra.mxu0 %v2407
    %2473 = vmatprep.subr.bf16.mxu0 %v2410
    %2474 = vmatpush1.bf16.msra.mxu0 %v2409
    %2475 = vmatprep.subr.bf16.mxu0 %v2412
    %2476 = vmatpush1.bf16.msra.mxu0 %v2411
    %2477 = vmatprep.subr.bf16.mxu0 %v2414
    %2478 = vmatpush1.bf16.msra.mxu0 %v2413
    %2479 = vmatprep.mubr.bf16.mxu0 %v2212
    %2480 = vmatmul.mubr.bf16.gmra.mrb[0].mxu0 %v2211
    %v2481 = vpop.f32.mrb[0].mxu0
    %v2482 = vadd.f32 %v2280, %v2481
    %v2483 = vpop.f32.mrb[0].mxu0
    %v2484 = vadd.f32 %v2284, %v2483
    %v2485 = vpop.f32.mrb[0].mxu0
    %v2486 = vadd.f32 %v2280, %v2485
    %v2487 = vpop.f32.mrb[0].mxu0
    %v2488 = vadd.f32 %v2284, %v2487
    %2489 = vmatprep.mubr.bf16.mxu0 %v2214
    %2490 = vmatmul.mubr.bf16.gmra.mrb[0].mxu0 %v2213
    %v2491 = vpop.f32.mrb[0].mxu0
    %v2492 = vadd.f32 %v2280, %v2491
    %v2493 = vpop.f32.mrb[0].mxu0
    %v2494 = vadd.f32 %v2284, %v2493
    %v2495 = vpop.f32.mrb[0].mxu0
    %v2496 = vadd.f32 %v2280, %v2495
    %v2497 = vpop.f32.mrb[0].mxu0
    %v2498 = vadd.f32 %v2284, %v2497
    %2499 = vmatprep.mubr.bf16.mxu0 %v2216
    %2500 = vmatmul.mubr.bf16.gmra.mrb[0].mxu0 %v2215
    %v2501 = vpop.f32.mrb[0].mxu0
    %v2502 = vadd.f32 %v2280, %v2501
    %v2503 = vpop.f32.mrb[0].mxu0
    %v2504 = vadd.f32 %v2284, %v2503
    %v2505 = vpop.f32.mrb[0].mxu0
    %v2506 = vadd.f32 %v2280, %v2505
    %v2507 = vpop.f32.mrb[0].mxu0
    %v2508 = vadd.f32 %v2284, %v2507
    %2509 = vmatprep.mubr.bf16.mxu0 %v2218
    %2510 = vmatmul.mubr.bf16.gmra.mrb[0].mxu0 %v2217
    %v2511 = vpop.f32.mrb[0].mxu0
    %v2512 = vadd.f32 %v2280, %v2511
    %v2513 = vpop.f32.mrb[0].mxu0
    %v2514 = vadd.f32 %v2284, %v2513
    %v2515 = vpop.f32.mrb[0].mxu0
    %v2516 = vadd.f32 %v2280, %v2515
    %v2517 = vpop.f32.mrb[0].mxu0
    %v2518 = vadd.f32 %v2284, %v2517
    %2519 = vmatprep.mubr.bf16.mxu0 %v2220
    %2520 = vmatmul.mubr.bf16.gmra.mrb[0].mxu0 %v2219
    %v2521 = vpop.f32.mrb[0].mxu0
    %v2522 = vadd.f32 %v2280, %v2521
    %v2523 = vpop.f32.mrb[0].mxu0
    %v2524 = vadd.f32 %v2284, %v2523
    %v2525 = vpop.f32.mrb[0].mxu0
    %v2526 = vadd.f32 %v2280, %v2525
    %v2527 = vpop.f32.mrb[0].mxu0
    %v2528 = vadd.f32 %v2284, %v2527
    %2529 = vmatprep.mubr.bf16.mxu0 %v2222
    %2530 = vmatmul.mubr.bf16.gmra.mrb[0].mxu0 %v2221
    %v2531 = vpop.f32.mrb[0].mxu0
    %v2532 = vadd.f32 %v2280, %v2531
    %v2533 = vpop.f32.mrb[0].mxu0
    %v2534 = vadd.f32 %v2284, %v2533
    %v2535 = vpop.f32.mrb[0].mxu0
    %v2536 = vadd.f32 %v2280, %v2535
    %v2537 = vpop.f32.mrb[0].mxu0
    %v2538 = vadd.f32 %v2284, %v2537
    %2539 = vmatprep.mubr.bf16.mxu0 %v2224
    %2540 = vmatmul.mubr.bf16.gmra.mrb[0].mxu0 %v2223
    %v2541 = vpop.f32.mrb[0].mxu0
    %v2542 = vadd.f32 %v2280, %v2541
    %v2543 = vpop.f32.mrb[0].mxu0
    %v2544 = vadd.f32 %v2284, %v2543
    %v2545 = vpop.f32.mrb[0].mxu0
    %v2546 = vadd.f32 %v2280, %v2545
    %v2547 = vpop.f32.mrb[0].mxu0
    %v2548 = vadd.f32 %v2284, %v2547
    %2549 = vmatprep.mubr.bf16.mxu0 %v2226
    %2550 = vmatmul.mubr.bf16.gmra.mrb[0].mxu0 %v2225
    %v2551 = vpop.f32.mrb[0].mxu0
    %v2552 = vadd.f32 %v2280, %v2551
    %v2553 = vpop.f32.mrb[0].mxu0
    %v2554 = vadd.f32 %v2284, %v2553
    %v2555 = vpop.f32.mrb[0].mxu0
    %v2556 = vadd.f32 %v2280, %v2555
    %v2557 = vpop.f32.mrb[0].mxu0
    %v2558 = vadd.f32 %v2284, %v2557
    %2559 = vmatprep.mubr.bf16.mxu0 %v2228
    %2560 = vmatmul.mubr.bf16.gmra.mrb[0].mxu0 %v2227
    %v2561 = vpop.f32.mrb[0].mxu0
    %v2562 = vadd.f32 %v2280, %v2561
    %v2563 = vpop.f32.mrb[0].mxu0
    %v2564 = vadd.f32 %v2284, %v2563
    %v2565 = vpop.f32.mrb[0].mxu0
    %v2566 = vadd.f32 %v2280, %v2565
    %v2567 = vpop.f32.mrb[0].mxu0
    %v2568 = vadd.f32 %v2284, %v2567
    %2569 = vmatprep.mubr.bf16.mxu0 %v2230
    %2570 = vmatmul.mubr.bf16.gmra.mrb[0].mxu0 %v2229
    %v2571 = vpop.f32.mrb[0].mxu0
    %v2572 = vadd.f32 %v2280, %v2571
    %v2573 = vpop.f32.mrb[0].mxu0
    %v2574 = vadd.f32 %v2284, %v2573
    %v2575 = vpop.f32.mrb[0].mxu0
    %v2576 = vadd.f32 %v2280, %v2575
    %v2577 = vpop.f32.mrb[0].mxu0
    %v2578 = vadd.f32 %v2284, %v2577
    %2579 = vmatprep.mubr.bf16.mxu0 %v2232
    %2580 = vmatmul.mubr.bf16.gmra.mrb[0].mxu0 %v2231
    %v2581 = vpop.f32.mrb[0].mxu0
    %v2582 = vadd.f32 %v2280, %v2581
    %v2583 = vpop.f32.mrb[0].mxu0
    %v2584 = vadd.f32 %v2284, %v2583
    %v2585 = vpop.f32.mrb[0].mxu0
    %v2586 = vadd.f32 %v2280, %v2585
    %v2587 = vpop.f32.mrb[0].mxu0
    %v2588 = vadd.f32 %v2284, %v2587
    %2589 = vmatprep.mubr.bf16.mxu0 %v2234
    %2590 = vmatmul.mubr.bf16.gmra.mrb[0].mxu0 %v2233
    %v2591 = vpop.f32.mrb[0].mxu0
    %v2592 = vadd.f32 %v2280, %v2591
    %v2593 = vpop.f32.mrb[0].mxu0
    %v2594 = vadd.f32 %v2284, %v2593
    %v2595 = vpop.f32.mrb[0].mxu0
    %v2596 = vadd.f32 %v2280, %v2595
    %v2597 = vpop.f32.mrb[0].mxu0
    %v2598 = vadd.f32 %v2284, %v2597
    %2599 = vmatprep.mubr.bf16.mxu0 %v2236
    %2600 = vmatmul.mubr.bf16.gmra.mrb[0].mxu0 %v2235
    %v2601 = vpop.f32.mrb[0].mxu0
    %v2602 = vadd.f32 %v2280, %v2601
    %v2603 = vpop.f32.mrb[0].mxu0
    %v2604 = vadd.f32 %v2284, %v2603
    %v2605 = vpop.f32.mrb[0].mxu0
    %v2606 = vadd.f32 %v2280, %v2605
    %v2607 = vpop.f32.mrb[0].mxu0
    %v2608 = vadd.f32 %v2284, %v2607
    %2609 = vmatprep.mubr.bf16.mxu0 %v2238
    %2610 = vmatmul.mubr.bf16.gmra.mrb[0].mxu0 %v2237
    %v2611 = vpop.f32.mrb[0].mxu0
    %v2612 = vadd.f32 %v2280, %v2611
    %v2613 = vpop.f32.mrb[0].mxu0
    %v2614 = vadd.f32 %v2284, %v2613
    %v2615 = vpop.f32.mrb[0].mxu0
    %v2616 = vadd.f32 %v2280, %v2615
    %v2617 = vpop.f32.mrb[0].mxu0
    %v2618 = vadd.f32 %v2284, %v2617
    %2619 = vmatprep.mubr.bf16.mxu0 %v2240
    %2620 = vmatmul.mubr.bf16.gmra.mrb[0].mxu0 %v2239
    %v2621 = vpop.f32.mrb[0].mxu0
    %v2622 = vadd.f32 %v2280, %v2621
    %v2623 = vpop.f32.mrb[0].mxu0
    %v2624 = vadd.f32 %v2284, %v2623
    %v2625 = vpop.f32.mrb[0].mxu0
    %v2626 = vadd.f32 %v2280, %v2625
    %v2627 = vpop.f32.mrb[0].mxu0
    %v2628 = vadd.f32 %v2284, %v2627
    %2629 = vmatprep.mubr.bf16.mxu0 %v2242
    %2630 = vmatmul.mubr.bf16.gmra.mrb[0].mxu0 %v2241
    %v2631 = vpop.f32.mrb[0].mxu0
    %v2632 = vadd.f32 %v2280, %v2631
    %v2633 = vpop.f32.mrb[0].mxu0
    %v2634 = vadd.f32 %v2284, %v2633
    %v2635 = vpop.f32.mrb[0].mxu0
    %v2636 = vadd.f32 %v2280, %v2635
    %v2637 = vpop.f32.mrb[0].mxu0
    %v2638 = vadd.f32 %v2284, %v2637
    %2639 = vdwg.mxu0
    %vm2640 = vcmp.gt.f32.partialorder %v2482, 0.0
    %vm2641 = vcmp.gt.f32.partialorder %v2484, 0.0
    %vm2642 = vcmp.gt.f32.partialorder %v2486, 0.0
    %vm2643 = vcmp.gt.f32.partialorder %v2488, 0.0
    %vm2644 = vcmp.gt.f32.partialorder %v2492, 0.0
    %vm2645 = vcmp.gt.f32.partialorder %v2494, 0.0
    %vm2646 = vcmp.gt.f32.partialorder %v2496, 0.0
    %vm2647 = vcmp.gt.f32.partialorder %v2498, 0.0
    %vm2648 = vcmp.gt.f32.partialorder %v2502, 0.0
    %vm2649 = vcmp.gt.f32.partialorder %v2504, 0.0
    %vm2650 = vcmp.gt.f32.partialorder %v2506, 0.0
    %vm2651 = vcmp.gt.f32.partialorder %v2508, 0.0
    %vm2652 = vcmp.gt.f32.partialorder %v2512, 0.0
    %vm2653 = vcmp.gt.f32.partialorder %v2514, 0.0
    %vm2654 = vcmp.gt.f32.partialorder %v2516, 0.0
    %vm2655 = vcmp.gt.f32.partialorder %v2518, 0.0
    %vm2656 = vcmp.gt.f32.partialorder %v2522, 0.0
    %vm2657 = vcmp.gt.f32.partialorder %v2524, 0.0
    %vm2658 = vcmp.gt.f32.partialorder %v2526, 0.0
    %vm2659 = vcmp.gt.f32.partialorder %v2528, 0.0
    %vm2660 = vcmp.gt.f32.partialorder %v2532, 0.0
    %vm2661 = vcmp.gt.f32.partialorder %v2534, 0.0
    %vm2662 = vcmp.gt.f32.partialorder %v2536, 0.0
    %vm2663 = vcmp.gt.f32.partialorder %v2538, 0.0
    %vm2664 = vcmp.gt.f32.partialorder %v2542, 0.0
    %vm2665 = vcmp.gt.f32.partialorder %v2544, 0.0
    %vm2666 = vcmp.gt.f32.partialorder %v2546, 0.0
    %vm2667 = vcmp.gt.f32.partialorder %v2548, 0.0
    %vm2668 = vcmp.gt.f32.partialorder %v2552, 0.0
    %vm2669 = vcmp.gt.f32.partialorder %v2554, 0.0
    %vm2670 = vcmp.gt.f32.partialorder %v2556, 0.0
    %vm2671 = vcmp.gt.f32.partialorder %v2558, 0.0
    %vm2672 = vcmp.gt.f32.partialorder %v2562, 0.0
    %vm2673 = vcmp.gt.f32.partialorder %v2564, 0.0
    %vm2674 = vcmp.gt.f32.partialorder %v2566, 0.0
    %vm2675 = vcmp.gt.f32.partialorder %v2568, 0.0
    %vm2676 = vcmp.gt.f32.partialorder %v2572, 0.0
    %vm2677 = vcmp.gt.f32.partialorder %v2574, 0.0
    %vm2678 = vcmp.gt.f32.partialorder %v2576, 0.0
    %vm2679 = vcmp.gt.f32.partialorder %v2578, 0.0
    %vm2680 = vcmp.gt.f32.partialorder %v2582, 0.0
    %vm2681 = vcmp.gt.f32.partialorder %v2584, 0.0
    %vm2682 = vcmp.gt.f32.partialorder %v2586, 0.0
    %vm2683 = vcmp.gt.f32.partialorder %v2588, 0.0
    %vm2684 = vcmp.gt.f32.partialorder %v2592, 0.0
    %vm2685 = vcmp.gt.f32.partialorder %v2594, 0.0
    %vm2686 = vcmp.gt.f32.partialorder %v2596, 0.0
    %vm2687 = vcmp.gt.f32.partialorder %v2598, 0.0
    %vm2688 = vcmp.gt.f32.partialorder %v2602, 0.0
    %vm2689 = vcmp.gt.f32.partialorder %v2604, 0.0
    %vm2690 = vcmp.gt.f32.partialorder %v2606, 0.0
    %vm2691 = vcmp.gt.f32.partialorder %v2608, 0.0
    %vm2692 = vcmp.gt.f32.partialorder %v2612, 0.0
    %vm2693 = vcmp.gt.f32.partialorder %v2614, 0.0
    %vm2694 = vcmp.gt.f32.partialorder %v2616, 0.0
    %vm2695 = vcmp.gt.f32.partialorder %v2618, 0.0
    %vm2696 = vcmp.gt.f32.partialorder %v2622, 0.0
    %vm2697 = vcmp.gt.f32.partialorder %v2624, 0.0
    %vm2698 = vcmp.gt.f32.partialorder %v2626, 0.0
    %vm2699 = vcmp.gt.f32.partialorder %v2628, 0.0
    %vm2700 = vcmp.gt.f32.partialorder %v2632, 0.0
    %vm2701 = vcmp.gt.f32.partialorder %v2634, 0.0
    %vm2702 = vcmp.gt.f32.partialorder %v2636, 0.0
    %vm2703 = vcmp.gt.f32.partialorder %v2638, 0.0
    %v2704 = vmul.f32 %v2482, 0.2
    %v2705 = vmul.f32 %v2484, 0.2
    %v2706 = vmul.f32 %v2486, 0.2
    %v2707 = vmul.f32 %v2488, 0.2
    %v2708 = vmul.f32 %v2492, 0.2
    %v2709 = vmul.f32 %v2494, 0.2
    %v2710 = vmul.f32 %v2496, 0.2
    %v2711 = vmul.f32 %v2498, 0.2
    %v2712 = vmul.f32 %v2502, 0.2
    %v2713 = vmul.f32 %v2504, 0.2
    %v2714 = vmul.f32 %v2506, 0.2
    %v2715 = vmul.f32 %v2508, 0.2
    %v2716 = vmul.f32 %v2512, 0.2
    %v2717 = vmul.f32 %v2514, 0.2
    %v2718 = vmul.f32 %v2516, 0.2
    %v2719 = vmul.f32 %v2518, 0.2
    %v2720 = vmul.f32 %v2522, 0.2
    %v2721 = vmul.f32 %v2524, 0.2
    %v2722 = vmul.f32 %v2526, 0.2
    %v2723 = vmul.f32 %v2528, 0.2
    %v2724 = vmul.f32 %v2532, 0.2
    %v2725 = vmul.f32 %v2534, 0.2
    %v2726 = vmul.f32 %v2536, 0.2
    %v2727 = vmul.f32 %v2538, 0.2
    %v2728 = vmul.f32 %v2542, 0.2
    %v2729 = vmul.f32 %v2544, 0.2
    %v2730 = vmul.f32 %v2546, 0.2
    %v2731 = vmul.f32 %v2548, 0.2
    %v2732 = vmul.f32 %v2552, 0.2
    %v2733 = vmul.f32 %v2554, 0.2
    %v2734 = vmul.f32 %v2556, 0.2
    %v2735 = vmul.f32 %v2558, 0.2
    %v2736 = vmul.f32 %v2562, 0.2
    %v2737 = vmul.f32 %v2564, 0.2
    %v2738 = vmul.f32 %v2566, 0.2
    %v2739 = vmul.f32 %v2568, 0.2
    %v2740 = vmul.f32 %v2572, 0.2
    %v2741 = vmul.f32 %v2574, 0.2
    %v2742 = vmul.f32 %v2576, 0.2
    %v2743 = vmul.f32 %v2578, 0.2
    %v2744 = vmul.f32 %v2582, 0.2
    %v2745 = vmul.f32 %v2584, 0.2
    %v2746 = vmul.f32 %v2586, 0.2
    %v2747 = vmul.f32 %v2588, 0.2
    %v2748 = vmul.f32 %v2592, 0.2
    %v2749 = vmul.f32 %v2594, 0.2
    %v2750 = vmul.f32 %v2596, 0.2
    %v2751 = vmul.f32 %v2598, 0.2
    %v2752 = vmul.f32 %v2602, 0.2
    %v2753 = vmul.f32 %v2604, 0.2
    %v2754 = vmul.f32 %v2606, 0.2
    %v2755 = vmul.f32 %v2608, 0.2
    %v2756 = vmul.f32 %v2612, 0.2
    %v2757 = vmul.f32 %v2614, 0.2
    %v2758 = vmul.f32 %v2616, 0.2
    %v2759 = vmul.f32 %v2618, 0.2
    %v2760 = vmul.f32 %v2622, 0.2
    %v2761 = vmul.f32 %v2624, 0.2
    %v2762 = vmul.f32 %v2626, 0.2
    %v2763 = vmul.f32 %v2628, 0.2
    %v2764 = vmul.f32 %v2632, 0.2
    %v2765 = vmul.f32 %v2634, 0.2
    %v2766 = vmul.f32 %v2636, 0.2
    %v2767 = vmul.f32 %v2638, 0.2
    %v2768 = vsel %vm2640, %v2482, %v2704
    %v2769 = vsel %vm2641, %v2484, %v2705
    %v2770 = vsel %vm2642, %v2486, %v2706
    %v2771 = vsel %vm2643, %v2488, %v2707
    %v2772 = vsel %vm2644, %v2492, %v2708
    %v2773 = vsel %vm2645, %v2494, %v2709
    %v2774 = vsel %vm2646, %v2496, %v2710
    %v2775 = vsel %vm2647, %v2498, %v2711
    %v2776 = vsel %vm2648, %v2502, %v2712
    %v2777 = vsel %vm2649, %v2504, %v2713
    %v2778 = vsel %vm2650, %v2506, %v2714
    %v2779 = vsel %vm2651, %v2508, %v2715
    %v2780 = vsel %vm2652, %v2512, %v2716
    %v2781 = vsel %vm2653, %v2514, %v2717
    %v2782 = vsel %vm2654, %v2516, %v2718
    %v2783 = vsel %vm2655, %v2518, %v2719
    %v2784 = vsel %vm2656, %v2522, %v2720
    %v2785 = vsel %vm2657, %v2524, %v2721
    %v2786 = vsel %vm2658, %v2526, %v2722
    %v2787 = vsel %vm2659, %v2528, %v2723
    %v2788 = vsel %vm2660, %v2532, %v2724
    %v2789 = vsel %vm2661, %v2534, %v2725
    %v2790 = vsel %vm2662, %v2536, %v2726
    %v2791 = vsel %vm2663, %v2538, %v2727
    %v2792 = vsel %vm2664, %v2542, %v2728
    %v2793 = vsel %vm2665, %v2544, %v2729
    %v2794 = vsel %vm2666, %v2546, %v2730
    %v2795 = vsel %vm2667, %v2548, %v2731
    %v2796 = vsel %vm2668, %v2552, %v2732
    %v2797 = vsel %vm2669, %v2554, %v2733
    %v2798 = vsel %vm2670, %v2556, %v2734
    %v2799 = vsel %vm2671, %v2558, %v2735
    %v2800 = vsel %vm2672, %v2562, %v2736
    %v2801 = vsel %vm2673, %v2564, %v2737
    %v2802 = vsel %vm2674, %v2566, %v2738
    %v2803 = vsel %vm2675, %v2568, %v2739
    %v2804 = vsel %vm2676, %v2572, %v2740
    %v2805 = vsel %vm2677, %v2574, %v2741
    %v2806 = vsel %vm2678, %v2576, %v2742
    %v2807 = vsel %vm2679, %v2578, %v2743
    %v2808 = vsel %vm2680, %v2582, %v2744
    %v2809 = vsel %vm2681, %v2584, %v2745
    %v2810 = vsel %vm2682, %v2586, %v2746
    %v2811 = vsel %vm2683, %v2588, %v2747
    %v2812 = vsel %vm2684, %v2592, %v2748
    %v2813 = vsel %vm2685, %v2594, %v2749
    %v2814 = vsel %vm2686, %v2596, %v2750
    %v2815 = vsel %vm2687, %v2598, %v2751
    %v2816 = vsel %vm2688, %v2602, %v2752
    %v2817 = vsel %vm2689, %v2604, %v2753
    %v2818 = vsel %vm2690, %v2606, %v2754
    %v2819 = vsel %vm2691, %v2608, %v2755
    %v2820 = vsel %vm2692, %v2612, %v2756
    %v2821 = vsel %vm2693, %v2614, %v2757
    %v2822 = vsel %vm2694, %v2616, %v2758
    %v2823 = vsel %vm2695, %v2618, %v2759
    %v2824 = vsel %vm2696, %v2622, %v2760
    %v2825 = vsel %vm2697, %v2624, %v2761
    %v2826 = vsel %vm2698, %v2626, %v2762
    %v2827 = vsel %vm2699, %v2628, %v2763
    %v2828 = vsel %vm2700, %v2632, %v2764
    %v2829 = vsel %vm2701, %v2634, %v2765
    %v2830 = vsel %vm2702, %v2636, %v2766
    %v2831 = vsel %vm2703, %v2638, %v2767
    %v2832 = vpack.c.bf16 %v2770, %v2768
    %v2833 = vpack.c.bf16 %v2771, %v2769
    %v2834 = vpack.c.bf16 %v2774, %v2772
    %v2835 = vpack.c.bf16 %v2775, %v2773
    %v2836 = vpack.c.bf16 %v2778, %v2776
    %v2837 = vpack.c.bf16 %v2779, %v2777
    %v2838 = vpack.c.bf16 %v2782, %v2780
    %v2839 = vpack.c.bf16 %v2783, %v2781
    %v2840 = vpack.c.bf16 %v2786, %v2784
    %v2841 = vpack.c.bf16 %v2787, %v2785
    %v2842 = vpack.c.bf16 %v2790, %v2788
    %v2843 = vpack.c.bf16 %v2791, %v2789
    %v2844 = vpack.c.bf16 %v2794, %v2792
    %v2845 = vpack.c.bf16 %v2795, %v2793
    %v2846 = vpack.c.bf16 %v2798, %v2796
    %v2847 = vpack.c.bf16 %v2799, %v2797
    %v2848 = vpack.c.bf16 %v2802, %v2800
    %v2849 = vpack.c.bf16 %v2803, %v2801
    %v2850 = vpack.c.bf16 %v2806, %v2804
    %v2851 = vpack.c.bf16 %v2807, %v2805
    %v2852 = vpack.c.bf16 %v2810, %v2808
    %v2853 = vpack.c.bf16 %v2811, %v2809
    %v2854 = vpack.c.bf16 %v2814, %v2812
    %v2855 = vpack.c.bf16 %v2815, %v2813
    %v2856 = vpack.c.bf16 %v2818, %v2816
    %v2857 = vpack.c.bf16 %v2819, %v2817
    %v2858 = vpack.c.bf16 %v2822, %v2820
    %v2859 = vpack.c.bf16 %v2823, %v2821
    %v2860 = vpack.c.bf16 %v2826, %v2824
    %v2861 = vpack.c.bf16 %v2827, %v2825
    %v2862 = vpack.c.bf16 %v2830, %v2828
    %v2863 = vpack.c.bf16 %v2831, %v2829
    %v2864 = vld [vmem:[#allocation8] sm:$0xf]
    %v2865 = vld [vmem:[#allocation8 + $0x4] sm:$0xf]
    %v2866 = vld [vmem:[#allocation8 + $0x8] sm:$0xf]
    %v2867 = vld [vmem:[#allocation8 + $0xc] sm:$0xf]
    %v2868 = vld [vmem:[#allocation8 + $0x10] sm:$0xf]
    %v2869 = vld [vmem:[#allocation8 + $0x14] sm:$0xf]
    %v2870 = vld [vmem:[#allocation8 + $0x18] sm:$0xf]
    %v2871 = vld [vmem:[#allocation8 + $0x1c] sm:$0xf]
    %v2872 = vld [vmem:[#allocation8 + $0x20] sm:$0xf]
    %v2873 = vld [vmem:[#allocation8 + $0x24] sm:$0xf]
    %v2874 = vld [vmem:[#allocation8 + $0x28] sm:$0xf]
    %v2875 = vld [vmem:[#allocation8 + $0x2c] sm:$0xf]
    %v2876 = vld [vmem:[#allocation8 + $0x30] sm:$0xf]
    %v2877 = vld [vmem:[#allocation8 + $0x34] sm:$0xf]
    %v2878 = vld [vmem:[#allocation8 + $0x38] sm:$0xf]
    %v2879 = vld [vmem:[#allocation8 + $0x3c] sm:$0xf]
    %v2880 = vld [vmem:[#allocation8 + $0x40] sm:$0xf]
    %v2881 = vld [vmem:[#allocation8 + $0x44] sm:$0xf]
    %v2882 = vld [vmem:[#allocation8 + $0x48] sm:$0xf]
    %v2883 = vld [vmem:[#allocation8 + $0x4c] sm:$0xf]
    %v2884 = vld [vmem:[#allocation8 + $0x50] sm:$0xf]
    %v2885 = vld [vmem:[#allocation8 + $0x54] sm:$0xf]
    %v2886 = vld [vmem:[#allocation8 + $0x58] sm:$0xf]
    %v2887 = vld [vmem:[#allocation8 + $0x5c] sm:$0xf]
    %v2888 = vld [vmem:[#allocation8 + $0x60] sm:$0xf]
    %v2889 = vld [vmem:[#allocation8 + $0x64] sm:$0xf]
    %v2890 = vld [vmem:[#allocation8 + $0x68] sm:$0xf]
    %v2891 = vld [vmem:[#allocation8 + $0x6c] sm:$0xf]
    %v2892 = vld [vmem:[#allocation8 + $0x70] sm:$0xf]
    %v2893 = vld [vmem:[#allocation8 + $0x74] sm:$0xf]
    %v2894 = vld [vmem:[#allocation8 + $0x78] sm:$0xf]
    %v2895 = vld [vmem:[#allocation8 + $0x7c] sm:$0xf]
    %v2896 = vld [vmem:[%s6] sm:$0x1]
    %v2898 = vlaneseq
    %v2899 = vshrl.u32 %v2898, 7
    %v2900 = vsub.s32 0, %v2899
    %v2901 = vrot.slane %v2896, %v2900
    %v2935 = vunpack.c.l.b16 %v2864
    %v2936 = vunpack.c.l.b16 %v2865
    %v2937 = vunpack.c.l.b16 %v2866
    %v2938 = vunpack.c.l.b16 %v2867
    %v2939 = vunpack.c.l.b16 %v2868
    %v2940 = vunpack.c.l.b16 %v2869
    %v2941 = vunpack.c.l.b16 %v2870
    %v2942 = vunpack.c.l.b16 %v2871
    %v2943 = vunpack.c.l.b16 %v2872
    %v2944 = vunpack.c.l.b16 %v2873
    %v2945 = vunpack.c.l.b16 %v2874
    %v2946 = vunpack.c.l.b16 %v2875
    %v2947 = vunpack.c.l.b16 %v2876
    %v2948 = vunpack.c.l.b16 %v2877
    %v2949 = vunpack.c.l.b16 %v2878
    %v2950 = vunpack.c.l.b16 %v2879
    %v2951 = vunpack.c.l.b16 %v2880
    %v2952 = vunpack.c.l.b16 %v2881
    %v2953 = vunpack.c.l.b16 %v2882
    %v2954 = vunpack.c.l.b16 %v2883
    %v2955 = vunpack.c.l.b16 %v2884
    %v2956 = vunpack.c.l.b16 %v2885
    %v2957 = vunpack.c.l.b16 %v2886
    %v2958 = vunpack.c.l.b16 %v2887
    %v2959 = vunpack.c.l.b16 %v2888
    %v2960 = vunpack.c.l.b16 %v2889
    %v2961 = vunpack.c.l.b16 %v2890
    %v2962 = vunpack.c.l.b16 %v2891
    %v2963 = vunpack.c.l.b16 %v2892
    %v2964 = vunpack.c.l.b16 %v2893
    %v2965 = vunpack.c.l.b16 %v2894
    %v2966 = vunpack.c.l.b16 %v2895
    %v2967 = vpack.c.b16 %v2936, %v2935
    %v2968 = vpack.c.b16 %v2938, %v2937
    %v2969 = vpack.c.b16 %v2940, %v2939
    %v2970 = vpack.c.b16 %v2942, %v2941
    %v2971 = vpack.c.b16 %v2944, %v2943
    %v2972 = vpack.c.b16 %v2946, %v2945
    %v2973 = vpack.c.b16 %v2948, %v2947
    %v2974 = vpack.c.b16 %v2950, %v2949
    %v2975 = vpack.c.b16 %v2952, %v2951
    %v2976 = vpack.c.b16 %v2954, %v2953
    %v2977 = vpack.c.b16 %v2956, %v2955
    %v2978 = vpack.c.b16 %v2958, %v2957
    %v2979 = vpack.c.b16 %v2960, %v2959
    %v2980 = vpack.c.b16 %v2962, %v2961
    %v2981 = vpack.c.b16 %v2964, %v2963
    %v2982 = vpack.c.b16 %v2966, %v2965
    %2999 = vmatprep.subr.bf16.mxu0 0
    %3000 = vmatpush1.bf16.msra.mxu0 %v2967
    %3001 = vmatprep.subr.bf16.mxu0 0
    %3002 = vmatpush1.bf16.msra.mxu0 %v2968
    %3003 = vmatprep.subr.bf16.mxu0 0
    %3004 = vmatpush1.bf16.msra.mxu0 %v2969
    %3005 = vmatprep.subr.bf16.mxu0 0
    %3006 = vmatpush1.bf16.msra.mxu0 %v2970
    %3007 = vmatprep.subr.bf16.mxu0 0
    %3008 = vmatpush1.bf16.msra.mxu0 %v2971
    %3009 = vmatprep.subr.bf16.mxu0 0
    %3010 = vmatpush1.bf16.msra.mxu0 %v2972
    %3011 = vmatprep.subr.bf16.mxu0 0
    %3012 = vmatpush1.bf16.msra.mxu0 %v2973
    %3013 = vmatprep.subr.bf16.mxu0 0
    %3014 = vmatpush1.bf16.msra.mxu0 %v2974
    %3015 = vmatprep.subr.bf16.mxu0 0
    %3016 = vmatpush1.bf16.msra.mxu0 %v2975
    %3017 = vmatprep.subr.bf16.mxu0 0
    %3018 = vmatpush1.bf16.msra.mxu0 %v2976
    %3019 = vmatprep.subr.bf16.mxu0 0
    %3020 = vmatpush1.bf16.msra.mxu0 %v2977
    %3021 = vmatprep.subr.bf16.mxu0 0
    %3022 = vmatpush1.bf16.msra.mxu0 %v2978
    %3023 = vmatprep.subr.bf16.mxu0 0
    %3024 = vmatpush1.bf16.msra.mxu0 %v2979
    %3025 = vmatprep.subr.bf16.mxu0 0
    %3026 = vmatpush1.bf16.msra.mxu0 %v2980
    %3027 = vmatprep.subr.bf16.mxu0 0
    %3028 = vmatpush1.bf16.msra.mxu0 %v2981
    %3029 = vmatprep.subr.bf16.mxu0 0
    %3030 = vmatpush1.bf16.msra.mxu0 %v2982
    %3031 = vmatprep.mubr.bf16.mxu0 %v2833
    %3032 = vmatmul.mubr.bf16.gmra.mrb[0].mxu0 %v2832
    %v3033 = vpop.f32.mrb[0].mxu0
    %v3034 = vadd.f32 %v2901, %v3033
    %v3035 = vpop.f32.mrb[0].mxu0
    %v3036 = vpop.f32.mrb[0].mxu0
    %v3037 = vadd.f32 %v2901, %v3036
    %v3038 = vpop.f32.mrb[0].mxu0
    %3039 = vmatprep.mubr.bf16.mxu0 %v2835
    %3040 = vmatmul.mubr.bf16.gmra.mrb[0].mxu0 %v2834
    %v3041 = vpop.f32.mrb[0].mxu0
    %v3042 = vadd.f32 %v2901, %v3041
    %v3043 = vpop.f32.mrb[0].mxu0
    %v3044 = vpop.f32.mrb[0].mxu0
    %v3045 = vadd.f32 %v2901, %v3044
    %v3046 = vpop.f32.mrb[0].mxu0
    %3047 = vmatprep.mubr.bf16.mxu0 %v2837
    %3048 = vmatmul.mubr.bf16.gmra.mrb[0].mxu0 %v2836
    %v3049 = vpop.f32.mrb[0].mxu0
    %v3050 = vadd.f32 %v2901, %v3049
    %v3051 = vpop.f32.mrb[0].mxu0
    %v3052 = vpop.f32.mrb[0].mxu0
    %v3053 = vadd.f32 %v2901, %v3052
    %v3054 = vpop.f32.mrb[0].mxu0
    %3055 = vmatprep.mubr.bf16.mxu0 %v2839
    %3056 = vmatmul.mubr.bf16.gmra.mrb[0].mxu0 %v2838
    %v3057 = vpop.f32.mrb[0].mxu0
    %v3058 = vadd.f32 %v2901, %v3057
    %v3059 = vpop.f32.mrb[0].mxu0
    %v3060 = vpop.f32.mrb[0].mxu0
    %v3061 = vadd.f32 %v2901, %v3060
    %v3062 = vpop.f32.mrb[0].mxu0
    %3063 = vmatprep.mubr.bf16.mxu0 %v2841
    %3064 = vmatmul.mubr.bf16.gmra.mrb[0].mxu0 %v2840
    %v3065 = vpop.f32.mrb[0].mxu0
    %v3066 = vadd.f32 %v2901, %v3065
    %v3067 = vpop.f32.mrb[0].mxu0
    %v3068 = vpop.f32.mrb[0].mxu0
    %v3069 = vadd.f32 %v2901, %v3068
    %v3070 = vpop.f32.mrb[0].mxu0
    %3071 = vmatprep.mubr.bf16.mxu0 %v2843
    %3072 = vmatmul.mubr.bf16.gmra.mrb[0].mxu0 %v2842
    %v3073 = vpop.f32.mrb[0].mxu0
    %v3074 = vadd.f32 %v2901, %v3073
    %v3075 = vpop.f32.mrb[0].mxu0
    %v3076 = vpop.f32.mrb[0].mxu0
    %v3077 = vadd.f32 %v2901, %v3076
    %v3078 = vpop.f32.mrb[0].mxu0
    %3079 = vmatprep.mubr.bf16.mxu0 %v2845
    %3080 = vmatmul.mubr.bf16.gmra.mrb[0].mxu0 %v2844
    %v3081 = vpop.f32.mrb[0].mxu0
    %v3082 = vadd.f32 %v2901, %v3081
    %v3083 = vpop.f32.mrb[0].mxu0
    %v3084 = vpop.f32.mrb[0].mxu0
    %v3085 = vadd.f32 %v2901, %v3084
    %v3086 = vpop.f32.mrb[0].mxu0
    %3087 = vmatprep.mubr.bf16.mxu0 %v2847
    %3088 = vmatmul.mubr.bf16.gmra.mrb[0].mxu0 %v2846
    %v3089 = vpop.f32.mrb[0].mxu0
    %v3090 = vadd.f32 %v2901, %v3089
    %v3091 = vpop.f32.mrb[0].mxu0
    %v3092 = vpop.f32.mrb[0].mxu0
    %v3093 = vadd.f32 %v2901, %v3092
    %v3094 = vpop.f32.mrb[0].mxu0
    %3095 = vmatprep.mubr.bf16.mxu0 %v2849
    %3096 = vmatmul.mubr.bf16.gmra.mrb[0].mxu0 %v2848
    %v3097 = vpop.f32.mrb[0].mxu0
    %v3098 = vadd.f32 %v2901, %v3097
    %v3099 = vpop.f32.mrb[0].mxu0
    %v3100 = vpop.f32.mrb[0].mxu0
    %v3101 = vadd.f32 %v2901, %v3100
    %v3102 = vpop.f32.mrb[0].mxu0
    %3103 = vmatprep.mubr.bf16.mxu0 %v2851
    %3104 = vmatmul.mubr.bf16.gmra.mrb[0].mxu0 %v2850
    %v3105 = vpop.f32.mrb[0].mxu0
    %v3106 = vadd.f32 %v2901, %v3105
    %v3107 = vpop.f32.mrb[0].mxu0
    %v3108 = vpop.f32.mrb[0].mxu0
    %v3109 = vadd.f32 %v2901, %v3108
    %v3110 = vpop.f32.mrb[0].mxu0
    %3111 = vmatprep.mubr.bf16.mxu0 %v2853
    %3112 = vmatmul.mubr.bf16.gmra.mrb[0].mxu0 %v2852
    %v3113 = vpop.f32.mrb[0].mxu0
    %v3114 = vadd.f32 %v2901, %v3113
    %v3115 = vpop.f32.mrb[0].mxu0
    %v3116 = vpop.f32.mrb[0].mxu0
    %v3117 = vadd.f32 %v2901, %v3116
    %v3118 = vpop.f32.mrb[0].mxu0
    %3119 = vmatprep.mubr.bf16.mxu0 %v2855
    %3120 = vmatmul.mubr.bf16.gmra.mrb[0].mxu0 %v2854
    %v3121 = vpop.f32.mrb[0].mxu0
    %v3122 = vadd.f32 %v2901, %v3121
    %v3123 = vpop.f32.mrb[0].mxu0
    %v3124 = vpop.f32.mrb[0].mxu0
    %v3125 = vadd.f32 %v2901, %v3124
    %v3126 = vpop.f32.mrb[0].mxu0
    %3127 = vmatprep.mubr.bf16.mxu0 %v2857
    %3128 = vmatmul.mubr.bf16.gmra.mrb[0].mxu0 %v2856
    %v3129 = vpop.f32.mrb[0].mxu0
    %v3130 = vadd.f32 %v2901, %v3129
    %v3131 = vpop.f32.mrb[0].mxu0
    %v3132 = vpop.f32.mrb[0].mxu0
    %v3133 = vadd.f32 %v2901, %v3132
    %v3134 = vpop.f32.mrb[0].mxu0
    %3135 = vmatprep.mubr.bf16.mxu0 %v2859
    %3136 = vmatmul.mubr.bf16.gmra.mrb[0].mxu0 %v2858
    %v3137 = vpop.f32.mrb[0].mxu0
    %v3138 = vadd.f32 %v2901, %v3137
    %v3139 = vpop.f32.mrb[0].mxu0
    %v3140 = vpop.f32.mrb[0].mxu0
    %v3141 = vadd.f32 %v2901, %v3140
    %v3142 = vpop.f32.mrb[0].mxu0
    %3143 = vmatprep.mubr.bf16.mxu0 %v2861
    %3144 = vmatmul.mubr.bf16.gmra.mrb[0].mxu0 %v2860
    %v3145 = vpop.f32.mrb[0].mxu0
    %v3146 = vadd.f32 %v2901, %v3145
    %v3147 = vpop.f32.mrb[0].mxu0
    %v3148 = vpop.f32.mrb[0].mxu0
    %v3149 = vadd.f32 %v2901, %v3148
    %v3150 = vpop.f32.mrb[0].mxu0
    %3151 = vmatprep.mubr.bf16.mxu0 %v2863
    %3152 = vmatmul.mubr.bf16.gmra.mrb[0].mxu0 %v2862
    %v3153 = vpop.f32.mrb[0].mxu0
    %v3154 = vadd.f32 %v2901, %v3153
    %v3155 = vpop.f32.mrb[0].mxu0
    %v3156 = vpop.f32.mrb[0].mxu0
    %v3157 = vadd.f32 %v2901, %v3156
    %v3158 = vpop.f32.mrb[0].mxu0
    %3159 = vdwg.mxu0
    %v3160 = vpack.c.bf16 %v3037, %v3034
    %v3161 = vpack.c.bf16 %v3045, %v3042
    %v3162 = vpack.c.bf16 %v3053, %v3050
    %v3163 = vpack.c.bf16 %v3061, %v3058
    %v3164 = vpack.c.bf16 %v3069, %v3066
    %v3165 = vpack.c.bf16 %v3077, %v3074
    %v3166 = vpack.c.bf16 %v3085, %v3082
    %v3167 = vpack.c.bf16 %v3093, %v3090
    %v3168 = vpack.c.bf16 %v3101, %v3098
    %v3169 = vpack.c.bf16 %v3109, %v3106
    %v3170 = vpack.c.bf16 %v3117, %v3114
    %v3171 = vpack.c.bf16 %v3125, %v3122
    %v3172 = vpack.c.bf16 %v3133, %v3130
    %v3173 = vpack.c.bf16 %v3141, %v3138
    %v3174 = vpack.c.bf16 %v3149, %v3146
    %v3175 = vpack.c.bf16 %v3157, %v3154
    %v3192 = vunpack.c.l.b16 %v3160
    %v3193 = vunpack.c.h.b16 %v3160
    %v3194 = vunpack.c.l.b16 %v3161
    %v3195 = vunpack.c.h.b16 %v3161
    %v3196 = vunpack.c.l.b16 %v3162
    %v3197 = vunpack.c.h.b16 %v3162
    %v3198 = vunpack.c.l.b16 %v3163
    %v3199 = vunpack.c.h.b16 %v3163
    %v3200 = vunpack.c.l.b16 %v3164
    %v3201 = vunpack.c.h.b16 %v3164
    %v3202 = vunpack.c.l.b16 %v3165
    %v3203 = vunpack.c.h.b16 %v3165
    %v3204 = vunpack.c.l.b16 %v3166
    %v3205 = vunpack.c.h.b16 %v3166
    %v3206 = vunpack.c.l.b16 %v3167
    %v3207 = vunpack.c.h.b16 %v3167
    %v3208 = vunpack.c.l.b16 %v3168
    %v3209 = vunpack.c.h.b16 %v3168
    %v3210 = vunpack.c.l.b16 %v3169
    %v3211 = vunpack.c.h.b16 %v3169
    %v3212 = vunpack.c.l.b16 %v3170
    %v3213 = vunpack.c.h.b16 %v3170
    %v3214 = vunpack.c.l.b16 %v3171
    %v3215 = vunpack.c.h.b16 %v3171
    %v3216 = vunpack.c.l.b16 %v3172
    %v3217 = vunpack.c.h.b16 %v3172
    %v3218 = vunpack.c.l.b16 %v3173
    %v3219 = vunpack.c.h.b16 %v3173
    %v3220 = vunpack.c.l.b16 %v3174
    %v3221 = vunpack.c.h.b16 %v3174
    %v3222 = vunpack.c.l.b16 %v3175
    %v3223 = vunpack.c.h.b16 %v3175
    %v3224 = vpack.c.b16 %v3192, %v3192
    %v3225 = vpack.c.b16 %v3193, %v3193
    %v3226 = vpack.c.b16 %v3194, %v3194
    %v3227 = vpack.c.b16 %v3195, %v3195
    %v3228 = vpack.c.b16 %v3196, %v3196
    %v3229 = vpack.c.b16 %v3197, %v3197
    %v3230 = vpack.c.b16 %v3198, %v3198
    %v3231 = vpack.c.b16 %v3199, %v3199
    %v3232 = vpack.c.b16 %v3200, %v3200
    %v3233 = vpack.c.b16 %v3201, %v3201
    %v3234 = vpack.c.b16 %v3202, %v3202
    %v3235 = vpack.c.b16 %v3203, %v3203
    %v3236 = vpack.c.b16 %v3204, %v3204
    %v3237 = vpack.c.b16 %v3205, %v3205
    %v3238 = vpack.c.b16 %v3206, %v3206
    %v3239 = vpack.c.b16 %v3207, %v3207
    %v3240 = vpack.c.b16 %v3208, %v3208
    %v3241 = vpack.c.b16 %v3209, %v3209
    %v3242 = vpack.c.b16 %v3210, %v3210
    %v3243 = vpack.c.b16 %v3211, %v3211
    %v3244 = vpack.c.b16 %v3212, %v3212
    %v3245 = vpack.c.b16 %v3213, %v3213
    %v3246 = vpack.c.b16 %v3214, %v3214
    %v3247 = vpack.c.b16 %v3215, %v3215
    %v3248 = vpack.c.b16 %v3216, %v3216
    %v3249 = vpack.c.b16 %v3217, %v3217
    %v3250 = vpack.c.b16 %v3218, %v3218
    %v3251 = vpack.c.b16 %v3219, %v3219
    %v3252 = vpack.c.b16 %v3220, %v3220
    %v3253 = vpack.c.b16 %v3221, %v3221
    %v3254 = vpack.c.b16 %v3222, %v3222
    %v3255 = vpack.c.b16 %v3223, %v3223
    %3288 = vst [vmem:[#allocation10] sm:$0xf] %v3224
    %3289 = vst [vmem:[#allocation10 + $0x4] sm:$0xf] %v3225
    %3290 = vst [vmem:[#allocation10 + $0x8] sm:$0xf] %v3226
    %3291 = vst [vmem:[#allocation10 + $0xc] sm:$0xf] %v3227
    %3292 = vst [vmem:[#allocation10 + $0x10] sm:$0xf] %v3228
    %3293 = vst [vmem:[#allocation10 + $0x14] sm:$0xf] %v3229
    %3294 = vst [vmem:[#allocation10 + $0x18] sm:$0xf] %v3230
    %3295 = vst [vmem:[#allocation10 + $0x1c] sm:$0xf] %v3231
    %3296 = vst [vmem:[#allocation10 + $0x20] sm:$0xf] %v3232
    %3297 = vst [vmem:[#allocation10 + $0x24] sm:$0xf] %v3233
    %3298 = vst [vmem:[#allocation10 + $0x28] sm:$0xf] %v3234
    %3299 = vst [vmem:[#allocation10 + $0x2c] sm:$0xf] %v3235
    %3300 = vst [vmem:[#allocation10 + $0x30] sm:$0xf] %v3236
    %3301 = vst [vmem:[#allocation10 + $0x34] sm:$0xf] %v3237
    %3302 = vst [vmem:[#allocation10 + $0x38] sm:$0xf] %v3238
    %3303 = vst [vmem:[#allocation10 + $0x3c] sm:$0xf] %v3239
    %3304 = vst [vmem:[#allocation10 + $0x40] sm:$0xf] %v3240
    %3305 = vst [vmem:[#allocation10 + $0x44] sm:$0xf] %v3241
    %3306 = vst [vmem:[#allocation10 + $0x48] sm:$0xf] %v3242
    %3307 = vst [vmem:[#allocation10 + $0x4c] sm:$0xf] %v3243
    %3308 = vst [vmem:[#allocation10 + $0x50] sm:$0xf] %v3244
    %3309 = vst [vmem:[#allocation10 + $0x54] sm:$0xf] %v3245
    %3310 = vst [vmem:[#allocation10 + $0x58] sm:$0xf] %v3246
    %3311 = vst [vmem:[#allocation10 + $0x5c] sm:$0xf] %v3247
    %3312 = vst [vmem:[#allocation10 + $0x60] sm:$0xf] %v3248
    %3313 = vst [vmem:[#allocation10 + $0x64] sm:$0xf] %v3249
    %3314 = vst [vmem:[#allocation10 + $0x68] sm:$0xf] %v3250
    %3315 = vst [vmem:[#allocation10 + $0x6c] sm:$0xf] %v3251
    %3316 = vst [vmem:[#allocation10 + $0x70] sm:$0xf] %v3252
    %3317 = vst [vmem:[#allocation10 + $0x74] sm:$0xf] %v3253
    %3318 = vst [vmem:[#allocation10 + $0x78] sm:$0xf] %v3254
    %3319 = vst [vmem:[#allocation10 + $0x7c] sm:$0xf] %v3255
    // Predicated region
    $region46: #{tpu_custom_call.1} parent=1 // pred_check
      _
    $region47: #{tpu_custom_call.1} parent=1 // pred_check_branch
      %3321 = sbr.rel (0) target = $region49
    $region48: #{tpu_custom_call.1} parent=1 // pred_region
      %s3323 = ssub.s32 2048, 2048
      %3324 = vsyncadd [#allocation4], %s3323
      %s3325 = sshll.u32 [#allocation10], 4
      %s3326 = int_to_ptr.vmem [resolvable:$true] %s3325
      %3331 = dma.vmem_to_hbm [thread:$0]  %s3326, 2048, %s7, [#allocation4], 64, 64, 4
    $region49: #{tpu_custom_call.1} parent=1 // pred_fallthru
      _
    // Predicated region
    $region50: #{tpu_custom_call.1} parent=1 // pred_check
      _
    $region51: #{tpu_custom_call.1} parent=1 // pred_check_branch
      %3333 = sbr.rel (0) target = $region53
    $region52: #{tpu_custom_call.1} parent=1 // pred_region
      %3334 = dma.done [#allocation4], 2048
    $region53: #{tpu_custom_call.1} parent=1 // pred_fallthru
      _
    %3335 = vsyncpa [#allocation3], 1
    %3336 = vsyncpa [#allocation6], 1
    %3337 = vsyncpa [#allocation9], 1
    %3338 = vsyncpa [#allocation4], 1

</llo_original>
